<compile_context>
chip_gen: v5e
topology: v5e:2x2
jax: 0.10.0
libtpu: 0.0.40
codegen_flags: <defaults>
</compile_context>

<pallas_src>
import functools

import jax
import jax.numpy as jnp
from jax import lax
from jax.experimental import pallas as pl
from jax.experimental.pallas import tpu as pltpu

# Module hyper-parameters (from model.py)
N_EMB = 384
NUM_HEADS = 6
HEAD_SIZE = N_EMB // NUM_HEADS  # 64
BLOCK_SIZE = 256                # max context; T <= BLOCK_SIZE


def _mha_kernel(x_ref, wqkv_ref, wproj_ref, bproj_ref, o_ref, att_ref, *,
                num_heads, head_size, bt, seq_len, n_emb):
    """One grid step: Bt batch rows of fused QKV + causal attention + out proj."""
    H, hs, Bt, T, C = num_heads, head_size, bt, seq_len, n_emb

    # ---- fused QKV projection over all Bt rows at once (M = Bt*T) ----
    xm = x_ref[...].reshape(Bt * T, C).astype(jnp.bfloat16)
    qkv = jnp.dot(xm, wqkv_ref[...],
                  preferred_element_type=jnp.float32)          # (Bt*T, 3C) f32
    qkv = qkv.astype(jnp.bfloat16)                             # single down-cast

    # ---- causal mask from narrow iotas ----
    row = lax.broadcasted_iota(jnp.int32, (T, 1), 0)
    col = lax.broadcasted_iota(jnp.int32, (1, T), 1)
    causal = col <= row                                        # (T, T)

    dn = (((1,), (1,)), ((), ()))                              # q @ k^T, no k.T copy

    for b in range(Bt):
        rows = slice(b * T, (b + 1) * T)
        for h in range(H):
            # Q weight columns are pre-scaled by C**-0.5, so no (T,T) rescale here.
            q = qkv[rows, h * hs:(h + 1) * hs]                       # (T, hs) bf16
            k = qkv[rows, (H + h) * hs:(H + h + 1) * hs]             # (T, hs) bf16
            v = qkv[rows, (2 * H + h) * hs:(2 * H + h + 1) * hs]     # (T, hs) bf16

            s = lax.dot_general(q, k, dimension_numbers=dn,
                                preferred_element_type=jnp.float32)  # (T, T) f32
            s = jnp.where(causal, s, -jnp.inf)

            # softmax along last dim (f32)
            m = jnp.max(s, axis=-1, keepdims=True)
            p = jnp.exp(s - m)
            denom = jnp.sum(p, axis=-1, keepdims=True)
            p = p * pl.reciprocal(denom, approx=True)
            # TODO(synk): training-mode dropout on attention probs not implemented (eval).

            # P@V result goes straight into the per-step scratch slot for this head.
            att_ref[b, :, h * hs:(h + 1) * hs] = jnp.dot(
                p.astype(jnp.bfloat16), v, preferred_element_type=jnp.float32)

    # ---- fused head-concat (already contiguous in scratch) + out proj + bias ----
    cat = att_ref[...].reshape(Bt * T, C).astype(jnp.bfloat16)
    out = jnp.dot(cat, wproj_ref[...],
                  preferred_element_type=jnp.float32) + bproj_ref[...]
    # TODO(synk): training-mode dropout on projection output not implemented (eval).
    o_ref[...] = out.reshape(Bt, T, C).astype(o_ref.dtype)


def pack_weights(wq, wk, wv, w_proj, b_proj):
    """One-time weight packing (do this at init, NOT per forward call).

    wq/wk/wv: (H, C, hs); w_proj: (C, C) laid out (in, out); b_proj: (C,).
    Returns lane-dense bf16 w_qkv (C, 3C) with Q columns pre-scaled by C**-0.5,
    bf16 w_proj, and f32 (1, C) bias.
    """
    H, C, hs = wq.shape
    scale = C ** (-0.5)  # PyTorch module scales by C (= n_emb), not head_size

    def stack(w):  # (H, C, hs) -> (C, H*hs), head-major columns
        return jnp.transpose(w, (1, 0, 2)).reshape(C, H * hs)

    w_qkv = jnp.concatenate(
        [stack(wq) * scale, stack(wk), stack(wv)], axis=1).astype(jnp.bfloat16)
    w_p = w_proj.astype(jnp.bfloat16)
    b_p = b_proj.reshape(1, C).astype(jnp.float32)
    return w_qkv, w_p, b_p


def _pick_batch_tile(B, T):
    """Largest divisor of B such that Bt*T fills the MXU M dim without huge unroll."""
    cap = max(1, min(B, max(1, 128 // T), 8))
    for cand in range(cap, 0, -1):
        if B % cand == 0:
            return cand
    return 1


@functools.partial(jax.jit, static_argnames=("num_heads",))
def multi_head_attention(x, w_qkv, w_p, b_p, *, num_heads=NUM_HEADS):
    """x: (B, T, C) f32; w_qkv: (C, 3C) bf16 (packed); w_p: (C, C) bf16; b_p: (1, C) f32."""
    B, T, C = x.shape
    H = num_heads
    hs = C // H
    bt = _pick_batch_tile(B, T)

    kernel = functools.partial(_mha_kernel, num_heads=H, head_size=hs,
                               bt=bt, seq_len=T, n_emb=C)

    out = pl.pallas_call(
        kernel,
        out_shape=jax.ShapeDtypeStruct((B, T, C), jnp.float32),
        grid_spec=pltpu.PrefetchScalarGridSpec(
            num_scalar_prefetch=0,
            grid=(B // bt,),
            in_specs=[
                pl.BlockSpec((bt, T, C), lambda i: (i, 0, 0)),
                pl.BlockSpec((C, 3 * C), lambda i: (0, 0)),
                pl.BlockSpec((C, C), lambda i: (0, 0)),
                pl.BlockSpec((1, C), lambda i: (0, 0)),
            ],
            out_specs=pl.BlockSpec((bt, T, C), lambda i: (i, 0, 0)),
            scratch_shapes=[pltpu.VMEM((bt, T, C), jnp.float32)],
        ),
        compiler_params=pltpu.CompilerParams(
            dimension_semantics=("parallel",)),
    )(x, w_qkv, w_p, b_p)

    return out


def _reference(x, wq, wk, wv, w_proj, b_proj):
    """Pure-JAX f32 reference mirroring the PyTorch forward (eval mode)."""
    B, T, C = x.shape
    outs = []
    mask = jnp.tril(jnp.ones((T, T), dtype=bool))
    for h in range(wq.shape[0]):
        q = x @ wq[h]
        k = x @ wk[h]
        v = x @ wv[h]
        wei = (q @ jnp.swapaxes(k, -2, -1)) * (C ** -0.5)
        wei = jnp.where(mask, wei, -jnp.inf)
        wei = jax.nn.softmax(wei, axis=-1)
        outs.append(wei @ v)
    cat = jnp.concatenate(outs, axis=-1)
    return cat @ w_proj + b_proj


if __name__ == "__main__":
    key = jax.random.PRNGKey(0)
    k_x, k_q, k_k, k_v, k_p, k_b = jax.random.split(key, 6)

    B, T = 2, 8  # small shapes; T <= block_size
    x = jax.random.normal(k_x, (B, T, N_EMB), dtype=jnp.float32)

    # Deterministic synthetic parameters (PyTorch Linear-like scale).
    wq = jax.random.normal(k_q, (NUM_HEADS, N_EMB, HEAD_SIZE), jnp.float32) * 0.02
    wk = jax.random.normal(k_k, (NUM_HEADS, N_EMB, HEAD_SIZE), jnp.float32) * 0.02
    wv = jax.random.normal(k_v, (NUM_HEADS, N_EMB, HEAD_SIZE), jnp.float32) * 0.02
    w_proj = jax.random.normal(k_p, (N_EMB, N_EMB), jnp.float32) * 0.02
    b_proj = jax.random.normal(k_b, (N_EMB,), jnp.float32) * 0.02

    # Pack weights ONCE (init time), then call the jitted forward.
    w_qkv, w_p, b_p = pack_weights(wq, wk, wv, w_proj, b_proj)

    out = multi_head_attention(x, w_qkv, w_p, b_p)
    out = jax.block_until_ready(out)

    ref = _reference(x, wq, wk, wv, w_proj, b_proj)
    assert out.shape == (B, T, N_EMB)
    # bf16 MXU operands with f32 accumulation -> loosened tolerance vs pure-f32 reference.
    assert jnp.allclose(out, ref, atol=2e-2, rtol=2e-2), "mismatch vs reference"

    print("KERNEL_OK")
</pallas_src>

<mosaic_0001>
module attributes {stable_mosaic.version = 11 : i64} {
  func.func @_mha_kernel(%arg0: i32, %arg1: memref<2x8x384xf32, #tpu.memory_space<vmem>>, %arg2: memref<384x1152xbf16, #tpu.memory_space<vmem>>, %arg3: memref<384x384xbf16, #tpu.memory_space<vmem>>, %arg4: memref<1x384xf32, #tpu.memory_space<vmem>>, %arg5: memref<2x8x384xf32, #tpu.memory_space<vmem>>, %arg6: memref<2x8x384xf32, #tpu.memory_space<vmem>>) attributes {dimension_semantics = [#tpu.dimension_semantics<parallel>], iteration_bounds = array<i64: 1>, scalar_prefetch = 0 : i64, scratch_operands = 1 : i64, tpu.core_type = #tpu.core_type<tc>, window_params = [{transform_indices = @transform_0, window_bounds = array<i64: 2, 8, 384>}, {pipeline_mode = #tpu.pipeline_mode<synchronous>, transform_indices = @transform_1, window_bounds = array<i64: 384, 1152>}, {pipeline_mode = #tpu.pipeline_mode<synchronous>, transform_indices = @transform_2, window_bounds = array<i64: 384, 384>}, {pipeline_mode = #tpu.pipeline_mode<synchronous>, transform_indices = @transform_3, window_bounds = array<i64: 1, 384>}, {transform_indices = @transform_4, window_bounds = array<i64: 2, 8, 384>}]} {
    %c0 = arith.constant 0 : index
    %c0_0 = arith.constant 0 : index
    %c0_1 = arith.constant 0 : index
    %0 = vector.load %arg1[%c0, %c0_0, %c0_1] : memref<2x8x384xf32, #tpu.memory_space<vmem>>, vector<2x8x384xf32>
    %1 = vector.shape_cast %0 : vector<2x8x384xf32> to vector<16x384xf32>
    %2 = arith.truncf %1 : vector<16x384xf32> to vector<16x384xbf16>
    %c0_2 = arith.constant 0 : index
    %c0_3 = arith.constant 0 : index
    %3 = vector.load %arg2[%c0_2, %c0_3] : memref<384x1152xbf16, #tpu.memory_space<vmem>>, vector<384x1152xbf16>
    %cst = arith.constant dense<0.000000e+00> : vector<16x1152xf32>
    %4 = tpu.matmul %2, %3, %cst {dimension_numbers = #tpu.dot_dimension_numbers<[1], [0], [0], [1], [0, 0, 1, 1], [], []>} : vector<16x384xbf16>, vector<384x1152xbf16>, vector<16x1152xf32> -> vector<16x1152xf32>
    %5 = arith.truncf %4 : vector<16x1152xf32> to vector<16x1152xbf16>
    %6 = tpu.iota {dimensions = array<i32: 0>} : vector<8x1xi32>
    %7 = tpu.iota {dimensions = array<i32: 1>} : vector<1x8xi32>
    %8 = vector.broadcast %7 : vector<1x8xi32> to vector<8x8xi32>
    %9 = vector.broadcast %6 : vector<8x1xi32> to vector<8x8xi32>
    %10 = arith.cmpi sle, %8, %9 : vector<8x8xi32>
    %11 = vector.extract_strided_slice %5 {offsets = [0, 0], sizes = [8, 64], strides = [1, 1]} : vector<16x1152xbf16> to vector<8x64xbf16>
    %12 = vector.extract_strided_slice %5 {offsets = [0, 384], sizes = [8, 64], strides = [1, 1]} : vector<16x1152xbf16> to vector<8x64xbf16>
    %13 = vector.extract_strided_slice %5 {offsets = [0, 768], sizes = [8, 64], strides = [1, 1]} : vector<16x1152xbf16> to vector<8x64xbf16>
    %cst_4 = arith.constant dense<0.000000e+00> : vector<8x8xf32>
    %14 = tpu.matmul %11, %12, %cst_4 {dimension_numbers = #tpu.dot_dimension_numbers<[1], [1], [0], [0], [0, 0, 1, 0], [], []>} : vector<8x64xbf16>, vector<8x64xbf16>, vector<8x8xf32> -> vector<8x8xf32>
    %cst_5 = arith.constant 0xFF800000 : f32
    %15 = vector.broadcast %cst_5 : f32 to vector<8x8xf32>
    %16 = arith.select %10, %14, %15 : vector<8x8xi1>, vector<8x8xf32>
    %cst_6 = arith.constant dense<0xFF800000> : vector<8xf32>
    %17 = vector.multi_reduction <maximumf>, %16, %cst_6 [1] : vector<8x8xf32> to vector<8xf32>
    %18 = vector.shape_cast %17 : vector<8xf32> to vector<8x1xf32>
    %19 = vector.broadcast %18 : vector<8x1xf32> to vector<8x8xf32>
    %20 = arith.subf %16, %19 : vector<8x8xf32>
    %21 = math.exp %20 : vector<8x8xf32>
    %cst_7 = arith.constant dense<0.000000e+00> : vector<8xf32>
    %22 = vector.multi_reduction <add>, %21, %cst_7 [1] : vector<8x8xf32> to vector<8xf32>
    %23 = vector.shape_cast %22 : vector<8xf32> to vector<8x1xf32>
    %24 = tpu.reciprocal %23 {approx = true} : vector<8x1xf32> -> vector<8x1xf32>
    %25 = vector.broadcast %24 : vector<8x1xf32> to vector<8x8xf32>
    %26 = arith.mulf %21, %25 : vector<8x8xf32>
    %27 = arith.truncf %26 : vector<8x8xf32> to vector<8x8xbf16>
    %cst_8 = arith.constant dense<0.000000e+00> : vector<8x64xf32>
    %28 = tpu.matmul %27, %13, %cst_8 {dimension_numbers = #tpu.dot_dimension_numbers<[1], [0], [0], [1], [0, 0, 1, 1], [], []>} : vector<8x8xbf16>, vector<8x64xbf16>, vector<8x64xf32> -> vector<8x64xf32>
    %c0_9 = arith.constant 0 : index
    %c0_10 = arith.constant 0 : index
    %c0_11 = arith.constant 0 : index
    %29 = vector.load %arg6[%c0_9, %c0_10, %c0_11] : memref<2x8x384xf32, #tpu.memory_space<vmem>>, vector<1x8x64xf32>
    %30 = vector.shape_cast %29 : vector<1x8x64xf32> to vector<8x64xf32>
    %31 = vector.shape_cast %28 : vector<8x64xf32> to vector<1x8x64xf32>
    tpu.vector_store %arg6[%c0_9, %c0_10, %c0_11], %31 {strides = array<i32>} : memref<2x8x384xf32, #tpu.memory_space<vmem>>, vector<1x8x64xf32>,
    %32 = vector.extract_strided_slice %5 {offsets = [0, 64], sizes = [8, 64], strides = [1, 1]} : vector<16x1152xbf16> to vector<8x64xbf16>
    %33 = vector.extract_strided_slice %5 {offsets = [0, 448], sizes = [8, 64], strides = [1, 1]} : vector<16x1152xbf16> to vector<8x64xbf16>
    %34 = vector.extract_strided_slice %5 {offsets = [0, 832], sizes = [8, 64], strides = [1, 1]} : vector<16x1152xbf16> to vector<8x64xbf16>
    %cst_12 = arith.constant dense<0.000000e+00> : vector<8x8xf32>
    %35 = tpu.matmul %32, %33, %cst_12 {dimension_numbers = #tpu.dot_dimension_numbers<[1], [1], [0], [0], [0, 0, 1, 0], [], []>} : vector<8x64xbf16>, vector<8x64xbf16>, vector<8x8xf32> -> vector<8x8xf32>
    %cst_13 = arith.constant 0xFF800000 : f32
    %36 = vector.broadcast %cst_13 : f32 to vector<8x8xf32>
    %37 = arith.select %10, %35, %36 : vector<8x8xi1>, vector<8x8xf32>
    %cst_14 = arith.constant dense<0xFF800000> : vector<8xf32>
    %38 = vector.multi_reduction <maximumf>, %37, %cst_14 [1] : vector<8x8xf32> to vector<8xf32>
    %39 = vector.shape_cast %38 : vector<8xf32> to vector<8x1xf32>
    %40 = vector.broadcast %39 : vector<8x1xf32> to vector<8x8xf32>
    %41 = arith.subf %37, %40 : vector<8x8xf32>
    %42 = math.exp %41 : vector<8x8xf32>
    %cst_15 = arith.constant dense<0.000000e+00> : vector<8xf32>
    %43 = vector.multi_reduction <add>, %42, %cst_15 [1] : vector<8x8xf32> to vector<8xf32>
    %44 = vector.shape_cast %43 : vector<8xf32> to vector<8x1xf32>
    %45 = tpu.reciprocal %44 {approx = true} : vector<8x1xf32> -> vector<8x1xf32>
    %46 = vector.broadcast %45 : vector<8x1xf32> to vector<8x8xf32>
    %47 = arith.mulf %42, %46 : vector<8x8xf32>
    %48 = arith.truncf %47 : vector<8x8xf32> to vector<8x8xbf16>
    %cst_16 = arith.constant dense<0.000000e+00> : vector<8x64xf32>
    %49 = tpu.matmul %48, %34, %cst_16 {dimension_numbers = #tpu.dot_dimension_numbers<[1], [0], [0], [1], [0, 0, 1, 1], [], []>} : vector<8x8xbf16>, vector<8x64xbf16>, vector<8x64xf32> -> vector<8x64xf32>
    %c0_17 = arith.constant 0 : index
    %c0_18 = arith.constant 0 : index
    %c64 = arith.constant 64 : index
    %50 = vector.load %arg6[%c0_17, %c0_18, %c64] : memref<2x8x384xf32, #tpu.memory_space<vmem>>, vector<1x8x64xf32>
    %51 = vector.shape_cast %50 : vector<1x8x64xf32> to vector<8x64xf32>
    %52 = vector.shape_cast %49 : vector<8x64xf32> to vector<1x8x64xf32>
    tpu.vector_store %arg6[%c0_17, %c0_18, %c64], %52 {strides = array<i32>} : memref<2x8x384xf32, #tpu.memory_space<vmem>>, vector<1x8x64xf32>,
    %53 = vector.extract_strided_slice %5 {offsets = [0, 128], sizes = [8, 64], strides = [1, 1]} : vector<16x1152xbf16> to vector<8x64xbf16>
    %54 = vector.extract_strided_slice %5 {offsets = [0, 512], sizes = [8, 64], strides = [1, 1]} : vector<16x1152xbf16> to vector<8x64xbf16>
    %55 = vector.extract_strided_slice %5 {offsets = [0, 896], sizes = [8, 64], strides = [1, 1]} : vector<16x1152xbf16> to vector<8x64xbf16>
    %cst_19 = arith.constant dense<0.000000e+00> : vector<8x8xf32>
    %56 = tpu.matmul %53, %54, %cst_19 {dimension_numbers = #tpu.dot_dimension_numbers<[1], [1], [0], [0], [0, 0, 1, 0], [], []>} : vector<8x64xbf16>, vector<8x64xbf16>, vector<8x8xf32> -> vector<8x8xf32>
    %cst_20 = arith.constant 0xFF800000 : f32
    %57 = vector.broadcast %cst_20 : f32 to vector<8x8xf32>
    %58 = arith.select %10, %56, %57 : vector<8x8xi1>, vector<8x8xf32>
    %cst_21 = arith.constant dense<0xFF800000> : vector<8xf32>
    %59 = vector.multi_reduction <maximumf>, %58, %cst_21 [1] : vector<8x8xf32> to vector<8xf32>
    %60 = vector.shape_cast %59 : vector<8xf32> to vector<8x1xf32>
    %61 = vector.broadcast %60 : vector<8x1xf32> to vector<8x8xf32>
    %62 = arith.subf %58, %61 : vector<8x8xf32>
    %63 = math.exp %62 : vector<8x8xf32>
    %cst_22 = arith.constant dense<0.000000e+00> : vector<8xf32>
    %64 = vector.multi_reduction <add>, %63, %cst_22 [1] : vector<8x8xf32> to vector<8xf32>
    %65 = vector.shape_cast %64 : vector<8xf32> to vector<8x1xf32>
    %66 = tpu.reciprocal %65 {approx = true} : vector<8x1xf32> -> vector<8x1xf32>
    %67 = vector.broadcast %66 : vector<8x1xf32> to vector<8x8xf32>
    %68 = arith.mulf %63, %67 : vector<8x8xf32>
    %69 = arith.truncf %68 : vector<8x8xf32> to vector<8x8xbf16>
    %cst_23 = arith.constant dense<0.000000e+00> : vector<8x64xf32>
    %70 = tpu.matmul %69, %55, %cst_23 {dimension_numbers = #tpu.dot_dimension_numbers<[1], [0], [0], [1], [0, 0, 1, 1], [], []>} : vector<8x8xbf16>, vector<8x64xbf16>, vector<8x64xf32> -> vector<8x64xf32>
    %c0_24 = arith.constant 0 : index
    %c0_25 = arith.constant 0 : index
    %c128 = arith.constant 128 : index
    %71 = vector.load %arg6[%c0_24, %c0_25, %c128] : memref<2x8x384xf32, #tpu.memory_space<vmem>>, vector<1x8x64xf32>
    %72 = vector.shape_cast %71 : vector<1x8x64xf32> to vector<8x64xf32>
    %73 = vector.shape_cast %70 : vector<8x64xf32> to vector<1x8x64xf32>
    tpu.vector_store %arg6[%c0_24, %c0_25, %c128], %73 {strides = array<i32>} : memref<2x8x384xf32, #tpu.memory_space<vmem>>, vector<1x8x64xf32>,
    %74 = vector.extract_strided_slice %5 {offsets = [0, 192], sizes = [8, 64], strides = [1, 1]} : vector<16x1152xbf16> to vector<8x64xbf16>
    %75 = vector.extract_strided_slice %5 {offsets = [0, 576], sizes = [8, 64], strides = [1, 1]} : vector<16x1152xbf16> to vector<8x64xbf16>
    %76 = vector.extract_strided_slice %5 {offsets = [0, 960], sizes = [8, 64], strides = [1, 1]} : vector<16x1152xbf16> to vector<8x64xbf16>
    %cst_26 = arith.constant dense<0.000000e+00> : vector<8x8xf32>
    %77 = tpu.matmul %74, %75, %cst_26 {dimension_numbers = #tpu.dot_dimension_numbers<[1], [1], [0], [0], [0, 0, 1, 0], [], []>} : vector<8x64xbf16>, vector<8x64xbf16>, vector<8x8xf32> -> vector<8x8xf32>
    %cst_27 = arith.constant 0xFF800000 : f32
    %78 = vector.broadcast %cst_27 : f32 to vector<8x8xf32>
    %79 = arith.select %10, %77, %78 : vector<8x8xi1>, vector<8x8xf32>
    %cst_28 = arith.constant dense<0xFF800000> : vector<8xf32>
    %80 = vector.multi_reduction <maximumf>, %79, %cst_28 [1] : vector<8x8xf32> to vector<8xf32>
    %81 = vector.shape_cast %80 : vector<8xf32> to vector<8x1xf32>
    %82 = vector.broadcast %81 : vector<8x1xf32> to vector<8x8xf32>
    %83 = arith.subf %79, %82 : vector<8x8xf32>
    %84 = math.exp %83 : vector<8x8xf32>
    %cst_29 = arith.constant dense<0.000000e+00> : vector<8xf32>
    %85 = vector.multi_reduction <add>, %84, %cst_29 [1] : vector<8x8xf32> to vector<8xf32>
    %86 = vector.shape_cast %85 : vector<8xf32> to vector<8x1xf32>
    %87 = tpu.reciprocal %86 {approx = true} : vector<8x1xf32> -> vector<8x1xf32>
    %88 = vector.broadcast %87 : vector<8x1xf32> to vector<8x8xf32>
    %89 = arith.mulf %84, %88 : vector<8x8xf32>
    %90 = arith.truncf %89 : vector<8x8xf32> to vector<8x8xbf16>
    %cst_30 = arith.constant dense<0.000000e+00> : vector<8x64xf32>
    %91 = tpu.matmul %90, %76, %cst_30 {dimension_numbers = #tpu.dot_dimension_numbers<[1], [0], [0], [1], [0, 0, 1, 1], [], []>} : vector<8x8xbf16>, vector<8x64xbf16>, vector<8x64xf32> -> vector<8x64xf32>
    %c0_31 = arith.constant 0 : index
    %c0_32 = arith.constant 0 : index
    %c192 = arith.constant 192 : index
    %92 = vector.load %arg6[%c0_31, %c0_32, %c192] : memref<2x8x384xf32, #tpu.memory_space<vmem>>, vector<1x8x64xf32>
    %93 = vector.shape_cast %92 : vector<1x8x64xf32> to vector<8x64xf32>
    %94 = vector.shape_cast %91 : vector<8x64xf32> to vector<1x8x64xf32>
    tpu.vector_store %arg6[%c0_31, %c0_32, %c192], %94 {strides = array<i32>} : memref<2x8x384xf32, #tpu.memory_space<vmem>>, vector<1x8x64xf32>,
    %95 = vector.extract_strided_slice %5 {offsets = [0, 256], sizes = [8, 64], strides = [1, 1]} : vector<16x1152xbf16> to vector<8x64xbf16>
    %96 = vector.extract_strided_slice %5 {offsets = [0, 640], sizes = [8, 64], strides = [1, 1]} : vector<16x1152xbf16> to vector<8x64xbf16>
    %97 = vector.extract_strided_slice %5 {offsets = [0, 1024], sizes = [8, 64], strides = [1, 1]} : vector<16x1152xbf16> to vector<8x64xbf16>
    %cst_33 = arith.constant dense<0.000000e+00> : vector<8x8xf32>
    %98 = tpu.matmul %95, %96, %cst_33 {dimension_numbers = #tpu.dot_dimension_numbers<[1], [1], [0], [0], [0, 0, 1, 0], [], []>} : vector<8x64xbf16>, vector<8x64xbf16>, vector<8x8xf32> -> vector<8x8xf32>
    %cst_34 = arith.constant 0xFF800000 : f32
    %99 = vector.broadcast %cst_34 : f32 to vector<8x8xf32>
    %100 = arith.select %10, %98, %99 : vector<8x8xi1>, vector<8x8xf32>
    %cst_35 = arith.constant dense<0xFF800000> : vector<8xf32>
    %101 = vector.multi_reduction <maximumf>, %100, %cst_35 [1] : vector<8x8xf32> to vector<8xf32>
    %102 = vector.shape_cast %101 : vector<8xf32> to vector<8x1xf32>
    %103 = vector.broadcast %102 : vector<8x1xf32> to vector<8x8xf32>
    %104 = arith.subf %100, %103 : vector<8x8xf32>
    %105 = math.exp %104 : vector<8x8xf32>
    %cst_36 = arith.constant dense<0.000000e+00> : vector<8xf32>
    %106 = vector.multi_reduction <add>, %105, %cst_36 [1] : vector<8x8xf32> to vector<8xf32>
    %107 = vector.shape_cast %106 : vector<8xf32> to vector<8x1xf32>
    %108 = tpu.reciprocal %107 {approx = true} : vector<8x1xf32> -> vector<8x1xf32>
    %109 = vector.broadcast %108 : vector<8x1xf32> to vector<8x8xf32>
    %110 = arith.mulf %105, %109 : vector<8x8xf32>
    %111 = arith.truncf %110 : vector<8x8xf32> to vector<8x8xbf16>
    %cst_37 = arith.constant dense<0.000000e+00> : vector<8x64xf32>
    %112 = tpu.matmul %111, %97, %cst_37 {dimension_numbers = #tpu.dot_dimension_numbers<[1], [0], [0], [1], [0, 0, 1, 1], [], []>} : vector<8x8xbf16>, vector<8x64xbf16>, vector<8x64xf32> -> vector<8x64xf32>
    %c0_38 = arith.constant 0 : index
    %c0_39 = arith.constant 0 : index
    %c256 = arith.constant 256 : index
    %113 = vector.load %arg6[%c0_38, %c0_39, %c256] : memref<2x8x384xf32, #tpu.memory_space<vmem>>, vector<1x8x64xf32>
    %114 = vector.shape_cast %113 : vector<1x8x64xf32> to vector<8x64xf32>
    %115 = vector.shape_cast %112 : vector<8x64xf32> to vector<1x8x64xf32>
    tpu.vector_store %arg6[%c0_38, %c0_39, %c256], %115 {strides = array<i32>} : memref<2x8x384xf32, #tpu.memory_space<vmem>>, vector<1x8x64xf32>,
    %116 = vector.extract_strided_slice %5 {offsets = [0, 320], sizes = [8, 64], strides = [1, 1]} : vector<16x1152xbf16> to vector<8x64xbf16>
    %117 = vector.extract_strided_slice %5 {offsets = [0, 704], sizes = [8, 64], strides = [1, 1]} : vector<16x1152xbf16> to vector<8x64xbf16>
    %118 = vector.extract_strided_slice %5 {offsets = [0, 1088], sizes = [8, 64], strides = [1, 1]} : vector<16x1152xbf16> to vector<8x64xbf16>
    %cst_40 = arith.constant dense<0.000000e+00> : vector<8x8xf32>
    %119 = tpu.matmul %116, %117, %cst_40 {dimension_numbers = #tpu.dot_dimension_numbers<[1], [1], [0], [0], [0, 0, 1, 0], [], []>} : vector<8x64xbf16>, vector<8x64xbf16>, vector<8x8xf32> -> vector<8x8xf32>
    %cst_41 = arith.constant 0xFF800000 : f32
    %120 = vector.broadcast %cst_41 : f32 to vector<8x8xf32>
    %121 = arith.select %10, %119, %120 : vector<8x8xi1>, vector<8x8xf32>
    %cst_42 = arith.constant dense<0xFF800000> : vector<8xf32>
    %122 = vector.multi_reduction <maximumf>, %121, %cst_42 [1] : vector<8x8xf32> to vector<8xf32>
    %123 = vector.shape_cast %122 : vector<8xf32> to vector<8x1xf32>
    %124 = vector.broadcast %123 : vector<8x1xf32> to vector<8x8xf32>
    %125 = arith.subf %121, %124 : vector<8x8xf32>
    %126 = math.exp %125 : vector<8x8xf32>
    %cst_43 = arith.constant dense<0.000000e+00> : vector<8xf32>
    %127 = vector.multi_reduction <add>, %126, %cst_43 [1] : vector<8x8xf32> to vector<8xf32>
    %128 = vector.shape_cast %127 : vector<8xf32> to vector<8x1xf32>
    %129 = tpu.reciprocal %128 {approx = true} : vector<8x1xf32> -> vector<8x1xf32>
    %130 = vector.broadcast %129 : vector<8x1xf32> to vector<8x8xf32>
    %131 = arith.mulf %126, %130 : vector<8x8xf32>
    %132 = arith.truncf %131 : vector<8x8xf32> to vector<8x8xbf16>
    %cst_44 = arith.constant dense<0.000000e+00> : vector<8x64xf32>
    %133 = tpu.matmul %132, %118, %cst_44 {dimension_numbers = #tpu.dot_dimension_numbers<[1], [0], [0], [1], [0, 0, 1, 1], [], []>} : vector<8x8xbf16>, vector<8x64xbf16>, vector<8x64xf32> -> vector<8x64xf32>
    %c0_45 = arith.constant 0 : index
    %c0_46 = arith.constant 0 : index
    %c320 = arith.constant 320 : index
    %134 = vector.load %arg6[%c0_45, %c0_46, %c320] : memref<2x8x384xf32, #tpu.memory_space<vmem>>, vector<1x8x64xf32>
    %135 = vector.shape_cast %134 : vector<1x8x64xf32> to vector<8x64xf32>
    %136 = vector.shape_cast %133 : vector<8x64xf32> to vector<1x8x64xf32>
    tpu.vector_store %arg6[%c0_45, %c0_46, %c320], %136 {strides = array<i32>} : memref<2x8x384xf32, #tpu.memory_space<vmem>>, vector<1x8x64xf32>,
    %137 = vector.extract_strided_slice %5 {offsets = [8, 0], sizes = [8, 64], strides = [1, 1]} : vector<16x1152xbf16> to vector<8x64xbf16>
    %138 = vector.extract_strided_slice %5 {offsets = [8, 384], sizes = [8, 64], strides = [1, 1]} : vector<16x1152xbf16> to vector<8x64xbf16>
    %139 = vector.extract_strided_slice %5 {offsets = [8, 768], sizes = [8, 64], strides = [1, 1]} : vector<16x1152xbf16> to vector<8x64xbf16>
    %cst_47 = arith.constant dense<0.000000e+00> : vector<8x8xf32>
    %140 = tpu.matmul %137, %138, %cst_47 {dimension_numbers = #tpu.dot_dimension_numbers<[1], [1], [0], [0], [0, 0, 1, 0], [], []>} : vector<8x64xbf16>, vector<8x64xbf16>, vector<8x8xf32> -> vector<8x8xf32>
    %cst_48 = arith.constant 0xFF800000 : f32
    %141 = vector.broadcast %cst_48 : f32 to vector<8x8xf32>
    %142 = arith.select %10, %140, %141 : vector<8x8xi1>, vector<8x8xf32>
    %cst_49 = arith.constant dense<0xFF800000> : vector<8xf32>
    %143 = vector.multi_reduction <maximumf>, %142, %cst_49 [1] : vector<8x8xf32> to vector<8xf32>
    %144 = vector.shape_cast %143 : vector<8xf32> to vector<8x1xf32>
    %145 = vector.broadcast %144 : vector<8x1xf32> to vector<8x8xf32>
    %146 = arith.subf %142, %145 : vector<8x8xf32>
    %147 = math.exp %146 : vector<8x8xf32>
    %cst_50 = arith.constant dense<0.000000e+00> : vector<8xf32>
    %148 = vector.multi_reduction <add>, %147, %cst_50 [1] : vector<8x8xf32> to vector<8xf32>
    %149 = vector.shape_cast %148 : vector<8xf32> to vector<8x1xf32>
    %150 = tpu.reciprocal %149 {approx = true} : vector<8x1xf32> -> vector<8x1xf32>
    %151 = vector.broadcast %150 : vector<8x1xf32> to vector<8x8xf32>
    %152 = arith.mulf %147, %151 : vector<8x8xf32>
    %153 = arith.truncf %152 : vector<8x8xf32> to vector<8x8xbf16>
    %cst_51 = arith.constant dense<0.000000e+00> : vector<8x64xf32>
    %154 = tpu.matmul %153, %139, %cst_51 {dimension_numbers = #tpu.dot_dimension_numbers<[1], [0], [0], [1], [0, 0, 1, 1], [], []>} : vector<8x8xbf16>, vector<8x64xbf16>, vector<8x64xf32> -> vector<8x64xf32>
    %c1 = arith.constant 1 : index
    %c0_52 = arith.constant 0 : index
    %c0_53 = arith.constant 0 : index
    %155 = vector.load %arg6[%c1, %c0_52, %c0_53] : memref<2x8x384xf32, #tpu.memory_space<vmem>>, vector<1x8x64xf32>
    %156 = vector.shape_cast %155 : vector<1x8x64xf32> to vector<8x64xf32>
    %157 = vector.shape_cast %154 : vector<8x64xf32> to vector<1x8x64xf32>
    tpu.vector_store %arg6[%c1, %c0_52, %c0_53], %157 {strides = array<i32>} : memref<2x8x384xf32, #tpu.memory_space<vmem>>, vector<1x8x64xf32>,
    %158 = vector.extract_strided_slice %5 {offsets = [8, 64], sizes = [8, 64], strides = [1, 1]} : vector<16x1152xbf16> to vector<8x64xbf16>
    %159 = vector.extract_strided_slice %5 {offsets = [8, 448], sizes = [8, 64], strides = [1, 1]} : vector<16x1152xbf16> to vector<8x64xbf16>
    %160 = vector.extract_strided_slice %5 {offsets = [8, 832], sizes = [8, 64], strides = [1, 1]} : vector<16x1152xbf16> to vector<8x64xbf16>
    %cst_54 = arith.constant dense<0.000000e+00> : vector<8x8xf32>
    %161 = tpu.matmul %158, %159, %cst_54 {dimension_numbers = #tpu.dot_dimension_numbers<[1], [1], [0], [0], [0, 0, 1, 0], [], []>} : vector<8x64xbf16>, vector<8x64xbf16>, vector<8x8xf32> -> vector<8x8xf32>
    %cst_55 = arith.constant 0xFF800000 : f32
    %162 = vector.broadcast %cst_55 : f32 to vector<8x8xf32>
    %163 = arith.select %10, %161, %162 : vector<8x8xi1>, vector<8x8xf32>
    %cst_56 = arith.constant dense<0xFF800000> : vector<8xf32>
    %164 = vector.multi_reduction <maximumf>, %163, %cst_56 [1] : vector<8x8xf32> to vector<8xf32>
    %165 = vector.shape_cast %164 : vector<8xf32> to vector<8x1xf32>
    %166 = vector.broadcast %165 : vector<8x1xf32> to vector<8x8xf32>
    %167 = arith.subf %163, %166 : vector<8x8xf32>
    %168 = math.exp %167 : vector<8x8xf32>
    %cst_57 = arith.constant dense<0.000000e+00> : vector<8xf32>
    %169 = vector.multi_reduction <add>, %168, %cst_57 [1] : vector<8x8xf32> to vector<8xf32>
    %170 = vector.shape_cast %169 : vector<8xf32> to vector<8x1xf32>
    %171 = tpu.reciprocal %170 {approx = true} : vector<8x1xf32> -> vector<8x1xf32>
    %172 = vector.broadcast %171 : vector<8x1xf32> to vector<8x8xf32>
    %173 = arith.mulf %168, %172 : vector<8x8xf32>
    %174 = arith.truncf %173 : vector<8x8xf32> to vector<8x8xbf16>
    %cst_58 = arith.constant dense<0.000000e+00> : vector<8x64xf32>
    %175 = tpu.matmul %174, %160, %cst_58 {dimension_numbers = #tpu.dot_dimension_numbers<[1], [0], [0], [1], [0, 0, 1, 1], [], []>} : vector<8x8xbf16>, vector<8x64xbf16>, vector<8x64xf32> -> vector<8x64xf32>
    %c1_59 = arith.constant 1 : index
    %c0_60 = arith.constant 0 : index
    %c64_61 = arith.constant 64 : index
    %176 = vector.load %arg6[%c1_59, %c0_60, %c64_61] : memref<2x8x384xf32, #tpu.memory_space<vmem>>, vector<1x8x64xf32>
    %177 = vector.shape_cast %176 : vector<1x8x64xf32> to vector<8x64xf32>
    %178 = vector.shape_cast %175 : vector<8x64xf32> to vector<1x8x64xf32>
    tpu.vector_store %arg6[%c1_59, %c0_60, %c64_61], %178 {strides = array<i32>} : memref<2x8x384xf32, #tpu.memory_space<vmem>>, vector<1x8x64xf32>,
    %179 = vector.extract_strided_slice %5 {offsets = [8, 128], sizes = [8, 64], strides = [1, 1]} : vector<16x1152xbf16> to vector<8x64xbf16>
    %180 = vector.extract_strided_slice %5 {offsets = [8, 512], sizes = [8, 64], strides = [1, 1]} : vector<16x1152xbf16> to vector<8x64xbf16>
    %181 = vector.extract_strided_slice %5 {offsets = [8, 896], sizes = [8, 64], strides = [1, 1]} : vector<16x1152xbf16> to vector<8x64xbf16>
    %cst_62 = arith.constant dense<0.000000e+00> : vector<8x8xf32>
    %182 = tpu.matmul %179, %180, %cst_62 {dimension_numbers = #tpu.dot_dimension_numbers<[1], [1], [0], [0], [0, 0, 1, 0], [], []>} : vector<8x64xbf16>, vector<8x64xbf16>, vector<8x8xf32> -> vector<8x8xf32>
    %cst_63 = arith.constant 0xFF800000 : f32
    %183 = vector.broadcast %cst_63 : f32 to vector<8x8xf32>
    %184 = arith.select %10, %182, %183 : vector<8x8xi1>, vector<8x8xf32>
    %cst_64 = arith.constant dense<0xFF800000> : vector<8xf32>
    %185 = vector.multi_reduction <maximumf>, %184, %cst_64 [1] : vector<8x8xf32> to vector<8xf32>
    %186 = vector.shape_cast %185 : vector<8xf32> to vector<8x1xf32>
    %187 = vector.broadcast %186 : vector<8x1xf32> to vector<8x8xf32>
    %188 = arith.subf %184, %187 : vector<8x8xf32>
    %189 = math.exp %188 : vector<8x8xf32>
    %cst_65 = arith.constant dense<0.000000e+00> : vector<8xf32>
    %190 = vector.multi_reduction <add>, %189, %cst_65 [1] : vector<8x8xf32> to vector<8xf32>
    %191 = vector.shape_cast %190 : vector<8xf32> to vector<8x1xf32>
    %192 = tpu.reciprocal %191 {approx = true} : vector<8x1xf32> -> vector<8x1xf32>
    %193 = vector.broadcast %192 : vector<8x1xf32> to vector<8x8xf32>
    %194 = arith.mulf %189, %193 : vector<8x8xf32>
    %195 = arith.truncf %194 : vector<8x8xf32> to vector<8x8xbf16>
    %cst_66 = arith.constant dense<0.000000e+00> : vector<8x64xf32>
    %196 = tpu.matmul %195, %181, %cst_66 {dimension_numbers = #tpu.dot_dimension_numbers<[1], [0], [0], [1], [0, 0, 1, 1], [], []>} : vector<8x8xbf16>, vector<8x64xbf16>, vector<8x64xf32> -> vector<8x64xf32>
    %c1_67 = arith.constant 1 : index
    %c0_68 = arith.constant 0 : index
    %c128_69 = arith.constant 128 : index
    %197 = vector.load %arg6[%c1_67, %c0_68, %c128_69] : memref<2x8x384xf32, #tpu.memory_space<vmem>>, vector<1x8x64xf32>
    %198 = vector.shape_cast %197 : vector<1x8x64xf32> to vector<8x64xf32>
    %199 = vector.shape_cast %196 : vector<8x64xf32> to vector<1x8x64xf32>
    tpu.vector_store %arg6[%c1_67, %c0_68, %c128_69], %199 {strides = array<i32>} : memref<2x8x384xf32, #tpu.memory_space<vmem>>, vector<1x8x64xf32>,
    %200 = vector.extract_strided_slice %5 {offsets = [8, 192], sizes = [8, 64], strides = [1, 1]} : vector<16x1152xbf16> to vector<8x64xbf16>
    %201 = vector.extract_strided_slice %5 {offsets = [8, 576], sizes = [8, 64], strides = [1, 1]} : vector<16x1152xbf16> to vector<8x64xbf16>
    %202 = vector.extract_strided_slice %5 {offsets = [8, 960], sizes = [8, 64], strides = [1, 1]} : vector<16x1152xbf16> to vector<8x64xbf16>
    %cst_70 = arith.constant dense<0.000000e+00> : vector<8x8xf32>
    %203 = tpu.matmul %200, %201, %cst_70 {dimension_numbers = #tpu.dot_dimension_numbers<[1], [1], [0], [0], [0, 0, 1, 0], [], []>} : vector<8x64xbf16>, vector<8x64xbf16>, vector<8x8xf32> -> vector<8x8xf32>
    %cst_71 = arith.constant 0xFF800000 : f32
    %204 = vector.broadcast %cst_71 : f32 to vector<8x8xf32>
    %205 = arith.select %10, %203, %204 : vector<8x8xi1>, vector<8x8xf32>
    %cst_72 = arith.constant dense<0xFF800000> : vector<8xf32>
    %206 = vector.multi_reduction <maximumf>, %205, %cst_72 [1] : vector<8x8xf32> to vector<8xf32>
    %207 = vector.shape_cast %206 : vector<8xf32> to vector<8x1xf32>
    %208 = vector.broadcast %207 : vector<8x1xf32> to vector<8x8xf32>
    %209 = arith.subf %205, %208 : vector<8x8xf32>
    %210 = math.exp %209 : vector<8x8xf32>
    %cst_73 = arith.constant dense<0.000000e+00> : vector<8xf32>
    %211 = vector.multi_reduction <add>, %210, %cst_73 [1] : vector<8x8xf32> to vector<8xf32>
    %212 = vector.shape_cast %211 : vector<8xf32> to vector<8x1xf32>
    %213 = tpu.reciprocal %212 {approx = true} : vector<8x1xf32> -> vector<8x1xf32>
    %214 = vector.broadcast %213 : vector<8x1xf32> to vector<8x8xf32>
    %215 = arith.mulf %210, %214 : vector<8x8xf32>
    %216 = arith.truncf %215 : vector<8x8xf32> to vector<8x8xbf16>
    %cst_74 = arith.constant dense<0.000000e+00> : vector<8x64xf32>
    %217 = tpu.matmul %216, %202, %cst_74 {dimension_numbers = #tpu.dot_dimension_numbers<[1], [0], [0], [1], [0, 0, 1, 1], [], []>} : vector<8x8xbf16>, vector<8x64xbf16>, vector<8x64xf32> -> vector<8x64xf32>
    %c1_75 = arith.constant 1 : index
    %c0_76 = arith.constant 0 : index
    %c192_77 = arith.constant 192 : index
    %218 = vector.load %arg6[%c1_75, %c0_76, %c192_77] : memref<2x8x384xf32, #tpu.memory_space<vmem>>, vector<1x8x64xf32>
    %219 = vector.shape_cast %218 : vector<1x8x64xf32> to vector<8x64xf32>
    %220 = vector.shape_cast %217 : vector<8x64xf32> to vector<1x8x64xf32>
    tpu.vector_store %arg6[%c1_75, %c0_76, %c192_77], %220 {strides = array<i32>} : memref<2x8x384xf32, #tpu.memory_space<vmem>>, vector<1x8x64xf32>,
    %221 = vector.extract_strided_slice %5 {offsets = [8, 256], sizes = [8, 64], strides = [1, 1]} : vector<16x1152xbf16> to vector<8x64xbf16>
    %222 = vector.extract_strided_slice %5 {offsets = [8, 640], sizes = [8, 64], strides = [1, 1]} : vector<16x1152xbf16> to vector<8x64xbf16>
    %223 = vector.extract_strided_slice %5 {offsets = [8, 1024], sizes = [8, 64], strides = [1, 1]} : vector<16x1152xbf16> to vector<8x64xbf16>
    %cst_78 = arith.constant dense<0.000000e+00> : vector<8x8xf32>
    %224 = tpu.matmul %221, %222, %cst_78 {dimension_numbers = #tpu.dot_dimension_numbers<[1], [1], [0], [0], [0, 0, 1, 0], [], []>} : vector<8x64xbf16>, vector<8x64xbf16>, vector<8x8xf32> -> vector<8x8xf32>
    %cst_79 = arith.constant 0xFF800000 : f32
    %225 = vector.broadcast %cst_79 : f32 to vector<8x8xf32>
    %226 = arith.select %10, %224, %225 : vector<8x8xi1>, vector<8x8xf32>
    %cst_80 = arith.constant dense<0xFF800000> : vector<8xf32>
    %227 = vector.multi_reduction <maximumf>, %226, %cst_80 [1] : vector<8x8xf32> to vector<8xf32>
    %228 = vector.shape_cast %227 : vector<8xf32> to vector<8x1xf32>
    %229 = vector.broadcast %228 : vector<8x1xf32> to vector<8x8xf32>
    %230 = arith.subf %226, %229 : vector<8x8xf32>
    %231 = math.exp %230 : vector<8x8xf32>
    %cst_81 = arith.constant dense<0.000000e+00> : vector<8xf32>
    %232 = vector.multi_reduction <add>, %231, %cst_81 [1] : vector<8x8xf32> to vector<8xf32>
    %233 = vector.shape_cast %232 : vector<8xf32> to vector<8x1xf32>
    %234 = tpu.reciprocal %233 {approx = true} : vector<8x1xf32> -> vector<8x1xf32>
    %235 = vector.broadcast %234 : vector<8x1xf32> to vector<8x8xf32>
    %236 = arith.mulf %231, %235 : vector<8x8xf32>
    %237 = arith.truncf %236 : vector<8x8xf32> to vector<8x8xbf16>
    %cst_82 = arith.constant dense<0.000000e+00> : vector<8x64xf32>
    %238 = tpu.matmul %237, %223, %cst_82 {dimension_numbers = #tpu.dot_dimension_numbers<[1], [0], [0], [1], [0, 0, 1, 1], [], []>} : vector<8x8xbf16>, vector<8x64xbf16>, vector<8x64xf32> -> vector<8x64xf32>
    %c1_83 = arith.constant 1 : index
    %c0_84 = arith.constant 0 : index
    %c256_85 = arith.constant 256 : index
    %239 = vector.load %arg6[%c1_83, %c0_84, %c256_85] : memref<2x8x384xf32, #tpu.memory_space<vmem>>, vector<1x8x64xf32>
    %240 = vector.shape_cast %239 : vector<1x8x64xf32> to vector<8x64xf32>
    %241 = vector.shape_cast %238 : vector<8x64xf32> to vector<1x8x64xf32>
    tpu.vector_store %arg6[%c1_83, %c0_84, %c256_85], %241 {strides = array<i32>} : memref<2x8x384xf32, #tpu.memory_space<vmem>>, vector<1x8x64xf32>,
    %242 = vector.extract_strided_slice %5 {offsets = [8, 320], sizes = [8, 64], strides = [1, 1]} : vector<16x1152xbf16> to vector<8x64xbf16>
    %243 = vector.extract_strided_slice %5 {offsets = [8, 704], sizes = [8, 64], strides = [1, 1]} : vector<16x1152xbf16> to vector<8x64xbf16>
    %244 = vector.extract_strided_slice %5 {offsets = [8, 1088], sizes = [8, 64], strides = [1, 1]} : vector<16x1152xbf16> to vector<8x64xbf16>
    %cst_86 = arith.constant dense<0.000000e+00> : vector<8x8xf32>
    %245 = tpu.matmul %242, %243, %cst_86 {dimension_numbers = #tpu.dot_dimension_numbers<[1], [1], [0], [0], [0, 0, 1, 0], [], []>} : vector<8x64xbf16>, vector<8x64xbf16>, vector<8x8xf32> -> vector<8x8xf32>
    %cst_87 = arith.constant 0xFF800000 : f32
    %246 = vector.broadcast %cst_87 : f32 to vector<8x8xf32>
    %247 = arith.select %10, %245, %246 : vector<8x8xi1>, vector<8x8xf32>
    %cst_88 = arith.constant dense<0xFF800000> : vector<8xf32>
    %248 = vector.multi_reduction <maximumf>, %247, %cst_88 [1] : vector<8x8xf32> to vector<8xf32>
    %249 = vector.shape_cast %248 : vector<8xf32> to vector<8x1xf32>
    %250 = vector.broadcast %249 : vector<8x1xf32> to vector<8x8xf32>
    %251 = arith.subf %247, %250 : vector<8x8xf32>
    %252 = math.exp %251 : vector<8x8xf32>
    %cst_89 = arith.constant dense<0.000000e+00> : vector<8xf32>
    %253 = vector.multi_reduction <add>, %252, %cst_89 [1] : vector<8x8xf32> to vector<8xf32>
    %254 = vector.shape_cast %253 : vector<8xf32> to vector<8x1xf32>
    %255 = tpu.reciprocal %254 {approx = true} : vector<8x1xf32> -> vector<8x1xf32>
    %256 = vector.broadcast %255 : vector<8x1xf32> to vector<8x8xf32>
    %257 = arith.mulf %252, %256 : vector<8x8xf32>
    %258 = arith.truncf %257 : vector<8x8xf32> to vector<8x8xbf16>
    %cst_90 = arith.constant dense<0.000000e+00> : vector<8x64xf32>
    %259 = tpu.matmul %258, %244, %cst_90 {dimension_numbers = #tpu.dot_dimension_numbers<[1], [0], [0], [1], [0, 0, 1, 1], [], []>} : vector<8x8xbf16>, vector<8x64xbf16>, vector<8x64xf32> -> vector<8x64xf32>
    %c1_91 = arith.constant 1 : index
    %c0_92 = arith.constant 0 : index
    %c320_93 = arith.constant 320 : index
    %260 = vector.load %arg6[%c1_91, %c0_92, %c320_93] : memref<2x8x384xf32, #tpu.memory_space<vmem>>, vector<1x8x64xf32>
    %261 = vector.shape_cast %260 : vector<1x8x64xf32> to vector<8x64xf32>
    %262 = vector.shape_cast %259 : vector<8x64xf32> to vector<1x8x64xf32>
    tpu.vector_store %arg6[%c1_91, %c0_92, %c320_93], %262 {strides = array<i32>} : memref<2x8x384xf32, #tpu.memory_space<vmem>>, vector<1x8x64xf32>,
    %c0_94 = arith.constant 0 : index
    %c0_95 = arith.constant 0 : index
    %c0_96 = arith.constant 0 : index
    %263 = vector.load %arg6[%c0_94, %c0_95, %c0_96] : memref<2x8x384xf32, #tpu.memory_space<vmem>>, vector<2x8x384xf32>
    %264 = vector.shape_cast %263 : vector<2x8x384xf32> to vector<16x384xf32>
    %265 = arith.truncf %264 : vector<16x384xf32> to vector<16x384xbf16>
    %c0_97 = arith.constant 0 : index
    %c0_98 = arith.constant 0 : index
    %266 = vector.load %arg3[%c0_97, %c0_98] : memref<384x384xbf16, #tpu.memory_space<vmem>>, vector<384x384xbf16>
    %cst_99 = arith.constant dense<0.000000e+00> : vector<16x384xf32>
    %267 = tpu.matmul %265, %266, %cst_99 {dimension_numbers = #tpu.dot_dimension_numbers<[1], [0], [0], [1], [0, 0, 1, 1], [], []>} : vector<16x384xbf16>, vector<384x384xbf16>, vector<16x384xf32> -> vector<16x384xf32>
    %c0_100 = arith.constant 0 : index
    %c0_101 = arith.constant 0 : index
    %268 = vector.load %arg4[%c0_100, %c0_101] : memref<1x384xf32, #tpu.memory_space<vmem>>, vector<1x384xf32>
    %269 = vector.broadcast %268 : vector<1x384xf32> to vector<16x384xf32>
    %270 = arith.addf %267, %269 : vector<16x384xf32>
    %271 = vector.shape_cast %270 : vector<16x384xf32> to vector<2x8x384xf32>
    %c0_102 = arith.constant 0 : index
    %c0_103 = arith.constant 0 : index
    %c0_104 = arith.constant 0 : index
    %272 = vector.load %arg5[%c0_102, %c0_103, %c0_104] : memref<2x8x384xf32, #tpu.memory_space<vmem>>, vector<2x8x384xf32>
    tpu.vector_store %arg5[%c0_102, %c0_103, %c0_104], %271 {strides = array<i32>} : memref<2x8x384xf32, #tpu.memory_space<vmem>>, vector<2x8x384xf32>,
    return
  }
  func.func @transform_0(%arg0: i32) -> (i32, i32, i32) {
    %c0_i32 = arith.constant 0 : i32
    %c0_i32_0 = arith.constant 0 : i32
    %c0_i32_1 = arith.constant 0 : i32
    return %arg0, %c0_i32, %c0_i32_0 : i32, i32, i32
  }
  func.func @transform_1(%arg0: i32) -> (i32, i32) {
    %c0_i32 = arith.constant 0 : i32
    %c0_i32_0 = arith.constant 0 : i32
    %c0_i32_1 = arith.constant 0 : i32
    return %c0_i32, %c0_i32_0 : i32, i32
  }
  func.func @transform_2(%arg0: i32) -> (i32, i32) {
    %c0_i32 = arith.constant 0 : i32
    %c0_i32_0 = arith.constant 0 : i32
    %c0_i32_1 = arith.constant 0 : i32
    return %c0_i32, %c0_i32_0 : i32, i32
  }
  func.func @transform_3(%arg0: i32) -> (i32, i32) {
    %c0_i32 = arith.constant 0 : i32
    %c0_i32_0 = arith.constant 0 : i32
    %c0_i32_1 = arith.constant 0 : i32
    return %c0_i32, %c0_i32_0 : i32, i32
  }
  func.func @transform_4(%arg0: i32) -> (i32, i32, i32) {
    %c0_i32 = arith.constant 0 : i32
    %c0_i32_0 = arith.constant 0 : i32
    %c0_i32_1 = arith.constant 0 : i32
    return %arg0, %c0_i32, %c0_i32_0 : i32, i32, i32
  }
}

</mosaic_0001>

<llo_original>
// kernel: multi_head_attention.1
$region0: #{multi_head_attention.1}
  #allocation0 [shape = 'u32[]', space=smem, size = 0x4, offset = 0x4, fixed_abs, tag = 'smem constant byte address 0x4 - core index']
  #allocation1 [shape = 'u32[72,128]{1,0:T(1,128)}', space=vmem, size = 0x9000, scoped, tag = 'internal scratch']
  #allocation2 [shape = 'f32[2,8,384]{2,1,0:T(8,128)}', space=vmem, size = 0x6000, scoped, tag = 'scratch operand']
  %s0 = inlined_call_operand.hbm [shape: f32[2,8,384], index: 0, kind: input, shape index: {}]
  %s1 = inlined_call_operand.hbm [shape: bf16[384,1152], index: 1, kind: input, shape index: {}]
  %s2 = inlined_call_operand.hbm [shape: bf16[384,384], index: 2, kind: input, shape index: {}]
  %s3 = inlined_call_operand.hbm [shape: f32[1,384], index: 3, kind: input, shape index: {}]
  %s4 = inlined_call_operand.hbm [shape: f32[2,8,384], index: 4, kind: output, shape index: {}]
  %s5 = sld [smem:[#allocation0]]
  $region42: #{multi_head_attention.1} parent=0
    _
  %s7 = ssub.s32 1, %s5
  %s8 = scalar_select 0, %s7, %s5
  $region1: #{multi_head_attention.1} parent=0
    #allocation3 [shape = 'u8[24576]{0}', space=vmem, size = 0x6000, scoped, tag = 'input window, operand 0, single buffered']
    #allocation4 [shape = 's32[1]{0}', space=sflag, size = 0x4, scoped, tag = 'scoped memory for multi_head_attention.1']
    #allocation5 [shape = 's32[1]{0}', space=sflag, size = 0x4, scoped, tag = 'scoped memory for multi_head_attention.1']
    #allocation6 [shape = 'u8[884736]{0}', space=vmem, size = 0xd8000, scoped, tag = 'input window, operand 1, single buffered']
    #allocation7 [shape = 's32[1]{0}', space=sflag, size = 0x4, scoped, tag = 'scoped memory for multi_head_attention.1']
    #allocation8 [shape = 'u8[294912]{0}', space=vmem, size = 0x48000, scoped, tag = 'input window, operand 2, single buffered']
    #allocation9 [shape = 'u8[1536]{0}', space=vmem, size = 0x800, scoped, tag = 'input window, operand 3, single buffered']
    #allocation10 [shape = 's32[1]{0}', space=sflag, size = 0x4, scoped, tag = 'scoped memory for multi_head_attention.1']
    #allocation11 [shape = 'u8[24576]{0}', space=vmem, size = 0x6000, scoped, tag = 'output window, operand 0, single buffered']
    %9 = vsyncpa [#allocation4], 0
    %10 = vsyncpa [#allocation7], 0
    %11 = vsyncpa [#allocation10], 0
    %12 = vsyncpa [#allocation5], 0
    // Predicated region
    $region2: #{multi_head_attention.1} parent=1 // pred_check
      _
    $region3: #{multi_head_attention.1} parent=1 // pred_check_branch
      %14 = sbr.rel (0) target = $region5
    $region4: #{multi_head_attention.1} parent=1 // pred_region
      %16 = vsyncadd [#allocation4], 0
      %s17 = sshll.u32 %s0, 4
      %s18 = int_to_ptr.hbm [resolvable:$true] %s17
      %s19 = sshll.u32 [#allocation3], 4
      %s20 = int_to_ptr.vmem [resolvable:$true] %s19
      %25 = dma.hbm_to_vmem [thread:$0]  %s18, 768, %s20, [#allocation4], 384, 384, 24
    $region5: #{multi_head_attention.1} parent=1 // pred_fallthru
      _
    // Predicated region
    $region6: #{multi_head_attention.1} parent=1 // pred_check
      _
    $region7: #{multi_head_attention.1} parent=1 // pred_check_branch
      %27 = sbr.rel (0) target = $region9
    $region8: #{multi_head_attention.1} parent=1 // pred_region
      %29 = vsyncadd [#allocation7], 0
      %s30 = sshll.u32 %s1, 4
      %s31 = int_to_ptr.hbm [resolvable:$true] %s30
      %s32 = sshll.u32 [#allocation6], 4
      %s33 = int_to_ptr.vmem [resolvable:$true] %s32
      %38 = dma.hbm_to_vmem [thread:$0]  %s31, 27648, %s33, [#allocation7], 576, 576, 36
    $region9: #{multi_head_attention.1} parent=1 // pred_fallthru
      _
    // Predicated region
    $region10: #{multi_head_attention.1} parent=1 // pred_check
      _
    $region11: #{multi_head_attention.1} parent=1 // pred_check_branch
      %40 = sbr.rel (0) target = $region13
    $region12: #{multi_head_attention.1} parent=1 // pred_region
      %42 = vsyncadd [#allocation7], 0
      %s43 = sshll.u32 %s2, 4
      %s44 = int_to_ptr.hbm [resolvable:$true] %s43
      %s45 = sshll.u32 [#allocation8], 4
      %s46 = int_to_ptr.vmem [resolvable:$true] %s45
      %51 = dma.hbm_to_vmem [thread:$0]  %s44, 9216, %s46, [#allocation7], 192, 192, 12
    $region13: #{multi_head_attention.1} parent=1 // pred_fallthru
      _
    // Predicated region
    $region14: #{multi_head_attention.1} parent=1 // pred_check
      _
    $region15: #{multi_head_attention.1} parent=1 // pred_check_branch
      %53 = sbr.rel (0) target = $region17
    $region16: #{multi_head_attention.1} parent=1 // pred_region
      %55 = vsyncadd [#allocation10], 0
      %s57 = sshll.u32 %s3, 4
      %s58 = int_to_ptr.hbm [resolvable:$true] %s57
      %s59 = sshll.u32 [#allocation9], 4
      %s60 = int_to_ptr.vmem [resolvable:$true] %s59
      %62 = dma.hbm_to_vmem [thread:$0]  %s58, 48, %s60, [#allocation10]
    $region17: #{multi_head_attention.1} parent=1 // pred_fallthru
      _
    // Predicated region
    $region18: #{multi_head_attention.1} parent=1 // pred_check
      _
    $region19: #{multi_head_attention.1} parent=1 // pred_check_branch
      %64 = sbr.rel (0) target = $region21
    $region20: #{multi_head_attention.1} parent=1 // pred_region
      %66 = dma.done [#allocation4], 768
    $region21: #{multi_head_attention.1} parent=1 // pred_fallthru
      _
    // Predicated region
    $region22: #{multi_head_attention.1} parent=1 // pred_check
      _
    $region23: #{multi_head_attention.1} parent=1 // pred_check_branch
      %68 = sbr.rel (0) target = $region25
    $region24: #{multi_head_attention.1} parent=1 // pred_region
      %70 = dma.done [#allocation7], 27648
    $region25: #{multi_head_attention.1} parent=1 // pred_fallthru
      _
    // Predicated region
    $region26: #{multi_head_attention.1} parent=1 // pred_check
      _
    $region27: #{multi_head_attention.1} parent=1 // pred_check_branch
      %72 = sbr.rel (0) target = $region29
    $region28: #{multi_head_attention.1} parent=1 // pred_region
      %74 = dma.done [#allocation7], 9216
    $region29: #{multi_head_attention.1} parent=1 // pred_fallthru
      _
    // Predicated region
    $region30: #{multi_head_attention.1} parent=1 // pred_check
      _
    $region31: #{multi_head_attention.1} parent=1 // pred_check_branch
      %76 = sbr.rel (0) target = $region33
    $region32: #{multi_head_attention.1} parent=1 // pred_region
      %78 = dma.done [#allocation10], 48
    $region33: #{multi_head_attention.1} parent=1 // pred_fallthru
      _
    %v80 = vld [vmem:[#allocation3] sm:$0xff]
    %v81 = vld [vmem:[#allocation3 + $0x8] sm:$0xff]
    %v82 = vld [vmem:[#allocation3 + $0x10] sm:$0xff]
    %v83 = vld [vmem:[#allocation3 + $0x18] sm:$0xff]
    %v84 = vld [vmem:[#allocation3 + $0x20] sm:$0xff]
    %v85 = vld [vmem:[#allocation3 + $0x28] sm:$0xff]
    %v86 = vpack.c.bf16 %v83, %v80
    %v87 = vpack.c.bf16 %v84, %v81
    %v88 = vpack.c.bf16 %v85, %v82
    %v89 = vld [vmem:[#allocation6] sm:$0xff]
    %v90 = vld [vmem:[#allocation6 + $0x8] sm:$0xff]
    %v91 = vld [vmem:[#allocation6 + $0x10] sm:$0xff]
    %v92 = vld [vmem:[#allocation6 + $0x18] sm:$0xff]
    %v93 = vld [vmem:[#allocation6 + $0x20] sm:$0xf]
    %v94 = vld [vmem:[#allocation6 + $0x24] sm:$0xff]
    %v95 = vld [vmem:[#allocation6 + $0x2c] sm:$0xff]
    %v96 = vld [vmem:[#allocation6 + $0x34] sm:$0xff]
    %v97 = vld [vmem:[#allocation6 + $0x3c] sm:$0xff]
    %v98 = vld [vmem:[#allocation6 + $0x44] sm:$0xf]
    %v99 = vld [vmem:[#allocation6 + $0x48] sm:$0xff]
    %v100 = vld [vmem:[#allocation6 + $0x50] sm:$0xff]
    %v101 = vld [vmem:[#allocation6 + $0x58] sm:$0xff]
    %v102 = vld [vmem:[#allocation6 + $0x60] sm:$0xff]
    %v103 = vld [vmem:[#allocation6 + $0x68] sm:$0xf]
    %v104 = vld [vmem:[#allocation6 + $0x6c] sm:$0xff]
    %v105 = vld [vmem:[#allocation6 + $0x74] sm:$0xff]
    %v106 = vld [vmem:[#allocation6 + $0x7c] sm:$0xff]
    %v107 = vld [vmem:[#allocation6 + $0x84] sm:$0xff]
    %v108 = vld [vmem:[#allocation6 + $0x8c] sm:$0xf]
    %v109 = vld [vmem:[#allocation6 + $0x90] sm:$0xff]
    %v110 = vld [vmem:[#allocation6 + $0x98] sm:$0xff]
    %v111 = vld [vmem:[#allocation6 + $0xa0] sm:$0xff]
    %v112 = vld [vmem:[#allocation6 + $0xa8] sm:$0xff]
    %v113 = vld [vmem:[#allocation6 + $0xb0] sm:$0xf]
    %v114 = vld [vmem:[#allocation6 + $0xb4] sm:$0xff]
    %v115 = vld [vmem:[#allocation6 + $0xbc] sm:$0xff]
    %v116 = vld [vmem:[#allocation6 + $0xc4] sm:$0xff]
    %v117 = vld [vmem:[#allocation6 + $0xcc] sm:$0xff]
    %v118 = vld [vmem:[#allocation6 + $0xd4] sm:$0xf]
    %v119 = vld [vmem:[#allocation6 + $0xd8] sm:$0xff]
    %v120 = vld [vmem:[#allocation6 + $0xe0] sm:$0xff]
    %v121 = vld [vmem:[#allocation6 + $0xe8] sm:$0xff]
    %v122 = vld [vmem:[#allocation6 + $0xf0] sm:$0xff]
    %v123 = vld [vmem:[#allocation6 + $0xf8] sm:$0xf]
    %v124 = vld [vmem:[#allocation6 + $0xfc] sm:$0xff]
    %v125 = vld [vmem:[#allocation6 + $0x104] sm:$0xff]
    %v126 = vld [vmem:[#allocation6 + $0x10c] sm:$0xff]
    %v127 = vld [vmem:[#allocation6 + $0x114] sm:$0xff]
    %v128 = vld [vmem:[#allocation6 + $0x11c] sm:$0xf]
    %v129 = vld [vmem:[#allocation6 + $0x120] sm:$0xff]
    %v130 = vld [vmem:[#allocation6 + $0x128] sm:$0xff]
    %v131 = vld [vmem:[#allocation6 + $0x130] sm:$0xff]
    %v132 = vld [vmem:[#allocation6 + $0x138] sm:$0xff]
    %v133 = vld [vmem:[#allocation6 + $0x140] sm:$0xf]
    %v134 = vld [vmem:[#allocation6 + $0x144] sm:$0xff]
    %v135 = vld [vmem:[#allocation6 + $0x14c] sm:$0xff]
    %v136 = vld [vmem:[#allocation6 + $0x154] sm:$0xff]
    %v137 = vld [vmem:[#allocation6 + $0x15c] sm:$0xff]
    %v138 = vld [vmem:[#allocation6 + $0x164] sm:$0xf]
    %v139 = vld [vmem:[#allocation6 + $0x168] sm:$0xff]
    %v140 = vld [vmem:[#allocation6 + $0x170] sm:$0xff]
    %v141 = vld [vmem:[#allocation6 + $0x178] sm:$0xff]
    %v142 = vld [vmem:[#allocation6 + $0x180] sm:$0xff]
    %v143 = vld [vmem:[#allocation6 + $0x188] sm:$0xf]
    %v144 = vld [vmem:[#allocation6 + $0x18c] sm:$0xff]
    %v145 = vld [vmem:[#allocation6 + $0x194] sm:$0xff]
    %v146 = vld [vmem:[#allocation6 + $0x19c] sm:$0xff]
    %v147 = vld [vmem:[#allocation6 + $0x1a4] sm:$0xff]
    %v148 = vld [vmem:[#allocation6 + $0x1ac] sm:$0xf]
    %v149 = vld [vmem:[#allocation6 + $0x1b0] sm:$0xff]
    %v150 = vld [vmem:[#allocation6 + $0x1b8] sm:$0xff]
    %v151 = vld [vmem:[#allocation6 + $0x1c0] sm:$0xff]
    %v152 = vld [vmem:[#allocation6 + $0x1c8] sm:$0xff]
    %v153 = vld [vmem:[#allocation6 + $0x1d0] sm:$0xf]
    %v154 = vld [vmem:[#allocation6 + $0x1d4] sm:$0xff]
    %v155 = vld [vmem:[#allocation6 + $0x1dc] sm:$0xff]
    %v156 = vld [vmem:[#allocation6 + $0x1e4] sm:$0xff]
    %v157 = vld [vmem:[#allocation6 + $0x1ec] sm:$0xff]
    %v158 = vld [vmem:[#allocation6 + $0x1f4] sm:$0xf]
    %v159 = vld [vmem:[#allocation6 + $0x1f8] sm:$0xff]
    %v160 = vld [vmem:[#allocation6 + $0x200] sm:$0xff]
    %v161 = vld [vmem:[#allocation6 + $0x208] sm:$0xff]
    %v162 = vld [vmem:[#allocation6 + $0x210] sm:$0xff]
    %v163 = vld [vmem:[#allocation6 + $0x218] sm:$0xf]
    %v164 = vld [vmem:[#allocation6 + $0x21c] sm:$0xff]
    %v165 = vld [vmem:[#allocation6 + $0x224] sm:$0xff]
    %v166 = vld [vmem:[#allocation6 + $0x22c] sm:$0xff]
    %v167 = vld [vmem:[#allocation6 + $0x234] sm:$0xff]
    %v168 = vld [vmem:[#allocation6 + $0x23c] sm:$0xf]
    %v169 = vld [vmem:[#allocation6 + $0x240] sm:$0xff]
    %v170 = vld [vmem:[#allocation6 + $0x248] sm:$0xff]
    %v171 = vld [vmem:[#allocation6 + $0x250] sm:$0xff]
    %v172 = vld [vmem:[#allocation6 + $0x258] sm:$0xff]
    %v173 = vld [vmem:[#allocation6 + $0x260] sm:$0xf]
    %v174 = vld [vmem:[#allocation6 + $0x264] sm:$0xff]
    %v175 = vld [vmem:[#allocation6 + $0x26c] sm:$0xff]
    %v176 = vld [vmem:[#allocation6 + $0x274] sm:$0xff]
    %v177 = vld [vmem:[#allocation6 + $0x27c] sm:$0xff]
    %v178 = vld [vmem:[#allocation6 + $0x284] sm:$0xf]
    %v179 = vld [vmem:[#allocation6 + $0x288] sm:$0xff]
    %v180 = vld [vmem:[#allocation6 + $0x290] sm:$0xff]
    %v181 = vld [vmem:[#allocation6 + $0x298] sm:$0xff]
    %v182 = vld [vmem:[#allocation6 + $0x2a0] sm:$0xff]
    %v183 = vld [vmem:[#allocation6 + $0x2a8] sm:$0xf]
    %v184 = vld [vmem:[#allocation6 + $0x2ac] sm:$0xff]
    %v185 = vld [vmem:[#allocation6 + $0x2b4] sm:$0xff]
    %v186 = vld [vmem:[#allocation6 + $0x2bc] sm:$0xff]
    %v187 = vld [vmem:[#allocation6 + $0x2c4] sm:$0xff]
    %v188 = vld [vmem:[#allocation6 + $0x2cc] sm:$0xf]
    %v189 = vld [vmem:[#allocation6 + $0x2d0] sm:$0xff]
    %v190 = vld [vmem:[#allocation6 + $0x2d8] sm:$0xff]
    %v191 = vld [vmem:[#allocation6 + $0x2e0] sm:$0xff]
    %v192 = vld [vmem:[#allocation6 + $0x2e8] sm:$0xff]
    %v193 = vld [vmem:[#allocation6 + $0x2f0] sm:$0xf]
    %v194 = vld [vmem:[#allocation6 + $0x2f4] sm:$0xff]
    %v195 = vld [vmem:[#allocation6 + $0x2fc] sm:$0xff]
    %v196 = vld [vmem:[#allocation6 + $0x304] sm:$0xff]
    %v197 = vld [vmem:[#allocation6 + $0x30c] sm:$0xff]
    %v198 = vld [vmem:[#allocation6 + $0x314] sm:$0xf]
    %v199 = vld [vmem:[#allocation6 + $0x318] sm:$0xff]
    %v200 = vld [vmem:[#allocation6 + $0x320] sm:$0xff]
    %v201 = vld [vmem:[#allocation6 + $0x328] sm:$0xff]
    %v202 = vld [vmem:[#allocation6 + $0x330] sm:$0xff]
    %v203 = vld [vmem:[#allocation6 + $0x338] sm:$0xf]
    %v204 = vld [vmem:[#allocation6 + $0x33c] sm:$0xff]
    %v205 = vld [vmem:[#allocation6 + $0x344] sm:$0xff]
    %v206 = vld [vmem:[#allocation6 + $0x34c] sm:$0xff]
    %v207 = vld [vmem:[#allocation6 + $0x354] sm:$0xff]
    %v208 = vld [vmem:[#allocation6 + $0x35c] sm:$0xf]
    %v209 = vld [vmem:[#allocation6 + $0x360] sm:$0xff]
    %v210 = vld [vmem:[#allocation6 + $0x368] sm:$0xff]
    %v211 = vld [vmem:[#allocation6 + $0x370] sm:$0xff]
    %v212 = vld [vmem:[#allocation6 + $0x378] sm:$0xff]
    %v213 = vld [vmem:[#allocation6 + $0x380] sm:$0xf]
    %v214 = vld [vmem:[#allocation6 + $0x384] sm:$0xff]
    %v215 = vld [vmem:[#allocation6 + $0x38c] sm:$0xff]
    %v216 = vld [vmem:[#allocation6 + $0x394] sm:$0xff]
    %v217 = vld [vmem:[#allocation6 + $0x39c] sm:$0xff]
    %v218 = vld [vmem:[#allocation6 + $0x3a4] sm:$0xf]
    %v219 = vld [vmem:[#allocation6 + $0x3a8] sm:$0xff]
    %v220 = vld [vmem:[#allocation6 + $0x3b0] sm:$0xff]
    %v221 = vld [vmem:[#allocation6 + $0x3b8] sm:$0xff]
    %v222 = vld [vmem:[#allocation6 + $0x3c0] sm:$0xff]
    %v223 = vld [vmem:[#allocation6 + $0x3c8] sm:$0xf]
    %v224 = vld [vmem:[#allocation6 + $0x3cc] sm:$0xff]
    %v225 = vld [vmem:[#allocation6 + $0x3d4] sm:$0xff]
    %v226 = vld [vmem:[#allocation6 + $0x3dc] sm:$0xff]
    %v227 = vld [vmem:[#allocation6 + $0x3e4] sm:$0xff]
    %v228 = vld [vmem:[#allocation6 + $0x3ec] sm:$0xf]
    %v229 = vld [vmem:[#allocation6 + $0x3f0] sm:$0xff]
    %v230 = vld [vmem:[#allocation6 + $0x3f8] sm:$0xff]
    %v231 = vld [vmem:[#allocation6 + $0x400] sm:$0xff]
    %v232 = vld [vmem:[#allocation6 + $0x408] sm:$0xff]
    %v233 = vld [vmem:[#allocation6 + $0x410] sm:$0xf]
    %v234 = vld [vmem:[#allocation6 + $0x414] sm:$0xff]
    %v235 = vld [vmem:[#allocation6 + $0x41c] sm:$0xff]
    %v236 = vld [vmem:[#allocation6 + $0x424] sm:$0xff]
    %v237 = vld [vmem:[#allocation6 + $0x42c] sm:$0xff]
    %v238 = vld [vmem:[#allocation6 + $0x434] sm:$0xf]
    %v239 = vld [vmem:[#allocation6 + $0x438] sm:$0xff]
    %v240 = vld [vmem:[#allocation6 + $0x440] sm:$0xff]
    %v241 = vld [vmem:[#allocation6 + $0x448] sm:$0xff]
    %v242 = vld [vmem:[#allocation6 + $0x450] sm:$0xff]
    %v243 = vld [vmem:[#allocation6 + $0x458] sm:$0xf]
    %v244 = vld [vmem:[#allocation6 + $0x45c] sm:$0xff]
    %v245 = vld [vmem:[#allocation6 + $0x464] sm:$0xff]
    %v246 = vld [vmem:[#allocation6 + $0x46c] sm:$0xff]
    %v247 = vld [vmem:[#allocation6 + $0x474] sm:$0xff]
    %v248 = vld [vmem:[#allocation6 + $0x47c] sm:$0xf]
    %v249 = vld [vmem:[#allocation6 + $0x480] sm:$0xff]
    %v250 = vld [vmem:[#allocation6 + $0x488] sm:$0xff]
    %v251 = vld [vmem:[#allocation6 + $0x490] sm:$0xff]
    %v252 = vld [vmem:[#allocation6 + $0x498] sm:$0xff]
    %v253 = vld [vmem:[#allocation6 + $0x4a0] sm:$0xf]
    %v254 = vld [vmem:[#allocation6 + $0x4a4] sm:$0xff]
    %v255 = vld [vmem:[#allocation6 + $0x4ac] sm:$0xff]
    %v256 = vld [vmem:[#allocation6 + $0x4b4] sm:$0xff]
    %v257 = vld [vmem:[#allocation6 + $0x4bc] sm:$0xff]
    %v258 = vld [vmem:[#allocation6 + $0x4c4] sm:$0xf]
    %v259 = vld [vmem:[#allocation6 + $0x4c8] sm:$0xff]
    %v260 = vld [vmem:[#allocation6 + $0x4d0] sm:$0xff]
    %v261 = vld [vmem:[#allocation6 + $0x4d8] sm:$0xff]
    %v262 = vld [vmem:[#allocation6 + $0x4e0] sm:$0xff]
    %v263 = vld [vmem:[#allocation6 + $0x4e8] sm:$0xf]
    %v264 = vld [vmem:[#allocation6 + $0x4ec] sm:$0xff]
    %v265 = vld [vmem:[#allocation6 + $0x4f4] sm:$0xff]
    %v266 = vld [vmem:[#allocation6 + $0x4fc] sm:$0xff]
    %v267 = vld [vmem:[#allocation6 + $0x504] sm:$0xff]
    %v268 = vld [vmem:[#allocation6 + $0x50c] sm:$0xf]
    %v269 = vld [vmem:[#allocation6 + $0x510] sm:$0xff]
    %v270 = vld [vmem:[#allocation6 + $0x518] sm:$0xff]
    %v271 = vld [vmem:[#allocation6 + $0x520] sm:$0xff]
    %v272 = vld [vmem:[#allocation6 + $0x528] sm:$0xff]
    %v273 = vld [vmem:[#allocation6 + $0x530] sm:$0xf]
    %v274 = vld [vmem:[#allocation6 + $0x534] sm:$0xff]
    %v275 = vld [vmem:[#allocation6 + $0x53c] sm:$0xff]
    %v276 = vld [vmem:[#allocation6 + $0x544] sm:$0xff]
    %v277 = vld [vmem:[#allocation6 + $0x54c] sm:$0xff]
    %v278 = vld [vmem:[#allocation6 + $0x554] sm:$0xf]
    %v279 = vld [vmem:[#allocation6 + $0x558] sm:$0xff]
    %v280 = vld [vmem:[#allocation6 + $0x560] sm:$0xff]
    %v281 = vld [vmem:[#allocation6 + $0x568] sm:$0xff]
    %v282 = vld [vmem:[#allocation6 + $0x570] sm:$0xff]
    %v283 = vld [vmem:[#allocation6 + $0x578] sm:$0xf]
    %v284 = vld [vmem:[#allocation6 + $0x57c] sm:$0xff]
    %v285 = vld [vmem:[#allocation6 + $0x584] sm:$0xff]
    %v286 = vld [vmem:[#allocation6 + $0x58c] sm:$0xff]
    %v287 = vld [vmem:[#allocation6 + $0x594] sm:$0xff]
    %v288 = vld [vmem:[#allocation6 + $0x59c] sm:$0xf]
    %v289 = vld [vmem:[#allocation6 + $0x5a0] sm:$0xff]
    %v290 = vld [vmem:[#allocation6 + $0x5a8] sm:$0xff]
    %v291 = vld [vmem:[#allocation6 + $0x5b0] sm:$0xff]
    %v292 = vld [vmem:[#allocation6 + $0x5b8] sm:$0xff]
    %v293 = vld [vmem:[#allocation6 + $0x5c0] sm:$0xf]
    %v294 = vld [vmem:[#allocation6 + $0x5c4] sm:$0xff]
    %v295 = vld [vmem:[#allocation6 + $0x5cc] sm:$0xff]
    %v296 = vld [vmem:[#allocation6 + $0x5d4] sm:$0xff]
    %v297 = vld [vmem:[#allocation6 + $0x5dc] sm:$0xff]
    %v298 = vld [vmem:[#allocation6 + $0x5e4] sm:$0xf]
    %v299 = vld [vmem:[#allocation6 + $0x5e8] sm:$0xff]
    %v300 = vld [vmem:[#allocation6 + $0x5f0] sm:$0xff]
    %v301 = vld [vmem:[#allocation6 + $0x5f8] sm:$0xff]
    %v302 = vld [vmem:[#allocation6 + $0x600] sm:$0xff]
    %v303 = vld [vmem:[#allocation6 + $0x608] sm:$0xf]
    %v304 = vld [vmem:[#allocation6 + $0x60c] sm:$0xff]
    %v305 = vld [vmem:[#allocation6 + $0x614] sm:$0xff]
    %v306 = vld [vmem:[#allocation6 + $0x61c] sm:$0xff]
    %v307 = vld [vmem:[#allocation6 + $0x624] sm:$0xff]
    %v308 = vld [vmem:[#allocation6 + $0x62c] sm:$0xf]
    %v309 = vld [vmem:[#allocation6 + $0x630] sm:$0xff]
    %v310 = vld [vmem:[#allocation6 + $0x638] sm:$0xff]
    %v311 = vld [vmem:[#allocation6 + $0x640] sm:$0xff]
    %v312 = vld [vmem:[#allocation6 + $0x648] sm:$0xff]
    %v313 = vld [vmem:[#allocation6 + $0x650] sm:$0xf]
    %v314 = vld [vmem:[#allocation6 + $0x654] sm:$0xff]
    %v315 = vld [vmem:[#allocation6 + $0x65c] sm:$0xff]
    %v316 = vld [vmem:[#allocation6 + $0x664] sm:$0xff]
    %v317 = vld [vmem:[#allocation6 + $0x66c] sm:$0xff]
    %v318 = vld [vmem:[#allocation6 + $0x674] sm:$0xf]
    %v319 = vld [vmem:[#allocation6 + $0x678] sm:$0xff]
    %v320 = vld [vmem:[#allocation6 + $0x680] sm:$0xff]
    %v321 = vld [vmem:[#allocation6 + $0x688] sm:$0xff]
    %v322 = vld [vmem:[#allocation6 + $0x690] sm:$0xff]
    %v323 = vld [vmem:[#allocation6 + $0x698] sm:$0xf]
    %v324 = vld [vmem:[#allocation6 + $0x69c] sm:$0xff]
    %v325 = vld [vmem:[#allocation6 + $0x6a4] sm:$0xff]
    %v326 = vld [vmem:[#allocation6 + $0x6ac] sm:$0xff]
    %v327 = vld [vmem:[#allocation6 + $0x6b4] sm:$0xff]
    %v328 = vld [vmem:[#allocation6 + $0x6bc] sm:$0xf]
    %v569 = vunpack.c.l.b16 %v89
    %v570 = vunpack.c.h.b16 %v89
    %v571 = vunpack.c.l.b16 %v90
    %v572 = vunpack.c.h.b16 %v90
    %v573 = vunpack.c.l.b16 %v91
    %v574 = vunpack.c.h.b16 %v91
    %v575 = vunpack.c.l.b16 %v92
    %v576 = vunpack.c.h.b16 %v92
    %v577 = vunpack.c.l.b16 %v93
    %v578 = vunpack.c.l.b16 %v94
    %v579 = vunpack.c.h.b16 %v94
    %v580 = vunpack.c.l.b16 %v95
    %v581 = vunpack.c.h.b16 %v95
    %v582 = vunpack.c.l.b16 %v96
    %v583 = vunpack.c.h.b16 %v96
    %v584 = vunpack.c.l.b16 %v97
    %v585 = vunpack.c.h.b16 %v97
    %v586 = vunpack.c.l.b16 %v98
    %v587 = vunpack.c.l.b16 %v99
    %v588 = vunpack.c.h.b16 %v99
    %v589 = vunpack.c.l.b16 %v100
    %v590 = vunpack.c.h.b16 %v100
    %v591 = vunpack.c.l.b16 %v101
    %v592 = vunpack.c.h.b16 %v101
    %v593 = vunpack.c.l.b16 %v102
    %v594 = vunpack.c.h.b16 %v102
    %v595 = vunpack.c.l.b16 %v103
    %v596 = vunpack.c.l.b16 %v104
    %v597 = vunpack.c.h.b16 %v104
    %v598 = vunpack.c.l.b16 %v105
    %v599 = vunpack.c.h.b16 %v105
    %v600 = vunpack.c.l.b16 %v106
    %v601 = vunpack.c.h.b16 %v106
    %v602 = vunpack.c.l.b16 %v107
    %v603 = vunpack.c.h.b16 %v107
    %v604 = vunpack.c.l.b16 %v108
    %v605 = vunpack.c.l.b16 %v109
    %v606 = vunpack.c.h.b16 %v109
    %v607 = vunpack.c.l.b16 %v110
    %v608 = vunpack.c.h.b16 %v110
    %v609 = vunpack.c.l.b16 %v111
    %v610 = vunpack.c.h.b16 %v111
    %v611 = vunpack.c.l.b16 %v112
    %v612 = vunpack.c.h.b16 %v112
    %v613 = vunpack.c.l.b16 %v113
    %v614 = vunpack.c.l.b16 %v114
    %v615 = vunpack.c.h.b16 %v114
    %v616 = vunpack.c.l.b16 %v115
    %v617 = vunpack.c.h.b16 %v115
    %v618 = vunpack.c.l.b16 %v116
    %v619 = vunpack.c.h.b16 %v116
    %v620 = vunpack.c.l.b16 %v117
    %v621 = vunpack.c.h.b16 %v117
    %v622 = vunpack.c.l.b16 %v118
    %v623 = vunpack.c.l.b16 %v119
    %v624 = vunpack.c.h.b16 %v119
    %v625 = vunpack.c.l.b16 %v120
    %v626 = vunpack.c.h.b16 %v120
    %v627 = vunpack.c.l.b16 %v121
    %v628 = vunpack.c.h.b16 %v121
    %v629 = vunpack.c.l.b16 %v122
    %v630 = vunpack.c.h.b16 %v122
    %v631 = vunpack.c.l.b16 %v123
    %v632 = vunpack.c.l.b16 %v124
    %v633 = vunpack.c.h.b16 %v124
    %v634 = vunpack.c.l.b16 %v125
    %v635 = vunpack.c.h.b16 %v125
    %v636 = vunpack.c.l.b16 %v126
    %v637 = vunpack.c.h.b16 %v126
    %v638 = vunpack.c.l.b16 %v127
    %v639 = vunpack.c.h.b16 %v127
    %v640 = vunpack.c.l.b16 %v128
    %v641 = vunpack.c.l.b16 %v129
    %v642 = vunpack.c.h.b16 %v129
    %v643 = vunpack.c.l.b16 %v130
    %v644 = vunpack.c.h.b16 %v130
    %v645 = vunpack.c.l.b16 %v131
    %v646 = vunpack.c.h.b16 %v131
    %v647 = vunpack.c.l.b16 %v132
    %v648 = vunpack.c.h.b16 %v132
    %v649 = vunpack.c.l.b16 %v133
    %v650 = vunpack.c.l.b16 %v134
    %v651 = vunpack.c.h.b16 %v134
    %v652 = vunpack.c.l.b16 %v135
    %v653 = vunpack.c.h.b16 %v135
    %v654 = vunpack.c.l.b16 %v136
    %v655 = vunpack.c.h.b16 %v136
    %v656 = vunpack.c.l.b16 %v137
    %v657 = vunpack.c.h.b16 %v137
    %v658 = vunpack.c.l.b16 %v138
    %v659 = vunpack.c.l.b16 %v139
    %v660 = vunpack.c.h.b16 %v139
    %v661 = vunpack.c.l.b16 %v140
    %v662 = vunpack.c.h.b16 %v140
    %v663 = vunpack.c.l.b16 %v141
    %v664 = vunpack.c.h.b16 %v141
    %v665 = vunpack.c.l.b16 %v142
    %v666 = vunpack.c.h.b16 %v142
    %v667 = vunpack.c.l.b16 %v143
    %v668 = vunpack.c.l.b16 %v144
    %v669 = vunpack.c.h.b16 %v144
    %v670 = vunpack.c.l.b16 %v145
    %v671 = vunpack.c.h.b16 %v145
    %v672 = vunpack.c.l.b16 %v146
    %v673 = vunpack.c.h.b16 %v146
    %v674 = vunpack.c.l.b16 %v147
    %v675 = vunpack.c.h.b16 %v147
    %v676 = vunpack.c.l.b16 %v148
    %v677 = vunpack.c.l.b16 %v149
    %v678 = vunpack.c.h.b16 %v149
    %v679 = vunpack.c.l.b16 %v150
    %v680 = vunpack.c.h.b16 %v150
    %v681 = vunpack.c.l.b16 %v151
    %v682 = vunpack.c.h.b16 %v151
    %v683 = vunpack.c.l.b16 %v152
    %v684 = vunpack.c.h.b16 %v152
    %v685 = vunpack.c.l.b16 %v153
    %v686 = vunpack.c.l.b16 %v154
    %v687 = vunpack.c.h.b16 %v154
    %v688 = vunpack.c.l.b16 %v155
    %v689 = vunpack.c.h.b16 %v155
    %v690 = vunpack.c.l.b16 %v156
    %v691 = vunpack.c.h.b16 %v156
    %v692 = vunpack.c.l.b16 %v157
    %v693 = vunpack.c.h.b16 %v157
    %v694 = vunpack.c.l.b16 %v158
    %v695 = vunpack.c.l.b16 %v159
    %v696 = vunpack.c.h.b16 %v159
    %v697 = vunpack.c.l.b16 %v160
    %v698 = vunpack.c.h.b16 %v160
    %v699 = vunpack.c.l.b16 %v161
    %v700 = vunpack.c.h.b16 %v161
    %v701 = vunpack.c.l.b16 %v162
    %v702 = vunpack.c.h.b16 %v162
    %v703 = vunpack.c.l.b16 %v163
    %v704 = vunpack.c.l.b16 %v164
    %v705 = vunpack.c.h.b16 %v164
    %v706 = vunpack.c.l.b16 %v165
    %v707 = vunpack.c.h.b16 %v165
    %v708 = vunpack.c.l.b16 %v166
    %v709 = vunpack.c.h.b16 %v166
    %v710 = vunpack.c.l.b16 %v167
    %v711 = vunpack.c.h.b16 %v167
    %v712 = vunpack.c.l.b16 %v168
    %v713 = vunpack.c.l.b16 %v169
    %v714 = vunpack.c.h.b16 %v169
    %v715 = vunpack.c.l.b16 %v170
    %v716 = vunpack.c.h.b16 %v170
    %v717 = vunpack.c.l.b16 %v171
    %v718 = vunpack.c.h.b16 %v171
    %v719 = vunpack.c.l.b16 %v172
    %v720 = vunpack.c.h.b16 %v172
    %v721 = vunpack.c.l.b16 %v173
    %v722 = vunpack.c.l.b16 %v174
    %v723 = vunpack.c.h.b16 %v174
    %v724 = vunpack.c.l.b16 %v175
    %v725 = vunpack.c.h.b16 %v175
    %v726 = vunpack.c.l.b16 %v176
    %v727 = vunpack.c.h.b16 %v176
    %v728 = vunpack.c.l.b16 %v177
    %v729 = vunpack.c.h.b16 %v177
    %v730 = vunpack.c.l.b16 %v178
    %v731 = vunpack.c.l.b16 %v179
    %v732 = vunpack.c.h.b16 %v179
    %v733 = vunpack.c.l.b16 %v180
    %v734 = vunpack.c.h.b16 %v180
    %v735 = vunpack.c.l.b16 %v181
    %v736 = vunpack.c.h.b16 %v181
    %v737 = vunpack.c.l.b16 %v182
    %v738 = vunpack.c.h.b16 %v182
    %v739 = vunpack.c.l.b16 %v183
    %v740 = vunpack.c.l.b16 %v184
    %v741 = vunpack.c.h.b16 %v184
    %v742 = vunpack.c.l.b16 %v185
    %v743 = vunpack.c.h.b16 %v185
    %v744 = vunpack.c.l.b16 %v186
    %v745 = vunpack.c.h.b16 %v186
    %v746 = vunpack.c.l.b16 %v187
    %v747 = vunpack.c.h.b16 %v187
    %v748 = vunpack.c.l.b16 %v188
    %v749 = vunpack.c.l.b16 %v189
    %v750 = vunpack.c.h.b16 %v189
    %v751 = vunpack.c.l.b16 %v190
    %v752 = vunpack.c.h.b16 %v190
    %v753 = vunpack.c.l.b16 %v191
    %v754 = vunpack.c.h.b16 %v191
    %v755 = vunpack.c.l.b16 %v192
    %v756 = vunpack.c.h.b16 %v192
    %v757 = vunpack.c.l.b16 %v193
    %v758 = vunpack.c.l.b16 %v194
    %v759 = vunpack.c.h.b16 %v194
    %v760 = vunpack.c.l.b16 %v195
    %v761 = vunpack.c.h.b16 %v195
    %v762 = vunpack.c.l.b16 %v196
    %v763 = vunpack.c.h.b16 %v196
    %v764 = vunpack.c.l.b16 %v197
    %v765 = vunpack.c.h.b16 %v197
    %v766 = vunpack.c.l.b16 %v198
    %v767 = vunpack.c.l.b16 %v199
    %v768 = vunpack.c.h.b16 %v199
    %v769 = vunpack.c.l.b16 %v200
    %v770 = vunpack.c.h.b16 %v200
    %v771 = vunpack.c.l.b16 %v201
    %v772 = vunpack.c.h.b16 %v201
    %v773 = vunpack.c.l.b16 %v202
    %v774 = vunpack.c.h.b16 %v202
    %v775 = vunpack.c.l.b16 %v203
    %v776 = vunpack.c.l.b16 %v204
    %v777 = vunpack.c.h.b16 %v204
    %v778 = vunpack.c.l.b16 %v205
    %v779 = vunpack.c.h.b16 %v205
    %v780 = vunpack.c.l.b16 %v206
    %v781 = vunpack.c.h.b16 %v206
    %v782 = vunpack.c.l.b16 %v207
    %v783 = vunpack.c.h.b16 %v207
    %v784 = vunpack.c.l.b16 %v208
    %v785 = vunpack.c.l.b16 %v209
    %v786 = vunpack.c.h.b16 %v209
    %v787 = vunpack.c.l.b16 %v210
    %v788 = vunpack.c.h.b16 %v210
    %v789 = vunpack.c.l.b16 %v211
    %v790 = vunpack.c.h.b16 %v211
    %v791 = vunpack.c.l.b16 %v212
    %v792 = vunpack.c.h.b16 %v212
    %v793 = vunpack.c.l.b16 %v213
    %v794 = vunpack.c.l.b16 %v214
    %v795 = vunpack.c.h.b16 %v214
    %v796 = vunpack.c.l.b16 %v215
    %v797 = vunpack.c.h.b16 %v215
    %v798 = vunpack.c.l.b16 %v216
    %v799 = vunpack.c.h.b16 %v216
    %v800 = vunpack.c.l.b16 %v217
    %v801 = vunpack.c.h.b16 %v217
    %v802 = vunpack.c.l.b16 %v218
    %v803 = vunpack.c.l.b16 %v219
    %v804 = vunpack.c.h.b16 %v219
    %v805 = vunpack.c.l.b16 %v220
    %v806 = vunpack.c.h.b16 %v220
    %v807 = vunpack.c.l.b16 %v221
    %v808 = vunpack.c.h.b16 %v221
    %v809 = vunpack.c.l.b16 %v222
    %v810 = vunpack.c.h.b16 %v222
    %v811 = vunpack.c.l.b16 %v223
    %v812 = vunpack.c.l.b16 %v224
    %v813 = vunpack.c.h.b16 %v224
    %v814 = vunpack.c.l.b16 %v225
    %v815 = vunpack.c.h.b16 %v225
    %v816 = vunpack.c.l.b16 %v226
    %v817 = vunpack.c.h.b16 %v226
    %v818 = vunpack.c.l.b16 %v227
    %v819 = vunpack.c.h.b16 %v227
    %v820 = vunpack.c.l.b16 %v228
    %v821 = vunpack.c.l.b16 %v229
    %v822 = vunpack.c.h.b16 %v229
    %v823 = vunpack.c.l.b16 %v230
    %v824 = vunpack.c.h.b16 %v230
    %v825 = vunpack.c.l.b16 %v231
    %v826 = vunpack.c.h.b16 %v231
    %v827 = vunpack.c.l.b16 %v232
    %v828 = vunpack.c.h.b16 %v232
    %v829 = vunpack.c.l.b16 %v233
    %v830 = vunpack.c.l.b16 %v234
    %v831 = vunpack.c.h.b16 %v234
    %v832 = vunpack.c.l.b16 %v235
    %v833 = vunpack.c.h.b16 %v235
    %v834 = vunpack.c.l.b16 %v236
    %v835 = vunpack.c.h.b16 %v236
    %v836 = vunpack.c.l.b16 %v237
    %v837 = vunpack.c.h.b16 %v237
    %v838 = vunpack.c.l.b16 %v238
    %v839 = vunpack.c.l.b16 %v239
    %v840 = vunpack.c.h.b16 %v239
    %v841 = vunpack.c.l.b16 %v240
    %v842 = vunpack.c.h.b16 %v240
    %v843 = vunpack.c.l.b16 %v241
    %v844 = vunpack.c.h.b16 %v241
    %v845 = vunpack.c.l.b16 %v242
    %v846 = vunpack.c.h.b16 %v242
    %v847 = vunpack.c.l.b16 %v243
    %v848 = vunpack.c.l.b16 %v244
    %v849 = vunpack.c.h.b16 %v244
    %v850 = vunpack.c.l.b16 %v245
    %v851 = vunpack.c.h.b16 %v245
    %v852 = vunpack.c.l.b16 %v246
    %v853 = vunpack.c.h.b16 %v246
    %v854 = vunpack.c.l.b16 %v247
    %v855 = vunpack.c.h.b16 %v247
    %v856 = vunpack.c.l.b16 %v248
    %v857 = vunpack.c.l.b16 %v249
    %v858 = vunpack.c.h.b16 %v249
    %v859 = vunpack.c.l.b16 %v250
    %v860 = vunpack.c.h.b16 %v250
    %v861 = vunpack.c.l.b16 %v251
    %v862 = vunpack.c.h.b16 %v251
    %v863 = vunpack.c.l.b16 %v252
    %v864 = vunpack.c.h.b16 %v252
    %v865 = vunpack.c.l.b16 %v253
    %v866 = vunpack.c.l.b16 %v254
    %v867 = vunpack.c.h.b16 %v254
    %v868 = vunpack.c.l.b16 %v255
    %v869 = vunpack.c.h.b16 %v255
    %v870 = vunpack.c.l.b16 %v256
    %v871 = vunpack.c.h.b16 %v256
    %v872 = vunpack.c.l.b16 %v257
    %v873 = vunpack.c.h.b16 %v257
    %v874 = vunpack.c.l.b16 %v258
    %v875 = vunpack.c.l.b16 %v259
    %v876 = vunpack.c.h.b16 %v259
    %v877 = vunpack.c.l.b16 %v260
    %v878 = vunpack.c.h.b16 %v260
    %v879 = vunpack.c.l.b16 %v261
    %v880 = vunpack.c.h.b16 %v261
    %v881 = vunpack.c.l.b16 %v262
    %v882 = vunpack.c.h.b16 %v262
    %v883 = vunpack.c.l.b16 %v263
    %v884 = vunpack.c.l.b16 %v264
    %v885 = vunpack.c.h.b16 %v264
    %v886 = vunpack.c.l.b16 %v265
    %v887 = vunpack.c.h.b16 %v265
    %v888 = vunpack.c.l.b16 %v266
    %v889 = vunpack.c.h.b16 %v266
    %v890 = vunpack.c.l.b16 %v267
    %v891 = vunpack.c.h.b16 %v267
    %v892 = vunpack.c.l.b16 %v268
    %v893 = vunpack.c.l.b16 %v269
    %v894 = vunpack.c.h.b16 %v269
    %v895 = vunpack.c.l.b16 %v270
    %v896 = vunpack.c.h.b16 %v270
    %v897 = vunpack.c.l.b16 %v271
    %v898 = vunpack.c.h.b16 %v271
    %v899 = vunpack.c.l.b16 %v272
    %v900 = vunpack.c.h.b16 %v272
    %v901 = vunpack.c.l.b16 %v273
    %v902 = vunpack.c.l.b16 %v274
    %v903 = vunpack.c.h.b16 %v274
    %v904 = vunpack.c.l.b16 %v275
    %v905 = vunpack.c.h.b16 %v275
    %v906 = vunpack.c.l.b16 %v276
    %v907 = vunpack.c.h.b16 %v276
    %v908 = vunpack.c.l.b16 %v277
    %v909 = vunpack.c.h.b16 %v277
    %v910 = vunpack.c.l.b16 %v278
    %v911 = vunpack.c.l.b16 %v279
    %v912 = vunpack.c.h.b16 %v279
    %v913 = vunpack.c.l.b16 %v280
    %v914 = vunpack.c.h.b16 %v280
    %v915 = vunpack.c.l.b16 %v281
    %v916 = vunpack.c.h.b16 %v281
    %v917 = vunpack.c.l.b16 %v282
    %v918 = vunpack.c.h.b16 %v282
    %v919 = vunpack.c.l.b16 %v283
    %v920 = vunpack.c.l.b16 %v284
    %v921 = vunpack.c.h.b16 %v284
    %v922 = vunpack.c.l.b16 %v285
    %v923 = vunpack.c.h.b16 %v285
    %v924 = vunpack.c.l.b16 %v286
    %v925 = vunpack.c.h.b16 %v286
    %v926 = vunpack.c.l.b16 %v287
    %v927 = vunpack.c.h.b16 %v287
    %v928 = vunpack.c.l.b16 %v288
    %v929 = vunpack.c.l.b16 %v289
    %v930 = vunpack.c.h.b16 %v289
    %v931 = vunpack.c.l.b16 %v290
    %v932 = vunpack.c.h.b16 %v290
    %v933 = vunpack.c.l.b16 %v291
    %v934 = vunpack.c.h.b16 %v291
    %v935 = vunpack.c.l.b16 %v292
    %v936 = vunpack.c.h.b16 %v292
    %v937 = vunpack.c.l.b16 %v293
    %v938 = vunpack.c.l.b16 %v294
    %v939 = vunpack.c.h.b16 %v294
    %v940 = vunpack.c.l.b16 %v295
    %v941 = vunpack.c.h.b16 %v295
    %v942 = vunpack.c.l.b16 %v296
    %v943 = vunpack.c.h.b16 %v296
    %v944 = vunpack.c.l.b16 %v297
    %v945 = vunpack.c.h.b16 %v297
    %v946 = vunpack.c.l.b16 %v298
    %v947 = vunpack.c.l.b16 %v299
    %v948 = vunpack.c.h.b16 %v299
    %v949 = vunpack.c.l.b16 %v300
    %v950 = vunpack.c.h.b16 %v300
    %v951 = vunpack.c.l.b16 %v301
    %v952 = vunpack.c.h.b16 %v301
    %v953 = vunpack.c.l.b16 %v302
    %v954 = vunpack.c.h.b16 %v302
    %v955 = vunpack.c.l.b16 %v303
    %v956 = vunpack.c.l.b16 %v304
    %v957 = vunpack.c.h.b16 %v304
    %v958 = vunpack.c.l.b16 %v305
    %v959 = vunpack.c.h.b16 %v305
    %v960 = vunpack.c.l.b16 %v306
    %v961 = vunpack.c.h.b16 %v306
    %v962 = vunpack.c.l.b16 %v307
    %v963 = vunpack.c.h.b16 %v307
    %v964 = vunpack.c.l.b16 %v308
    %v965 = vunpack.c.l.b16 %v309
    %v966 = vunpack.c.h.b16 %v309
    %v967 = vunpack.c.l.b16 %v310
    %v968 = vunpack.c.h.b16 %v310
    %v969 = vunpack.c.l.b16 %v311
    %v970 = vunpack.c.h.b16 %v311
    %v971 = vunpack.c.l.b16 %v312
    %v972 = vunpack.c.h.b16 %v312
    %v973 = vunpack.c.l.b16 %v313
    %v974 = vunpack.c.l.b16 %v314
    %v975 = vunpack.c.h.b16 %v314
    %v976 = vunpack.c.l.b16 %v315
    %v977 = vunpack.c.h.b16 %v315
    %v978 = vunpack.c.l.b16 %v316
    %v979 = vunpack.c.h.b16 %v316
    %v980 = vunpack.c.l.b16 %v317
    %v981 = vunpack.c.h.b16 %v317
    %v982 = vunpack.c.l.b16 %v318
    %v983 = vunpack.c.l.b16 %v319
    %v984 = vunpack.c.h.b16 %v319
    %v985 = vunpack.c.l.b16 %v320
    %v986 = vunpack.c.h.b16 %v320
    %v987 = vunpack.c.l.b16 %v321
    %v988 = vunpack.c.h.b16 %v321
    %v989 = vunpack.c.l.b16 %v322
    %v990 = vunpack.c.h.b16 %v322
    %v991 = vunpack.c.l.b16 %v323
    %v992 = vunpack.c.l.b16 %v324
    %v993 = vunpack.c.h.b16 %v324
    %v994 = vunpack.c.l.b16 %v325
    %v995 = vunpack.c.h.b16 %v325
    %v996 = vunpack.c.l.b16 %v326
    %v997 = vunpack.c.h.b16 %v326
    %v998 = vunpack.c.l.b16 %v327
    %v999 = vunpack.c.h.b16 %v327
    %v1000 = vunpack.c.l.b16 %v328
    %v1001 = vpack.c.b16 %v578, %v569
    %v1002 = vpack.c.b16 %v579, %v570
    %v1003 = vpack.c.b16 %v580, %v571
    %v1004 = vpack.c.b16 %v581, %v572
    %v1005 = vpack.c.b16 %v582, %v573
    %v1006 = vpack.c.b16 %v583, %v574
    %v1007 = vpack.c.b16 %v584, %v575
    %v1008 = vpack.c.b16 %v585, %v576
    %v1009 = vpack.c.b16 %v586, %v577
    %v1010 = vpack.c.b16 %v596, %v587
    %v1011 = vpack.c.b16 %v597, %v588
    %v1012 = vpack.c.b16 %v598, %v589
    %v1013 = vpack.c.b16 %v599, %v590
    %v1014 = vpack.c.b16 %v600, %v591
    %v1015 = vpack.c.b16 %v601, %v592
    %v1016 = vpack.c.b16 %v602, %v593
    %v1017 = vpack.c.b16 %v603, %v594
    %v1018 = vpack.c.b16 %v604, %v595
    %v1019 = vpack.c.b16 %v614, %v605
    %v1020 = vpack.c.b16 %v615, %v606
    %v1021 = vpack.c.b16 %v616, %v607
    %v1022 = vpack.c.b16 %v617, %v608
    %v1023 = vpack.c.b16 %v618, %v609
    %v1024 = vpack.c.b16 %v619, %v610
    %v1025 = vpack.c.b16 %v620, %v611
    %v1026 = vpack.c.b16 %v621, %v612
    %v1027 = vpack.c.b16 %v622, %v613
    %v1028 = vpack.c.b16 %v632, %v623
    %v1029 = vpack.c.b16 %v633, %v624
    %v1030 = vpack.c.b16 %v634, %v625
    %v1031 = vpack.c.b16 %v635, %v626
    %v1032 = vpack.c.b16 %v636, %v627
    %v1033 = vpack.c.b16 %v637, %v628
    %v1034 = vpack.c.b16 %v638, %v629
    %v1035 = vpack.c.b16 %v639, %v630
    %v1036 = vpack.c.b16 %v640, %v631
    %v1037 = vpack.c.b16 %v650, %v641
    %v1038 = vpack.c.b16 %v651, %v642
    %v1039 = vpack.c.b16 %v652, %v643
    %v1040 = vpack.c.b16 %v653, %v644
    %v1041 = vpack.c.b16 %v654, %v645
    %v1042 = vpack.c.b16 %v655, %v646
    %v1043 = vpack.c.b16 %v656, %v647
    %v1044 = vpack.c.b16 %v657, %v648
    %v1045 = vpack.c.b16 %v658, %v649
    %v1046 = vpack.c.b16 %v668, %v659
    %v1047 = vpack.c.b16 %v669, %v660
    %v1048 = vpack.c.b16 %v670, %v661
    %v1049 = vpack.c.b16 %v671, %v662
    %v1050 = vpack.c.b16 %v672, %v663
    %v1051 = vpack.c.b16 %v673, %v664
    %v1052 = vpack.c.b16 %v674, %v665
    %v1053 = vpack.c.b16 %v675, %v666
    %v1054 = vpack.c.b16 %v676, %v667
    %v1055 = vpack.c.b16 %v686, %v677
    %v1056 = vpack.c.b16 %v687, %v678
    %v1057 = vpack.c.b16 %v688, %v679
    %v1058 = vpack.c.b16 %v689, %v680
    %v1059 = vpack.c.b16 %v690, %v681
    %v1060 = vpack.c.b16 %v691, %v682
    %v1061 = vpack.c.b16 %v692, %v683
    %v1062 = vpack.c.b16 %v693, %v684
    %v1063 = vpack.c.b16 %v694, %v685
    %v1064 = vpack.c.b16 %v704, %v695
    %v1065 = vpack.c.b16 %v705, %v696
    %v1066 = vpack.c.b16 %v706, %v697
    %v1067 = vpack.c.b16 %v707, %v698
    %v1068 = vpack.c.b16 %v708, %v699
    %v1069 = vpack.c.b16 %v709, %v700
    %v1070 = vpack.c.b16 %v710, %v701
    %v1071 = vpack.c.b16 %v711, %v702
    %v1072 = vpack.c.b16 %v712, %v703
    %v1073 = vpack.c.b16 %v722, %v713
    %v1074 = vpack.c.b16 %v723, %v714
    %v1075 = vpack.c.b16 %v724, %v715
    %v1076 = vpack.c.b16 %v725, %v716
    %v1077 = vpack.c.b16 %v726, %v717
    %v1078 = vpack.c.b16 %v727, %v718
    %v1079 = vpack.c.b16 %v728, %v719
    %v1080 = vpack.c.b16 %v729, %v720
    %v1081 = vpack.c.b16 %v730, %v721
    %v1082 = vpack.c.b16 %v740, %v731
    %v1083 = vpack.c.b16 %v741, %v732
    %v1084 = vpack.c.b16 %v742, %v733
    %v1085 = vpack.c.b16 %v743, %v734
    %v1086 = vpack.c.b16 %v744, %v735
    %v1087 = vpack.c.b16 %v745, %v736
    %v1088 = vpack.c.b16 %v746, %v737
    %v1089 = vpack.c.b16 %v747, %v738
    %v1090 = vpack.c.b16 %v748, %v739
    %v1091 = vpack.c.b16 %v758, %v749
    %v1092 = vpack.c.b16 %v759, %v750
    %v1093 = vpack.c.b16 %v760, %v751
    %v1094 = vpack.c.b16 %v761, %v752
    %v1095 = vpack.c.b16 %v762, %v753
    %v1096 = vpack.c.b16 %v763, %v754
    %v1097 = vpack.c.b16 %v764, %v755
    %v1098 = vpack.c.b16 %v765, %v756
    %v1099 = vpack.c.b16 %v766, %v757
    %v1100 = vpack.c.b16 %v776, %v767
    %v1101 = vpack.c.b16 %v777, %v768
    %v1102 = vpack.c.b16 %v778, %v769
    %v1103 = vpack.c.b16 %v779, %v770
    %v1104 = vpack.c.b16 %v780, %v771
    %v1105 = vpack.c.b16 %v781, %v772
    %v1106 = vpack.c.b16 %v782, %v773
    %v1107 = vpack.c.b16 %v783, %v774
    %v1108 = vpack.c.b16 %v784, %v775
    %v1109 = vpack.c.b16 %v794, %v785
    %v1110 = vpack.c.b16 %v795, %v786
    %v1111 = vpack.c.b16 %v796, %v787
    %v1112 = vpack.c.b16 %v797, %v788
    %v1113 = vpack.c.b16 %v798, %v789
    %v1114 = vpack.c.b16 %v799, %v790
    %v1115 = vpack.c.b16 %v800, %v791
    %v1116 = vpack.c.b16 %v801, %v792
    %v1117 = vpack.c.b16 %v802, %v793
    %v1118 = vpack.c.b16 %v812, %v803
    %v1119 = vpack.c.b16 %v813, %v804
    %v1120 = vpack.c.b16 %v814, %v805
    %v1121 = vpack.c.b16 %v815, %v806
    %v1122 = vpack.c.b16 %v816, %v807
    %v1123 = vpack.c.b16 %v817, %v808
    %v1124 = vpack.c.b16 %v818, %v809
    %v1125 = vpack.c.b16 %v819, %v810
    %v1126 = vpack.c.b16 %v820, %v811
    %v1127 = vpack.c.b16 %v830, %v821
    %v1128 = vpack.c.b16 %v831, %v822
    %v1129 = vpack.c.b16 %v832, %v823
    %v1130 = vpack.c.b16 %v833, %v824
    %v1131 = vpack.c.b16 %v834, %v825
    %v1132 = vpack.c.b16 %v835, %v826
    %v1133 = vpack.c.b16 %v836, %v827
    %v1134 = vpack.c.b16 %v837, %v828
    %v1135 = vpack.c.b16 %v838, %v829
    %v1136 = vpack.c.b16 %v848, %v839
    %v1137 = vpack.c.b16 %v849, %v840
    %v1138 = vpack.c.b16 %v850, %v841
    %v1139 = vpack.c.b16 %v851, %v842
    %v1140 = vpack.c.b16 %v852, %v843
    %v1141 = vpack.c.b16 %v853, %v844
    %v1142 = vpack.c.b16 %v854, %v845
    %v1143 = vpack.c.b16 %v855, %v846
    %v1144 = vpack.c.b16 %v856, %v847
    %v1145 = vpack.c.b16 %v866, %v857
    %v1146 = vpack.c.b16 %v867, %v858
    %v1147 = vpack.c.b16 %v868, %v859
    %v1148 = vpack.c.b16 %v869, %v860
    %v1149 = vpack.c.b16 %v870, %v861
    %v1150 = vpack.c.b16 %v871, %v862
    %v1151 = vpack.c.b16 %v872, %v863
    %v1152 = vpack.c.b16 %v873, %v864
    %v1153 = vpack.c.b16 %v874, %v865
    %v1154 = vpack.c.b16 %v884, %v875
    %v1155 = vpack.c.b16 %v885, %v876
    %v1156 = vpack.c.b16 %v886, %v877
    %v1157 = vpack.c.b16 %v887, %v878
    %v1158 = vpack.c.b16 %v888, %v879
    %v1159 = vpack.c.b16 %v889, %v880
    %v1160 = vpack.c.b16 %v890, %v881
    %v1161 = vpack.c.b16 %v891, %v882
    %v1162 = vpack.c.b16 %v892, %v883
    %v1163 = vpack.c.b16 %v902, %v893
    %v1164 = vpack.c.b16 %v903, %v894
    %v1165 = vpack.c.b16 %v904, %v895
    %v1166 = vpack.c.b16 %v905, %v896
    %v1167 = vpack.c.b16 %v906, %v897
    %v1168 = vpack.c.b16 %v907, %v898
    %v1169 = vpack.c.b16 %v908, %v899
    %v1170 = vpack.c.b16 %v909, %v900
    %v1171 = vpack.c.b16 %v910, %v901
    %v1172 = vpack.c.b16 %v920, %v911
    %v1173 = vpack.c.b16 %v921, %v912
    %v1174 = vpack.c.b16 %v922, %v913
    %v1175 = vpack.c.b16 %v923, %v914
    %v1176 = vpack.c.b16 %v924, %v915
    %v1177 = vpack.c.b16 %v925, %v916
    %v1178 = vpack.c.b16 %v926, %v917
    %v1179 = vpack.c.b16 %v927, %v918
    %v1180 = vpack.c.b16 %v928, %v919
    %v1181 = vpack.c.b16 %v938, %v929
    %v1182 = vpack.c.b16 %v939, %v930
    %v1183 = vpack.c.b16 %v940, %v931
    %v1184 = vpack.c.b16 %v941, %v932
    %v1185 = vpack.c.b16 %v942, %v933
    %v1186 = vpack.c.b16 %v943, %v934
    %v1187 = vpack.c.b16 %v944, %v935
    %v1188 = vpack.c.b16 %v945, %v936
    %v1189 = vpack.c.b16 %v946, %v937
    %v1190 = vpack.c.b16 %v956, %v947
    %v1191 = vpack.c.b16 %v957, %v948
    %v1192 = vpack.c.b16 %v958, %v949
    %v1193 = vpack.c.b16 %v959, %v950
    %v1194 = vpack.c.b16 %v960, %v951
    %v1195 = vpack.c.b16 %v961, %v952
    %v1196 = vpack.c.b16 %v962, %v953
    %v1197 = vpack.c.b16 %v963, %v954
    %v1198 = vpack.c.b16 %v964, %v955
    %v1199 = vpack.c.b16 %v974, %v965
    %v1200 = vpack.c.b16 %v975, %v966
    %v1201 = vpack.c.b16 %v976, %v967
    %v1202 = vpack.c.b16 %v977, %v968
    %v1203 = vpack.c.b16 %v978, %v969
    %v1204 = vpack.c.b16 %v979, %v970
    %v1205 = vpack.c.b16 %v980, %v971
    %v1206 = vpack.c.b16 %v981, %v972
    %v1207 = vpack.c.b16 %v982, %v973
    %v1208 = vpack.c.b16 %v992, %v983
    %v1209 = vpack.c.b16 %v993, %v984
    %v1210 = vpack.c.b16 %v994, %v985
    %v1211 = vpack.c.b16 %v995, %v986
    %v1212 = vpack.c.b16 %v996, %v987
    %v1213 = vpack.c.b16 %v997, %v988
    %v1214 = vpack.c.b16 %v998, %v989
    %v1215 = vpack.c.b16 %v999, %v990
    %v1216 = vpack.c.b16 %v1000, %v991
    %1433 = vmatpush.bf16.msra.mxu0 %v1064
    %1434 = vmatpush.bf16.msra.mxu0 %v1055
    %1435 = vmatpush.bf16.msra.mxu0 %v1046
    %1436 = vmatpush.bf16.msra.mxu0 %v1037
    %1437 = vmatpush.bf16.msra.mxu0 %v1028
    %1438 = vmatpush.bf16.msra.mxu0 %v1019
    %1439 = vmatpush.bf16.msra.mxu0 %v1010
    %1440 = vmatpush.bf16.msra.mxu0 %v1001
    %1441 = vmatmul.bf16.gmra.mxu0 %v86
    %v1442 = vpop.f32.mrf.mxu0
    %v1443 = vadd.f32 0.0, %v1442
    %v1444 = vpop.f32.mrf.mxu0
    %v1445 = vadd.f32 0.0, %v1444
    %1446 = vdwg.mxu0
    %1447 = vmatpush.bf16.msra.mxu0 %v1136
    %1448 = vmatpush.bf16.msra.mxu0 %v1127
    %1449 = vmatpush.bf16.msra.mxu0 %v1118
    %1450 = vmatpush.bf16.msra.mxu0 %v1109
    %1451 = vmatpush.bf16.msra.mxu0 %v1100
    %1452 = vmatpush.bf16.msra.mxu0 %v1091
    %1453 = vmatpush.bf16.msra.mxu0 %v1082
    %1454 = vmatpush.bf16.msra.mxu0 %v1073
    %1455 = vmatmul.bf16.gmra.mxu0 %v87
    %v1456 = vpop.f32.mrf.mxu0
    %v1457 = vadd.f32 %v1443, %v1456
    %v1458 = vpop.f32.mrf.mxu0
    %v1459 = vadd.f32 %v1445, %v1458
    %1460 = vdwg.mxu0
    %1461 = vmatpush.bf16.msra.mxu0 %v1208
    %1462 = vmatpush.bf16.msra.mxu0 %v1199
    %1463 = vmatpush.bf16.msra.mxu0 %v1190
    %1464 = vmatpush.bf16.msra.mxu0 %v1181
    %1465 = vmatpush.bf16.msra.mxu0 %v1172
    %1466 = vmatpush.bf16.msra.mxu0 %v1163
    %1467 = vmatpush.bf16.msra.mxu0 %v1154
    %1468 = vmatpush.bf16.msra.mxu0 %v1145
    %1469 = vmatmul.bf16.gmra.mxu0 %v88
    %v1470 = vpop.f32.mrf.mxu0
    %v1471 = vadd.f32 %v1457, %v1470
    %v1472 = vpop.f32.mrf.mxu0
    %v1473 = vadd.f32 %v1459, %v1472
    %1474 = vdwg.mxu0
    %1475 = vmatpush.bf16.msra.mxu0 %v1065
    %1476 = vmatpush.bf16.msra.mxu0 %v1056
    %1477 = vmatpush.bf16.msra.mxu0 %v1047
    %1478 = vmatpush.bf16.msra.mxu0 %v1038
    %1479 = vmatpush.bf16.msra.mxu0 %v1029
    %1480 = vmatpush.bf16.msra.mxu0 %v1020
    %1481 = vmatpush.bf16.msra.mxu0 %v1011
    %1482 = vmatpush.bf16.msra.mxu0 %v1002
    %1483 = vmatmul.bf16.gmra.mxu0 %v86
    %v1484 = vpop.f32.mrf.mxu0
    %v1485 = vadd.f32 0.0, %v1484
    %v1486 = vpop.f32.mrf.mxu0
    %v1487 = vadd.f32 0.0, %v1486
    %1488 = vdwg.mxu0
    %1489 = vmatpush.bf16.msra.mxu0 %v1137
    %1490 = vmatpush.bf16.msra.mxu0 %v1128
    %1491 = vmatpush.bf16.msra.mxu0 %v1119
    %1492 = vmatpush.bf16.msra.mxu0 %v1110
    %1493 = vmatpush.bf16.msra.mxu0 %v1101
    %1494 = vmatpush.bf16.msra.mxu0 %v1092
    %1495 = vmatpush.bf16.msra.mxu0 %v1083
    %1496 = vmatpush.bf16.msra.mxu0 %v1074
    %1497 = vmatmul.bf16.gmra.mxu0 %v87
    %v1498 = vpop.f32.mrf.mxu0
    %v1499 = vadd.f32 %v1485, %v1498
    %v1500 = vpop.f32.mrf.mxu0
    %v1501 = vadd.f32 %v1487, %v1500
    %1502 = vdwg.mxu0
    %1503 = vmatpush.bf16.msra.mxu0 %v1209
    %1504 = vmatpush.bf16.msra.mxu0 %v1200
    %1505 = vmatpush.bf16.msra.mxu0 %v1191
    %1506 = vmatpush.bf16.msra.mxu0 %v1182
    %1507 = vmatpush.bf16.msra.mxu0 %v1173
    %1508 = vmatpush.bf16.msra.mxu0 %v1164
    %1509 = vmatpush.bf16.msra.mxu0 %v1155
    %1510 = vmatpush.bf16.msra.mxu0 %v1146
    %1511 = vmatmul.bf16.gmra.mxu0 %v88
    %v1512 = vpop.f32.mrf.mxu0
    %v1513 = vadd.f32 %v1499, %v1512
    %v1514 = vpop.f32.mrf.mxu0
    %v1515 = vadd.f32 %v1501, %v1514
    %1516 = vdwg.mxu0
    %1517 = vmatpush.bf16.msra.mxu0 %v1066
    %1518 = vmatpush.bf16.msra.mxu0 %v1057
    %1519 = vmatpush.bf16.msra.mxu0 %v1048
    %1520 = vmatpush.bf16.msra.mxu0 %v1039
    %1521 = vmatpush.bf16.msra.mxu0 %v1030
    %1522 = vmatpush.bf16.msra.mxu0 %v1021
    %1523 = vmatpush.bf16.msra.mxu0 %v1012
    %1524 = vmatpush.bf16.msra.mxu0 %v1003
    %1525 = vmatmul.bf16.gmra.mxu0 %v86
    %v1526 = vpop.f32.mrf.mxu0
    %v1527 = vadd.f32 0.0, %v1526
    %v1528 = vpop.f32.mrf.mxu0
    %v1529 = vadd.f32 0.0, %v1528
    %1530 = vdwg.mxu0
    %1531 = vmatpush.bf16.msra.mxu0 %v1138
    %1532 = vmatpush.bf16.msra.mxu0 %v1129
    %1533 = vmatpush.bf16.msra.mxu0 %v1120
    %1534 = vmatpush.bf16.msra.mxu0 %v1111
    %1535 = vmatpush.bf16.msra.mxu0 %v1102
    %1536 = vmatpush.bf16.msra.mxu0 %v1093
    %1537 = vmatpush.bf16.msra.mxu0 %v1084
    %1538 = vmatpush.bf16.msra.mxu0 %v1075
    %1539 = vmatmul.bf16.gmra.mxu0 %v87
    %v1540 = vpop.f32.mrf.mxu0
    %v1541 = vadd.f32 %v1527, %v1540
    %v1542 = vpop.f32.mrf.mxu0
    %v1543 = vadd.f32 %v1529, %v1542
    %1544 = vdwg.mxu0
    %1545 = vmatpush.bf16.msra.mxu0 %v1210
    %1546 = vmatpush.bf16.msra.mxu0 %v1201
    %1547 = vmatpush.bf16.msra.mxu0 %v1192
    %1548 = vmatpush.bf16.msra.mxu0 %v1183
    %1549 = vmatpush.bf16.msra.mxu0 %v1174
    %1550 = vmatpush.bf16.msra.mxu0 %v1165
    %1551 = vmatpush.bf16.msra.mxu0 %v1156
    %1552 = vmatpush.bf16.msra.mxu0 %v1147
    %1553 = vmatmul.bf16.gmra.mxu0 %v88
    %v1554 = vpop.f32.mrf.mxu0
    %v1555 = vadd.f32 %v1541, %v1554
    %v1556 = vpop.f32.mrf.mxu0
    %v1557 = vadd.f32 %v1543, %v1556
    %1558 = vdwg.mxu0
    %1559 = vmatpush.bf16.msra.mxu0 %v1067
    %1560 = vmatpush.bf16.msra.mxu0 %v1058
    %1561 = vmatpush.bf16.msra.mxu0 %v1049
    %1562 = vmatpush.bf16.msra.mxu0 %v1040
    %1563 = vmatpush.bf16.msra.mxu0 %v1031
    %1564 = vmatpush.bf16.msra.mxu0 %v1022
    %1565 = vmatpush.bf16.msra.mxu0 %v1013
    %1566 = vmatpush.bf16.msra.mxu0 %v1004
    %1567 = vmatmul.bf16.gmra.mxu0 %v86
    %v1568 = vpop.f32.mrf.mxu0
    %v1569 = vadd.f32 0.0, %v1568
    %v1570 = vpop.f32.mrf.mxu0
    %v1571 = vadd.f32 0.0, %v1570
    %1572 = vdwg.mxu0
    %1573 = vmatpush.bf16.msra.mxu0 %v1139
    %1574 = vmatpush.bf16.msra.mxu0 %v1130
    %1575 = vmatpush.bf16.msra.mxu0 %v1121
    %1576 = vmatpush.bf16.msra.mxu0 %v1112
    %1577 = vmatpush.bf16.msra.mxu0 %v1103
    %1578 = vmatpush.bf16.msra.mxu0 %v1094
    %1579 = vmatpush.bf16.msra.mxu0 %v1085
    %1580 = vmatpush.bf16.msra.mxu0 %v1076
    %1581 = vmatmul.bf16.gmra.mxu0 %v87
    %v1582 = vpop.f32.mrf.mxu0
    %v1583 = vadd.f32 %v1569, %v1582
    %v1584 = vpop.f32.mrf.mxu0
    %v1585 = vadd.f32 %v1571, %v1584
    %1586 = vdwg.mxu0
    %1587 = vmatpush.bf16.msra.mxu0 %v1211
    %1588 = vmatpush.bf16.msra.mxu0 %v1202
    %1589 = vmatpush.bf16.msra.mxu0 %v1193
    %1590 = vmatpush.bf16.msra.mxu0 %v1184
    %1591 = vmatpush.bf16.msra.mxu0 %v1175
    %1592 = vmatpush.bf16.msra.mxu0 %v1166
    %1593 = vmatpush.bf16.msra.mxu0 %v1157
    %1594 = vmatpush.bf16.msra.mxu0 %v1148
    %1595 = vmatmul.bf16.gmra.mxu0 %v88
    %v1596 = vpop.f32.mrf.mxu0
    %v1597 = vadd.f32 %v1583, %v1596
    %v1598 = vpop.f32.mrf.mxu0
    %v1599 = vadd.f32 %v1585, %v1598
    %1600 = vdwg.mxu0
    %1601 = vmatpush.bf16.msra.mxu0 %v1068
    %1602 = vmatpush.bf16.msra.mxu0 %v1059
    %1603 = vmatpush.bf16.msra.mxu0 %v1050
    %1604 = vmatpush.bf16.msra.mxu0 %v1041
    %1605 = vmatpush.bf16.msra.mxu0 %v1032
    %1606 = vmatpush.bf16.msra.mxu0 %v1023
    %1607 = vmatpush.bf16.msra.mxu0 %v1014
    %1608 = vmatpush.bf16.msra.mxu0 %v1005
    %1609 = vmatmul.bf16.gmra.mxu0 %v86
    %v1610 = vpop.f32.mrf.mxu0
    %v1611 = vadd.f32 0.0, %v1610
    %v1612 = vpop.f32.mrf.mxu0
    %v1613 = vadd.f32 0.0, %v1612
    %1614 = vdwg.mxu0
    %1615 = vmatpush.bf16.msra.mxu0 %v1140
    %1616 = vmatpush.bf16.msra.mxu0 %v1131
    %1617 = vmatpush.bf16.msra.mxu0 %v1122
    %1618 = vmatpush.bf16.msra.mxu0 %v1113
    %1619 = vmatpush.bf16.msra.mxu0 %v1104
    %1620 = vmatpush.bf16.msra.mxu0 %v1095
    %1621 = vmatpush.bf16.msra.mxu0 %v1086
    %1622 = vmatpush.bf16.msra.mxu0 %v1077
    %1623 = vmatmul.bf16.gmra.mxu0 %v87
    %v1624 = vpop.f32.mrf.mxu0
    %v1625 = vadd.f32 %v1611, %v1624
    %v1626 = vpop.f32.mrf.mxu0
    %v1627 = vadd.f32 %v1613, %v1626
    %1628 = vdwg.mxu0
    %1629 = vmatpush.bf16.msra.mxu0 %v1212
    %1630 = vmatpush.bf16.msra.mxu0 %v1203
    %1631 = vmatpush.bf16.msra.mxu0 %v1194
    %1632 = vmatpush.bf16.msra.mxu0 %v1185
    %1633 = vmatpush.bf16.msra.mxu0 %v1176
    %1634 = vmatpush.bf16.msra.mxu0 %v1167
    %1635 = vmatpush.bf16.msra.mxu0 %v1158
    %1636 = vmatpush.bf16.msra.mxu0 %v1149
    %1637 = vmatmul.bf16.gmra.mxu0 %v88
    %v1638 = vpop.f32.mrf.mxu0
    %v1639 = vadd.f32 %v1625, %v1638
    %v1640 = vpop.f32.mrf.mxu0
    %v1641 = vadd.f32 %v1627, %v1640
    %1642 = vdwg.mxu0
    %1643 = vmatpush.bf16.msra.mxu0 %v1069
    %1644 = vmatpush.bf16.msra.mxu0 %v1060
    %1645 = vmatpush.bf16.msra.mxu0 %v1051
    %1646 = vmatpush.bf16.msra.mxu0 %v1042
    %1647 = vmatpush.bf16.msra.mxu0 %v1033
    %1648 = vmatpush.bf16.msra.mxu0 %v1024
    %1649 = vmatpush.bf16.msra.mxu0 %v1015
    %1650 = vmatpush.bf16.msra.mxu0 %v1006
    %1651 = vmatmul.bf16.gmra.mxu0 %v86
    %v1652 = vpop.f32.mrf.mxu0
    %v1653 = vadd.f32 0.0, %v1652
    %v1654 = vpop.f32.mrf.mxu0
    %v1655 = vadd.f32 0.0, %v1654
    %1656 = vdwg.mxu0
    %1657 = vmatpush.bf16.msra.mxu0 %v1141
    %1658 = vmatpush.bf16.msra.mxu0 %v1132
    %1659 = vmatpush.bf16.msra.mxu0 %v1123
    %1660 = vmatpush.bf16.msra.mxu0 %v1114
    %1661 = vmatpush.bf16.msra.mxu0 %v1105
    %1662 = vmatpush.bf16.msra.mxu0 %v1096
    %1663 = vmatpush.bf16.msra.mxu0 %v1087
    %1664 = vmatpush.bf16.msra.mxu0 %v1078
    %1665 = vmatmul.bf16.gmra.mxu0 %v87
    %v1666 = vpop.f32.mrf.mxu0
    %v1667 = vadd.f32 %v1653, %v1666
    %v1668 = vpop.f32.mrf.mxu0
    %v1669 = vadd.f32 %v1655, %v1668
    %1670 = vdwg.mxu0
    %1671 = vmatpush.bf16.msra.mxu0 %v1213
    %1672 = vmatpush.bf16.msra.mxu0 %v1204
    %1673 = vmatpush.bf16.msra.mxu0 %v1195
    %1674 = vmatpush.bf16.msra.mxu0 %v1186
    %1675 = vmatpush.bf16.msra.mxu0 %v1177
    %1676 = vmatpush.bf16.msra.mxu0 %v1168
    %1677 = vmatpush.bf16.msra.mxu0 %v1159
    %1678 = vmatpush.bf16.msra.mxu0 %v1150
    %1679 = vmatmul.bf16.gmra.mxu0 %v88
    %v1680 = vpop.f32.mrf.mxu0
    %v1681 = vadd.f32 %v1667, %v1680
    %v1682 = vpop.f32.mrf.mxu0
    %v1683 = vadd.f32 %v1669, %v1682
    %1684 = vdwg.mxu0
    %1685 = vmatpush.bf16.msra.mxu0 %v1070
    %1686 = vmatpush.bf16.msra.mxu0 %v1061
    %1687 = vmatpush.bf16.msra.mxu0 %v1052
    %1688 = vmatpush.bf16.msra.mxu0 %v1043
    %1689 = vmatpush.bf16.msra.mxu0 %v1034
    %1690 = vmatpush.bf16.msra.mxu0 %v1025
    %1691 = vmatpush.bf16.msra.mxu0 %v1016
    %1692 = vmatpush.bf16.msra.mxu0 %v1007
    %1693 = vmatmul.bf16.gmra.mxu0 %v86
    %v1694 = vpop.f32.mrf.mxu0
    %v1695 = vadd.f32 0.0, %v1694
    %v1696 = vpop.f32.mrf.mxu0
    %v1697 = vadd.f32 0.0, %v1696
    %1698 = vdwg.mxu0
    %1699 = vmatpush.bf16.msra.mxu0 %v1142
    %1700 = vmatpush.bf16.msra.mxu0 %v1133
    %1701 = vmatpush.bf16.msra.mxu0 %v1124
    %1702 = vmatpush.bf16.msra.mxu0 %v1115
    %1703 = vmatpush.bf16.msra.mxu0 %v1106
    %1704 = vmatpush.bf16.msra.mxu0 %v1097
    %1705 = vmatpush.bf16.msra.mxu0 %v1088
    %1706 = vmatpush.bf16.msra.mxu0 %v1079
    %1707 = vmatmul.bf16.gmra.mxu0 %v87
    %v1708 = vpop.f32.mrf.mxu0
    %v1709 = vadd.f32 %v1695, %v1708
    %v1710 = vpop.f32.mrf.mxu0
    %v1711 = vadd.f32 %v1697, %v1710
    %1712 = vdwg.mxu0
    %1713 = vmatpush.bf16.msra.mxu0 %v1214
    %1714 = vmatpush.bf16.msra.mxu0 %v1205
    %1715 = vmatpush.bf16.msra.mxu0 %v1196
    %1716 = vmatpush.bf16.msra.mxu0 %v1187
    %1717 = vmatpush.bf16.msra.mxu0 %v1178
    %1718 = vmatpush.bf16.msra.mxu0 %v1169
    %1719 = vmatpush.bf16.msra.mxu0 %v1160
    %1720 = vmatpush.bf16.msra.mxu0 %v1151
    %1721 = vmatmul.bf16.gmra.mxu0 %v88
    %v1722 = vpop.f32.mrf.mxu0
    %v1723 = vadd.f32 %v1709, %v1722
    %v1724 = vpop.f32.mrf.mxu0
    %v1725 = vadd.f32 %v1711, %v1724
    %1726 = vdwg.mxu0
    %1727 = vmatpush.bf16.msra.mxu0 %v1071
    %1728 = vmatpush.bf16.msra.mxu0 %v1062
    %1729 = vmatpush.bf16.msra.mxu0 %v1053
    %1730 = vmatpush.bf16.msra.mxu0 %v1044
    %1731 = vmatpush.bf16.msra.mxu0 %v1035
    %1732 = vmatpush.bf16.msra.mxu0 %v1026
    %1733 = vmatpush.bf16.msra.mxu0 %v1017
    %1734 = vmatpush.bf16.msra.mxu0 %v1008
    %1735 = vmatmul.bf16.gmra.mxu0 %v86
    %v1736 = vpop.f32.mrf.mxu0
    %v1737 = vadd.f32 0.0, %v1736
    %v1738 = vpop.f32.mrf.mxu0
    %v1739 = vadd.f32 0.0, %v1738
    %1740 = vdwg.mxu0
    %1741 = vmatpush.bf16.msra.mxu0 %v1143
    %1742 = vmatpush.bf16.msra.mxu0 %v1134
    %1743 = vmatpush.bf16.msra.mxu0 %v1125
    %1744 = vmatpush.bf16.msra.mxu0 %v1116
    %1745 = vmatpush.bf16.msra.mxu0 %v1107
    %1746 = vmatpush.bf16.msra.mxu0 %v1098
    %1747 = vmatpush.bf16.msra.mxu0 %v1089
    %1748 = vmatpush.bf16.msra.mxu0 %v1080
    %1749 = vmatmul.bf16.gmra.mxu0 %v87
    %v1750 = vpop.f32.mrf.mxu0
    %v1751 = vadd.f32 %v1737, %v1750
    %v1752 = vpop.f32.mrf.mxu0
    %v1753 = vadd.f32 %v1739, %v1752
    %1754 = vdwg.mxu0
    %1755 = vmatpush.bf16.msra.mxu0 %v1215
    %1756 = vmatpush.bf16.msra.mxu0 %v1206
    %1757 = vmatpush.bf16.msra.mxu0 %v1197
    %1758 = vmatpush.bf16.msra.mxu0 %v1188
    %1759 = vmatpush.bf16.msra.mxu0 %v1179
    %1760 = vmatpush.bf16.msra.mxu0 %v1170
    %1761 = vmatpush.bf16.msra.mxu0 %v1161
    %1762 = vmatpush.bf16.msra.mxu0 %v1152
    %1763 = vmatmul.bf16.gmra.mxu0 %v88
    %v1764 = vpop.f32.mrf.mxu0
    %v1765 = vadd.f32 %v1751, %v1764
    %v1766 = vpop.f32.mrf.mxu0
    %v1767 = vadd.f32 %v1753, %v1766
    %1768 = vdwg.mxu0
    %1769 = vmatpush.bf16.msra.mxu0 %v1072
    %1770 = vmatpush.bf16.msra.mxu0 %v1063
    %1771 = vmatpush.bf16.msra.mxu0 %v1054
    %1772 = vmatpush.bf16.msra.mxu0 %v1045
    %1773 = vmatpush.bf16.msra.mxu0 %v1036
    %1774 = vmatpush.bf16.msra.mxu0 %v1027
    %1775 = vmatpush.bf16.msra.mxu0 %v1018
    %1776 = vmatpush.bf16.msra.mxu0 %v1009
    %1777 = vmatmul.bf16.gmra.mxu0 %v86
    %v1778 = vpop.f32.mrf.mxu0
    %v1779 = vadd.f32 0.0, %v1778
    %v1780 = vpop.f32.mrf.mxu0
    %v1781 = vadd.f32 0.0, %v1780
    %1782 = vdwg.mxu0
    %1783 = vmatpush.bf16.msra.mxu0 %v1144
    %1784 = vmatpush.bf16.msra.mxu0 %v1135
    %1785 = vmatpush.bf16.msra.mxu0 %v1126
    %1786 = vmatpush.bf16.msra.mxu0 %v1117
    %1787 = vmatpush.bf16.msra.mxu0 %v1108
    %1788 = vmatpush.bf16.msra.mxu0 %v1099
    %1789 = vmatpush.bf16.msra.mxu0 %v1090
    %1790 = vmatpush.bf16.msra.mxu0 %v1081
    %1791 = vmatmul.bf16.gmra.mxu0 %v87
    %v1792 = vpop.f32.mrf.mxu0
    %v1793 = vadd.f32 %v1779, %v1792
    %v1794 = vpop.f32.mrf.mxu0
    %v1795 = vadd.f32 %v1781, %v1794
    %1796 = vdwg.mxu0
    %1797 = vmatpush.bf16.msra.mxu0 %v1216
    %1798 = vmatpush.bf16.msra.mxu0 %v1207
    %1799 = vmatpush.bf16.msra.mxu0 %v1198
    %1800 = vmatpush.bf16.msra.mxu0 %v1189
    %1801 = vmatpush.bf16.msra.mxu0 %v1180
    %1802 = vmatpush.bf16.msra.mxu0 %v1171
    %1803 = vmatpush.bf16.msra.mxu0 %v1162
    %1804 = vmatpush.bf16.msra.mxu0 %v1153
    %1805 = vmatmul.bf16.gmra.mxu0 %v88
    %v1806 = vpop.f32.mrf.mxu0
    %v1807 = vadd.f32 %v1793, %v1806
    %v1808 = vpop.f32.mrf.mxu0
    %v1809 = vadd.f32 %v1795, %v1808
    %1810 = vdwg.mxu0
    %v1811 = vpack.c.bf16 %v1513, %v1471
    %v1812 = vpack.c.bf16 %v1597, %v1555
    %v1813 = vpack.c.bf16 %v1681, %v1639
    %v1814 = vpack.c.bf16 %v1765, %v1723
    %v1815 = vpack.c.bf16 %v1807, %v1807
    %v1816 = vpack.c.bf16 %v1515, %v1473
    %v1817 = vpack.c.bf16 %v1599, %v1557
    %v1818 = vpack.c.bf16 %v1683, %v1641
    %v1819 = vpack.c.bf16 %v1767, %v1725
    %v1820 = vpack.c.bf16 %v1809, %v1809
    %v1821 = vlaneseq
    %v1822 = vshrl.u32 %v1821, 7
    %v1823 = vlaneseq
    %v1824 = vand.u32 %v1823, 127
    %vm1825 = vcmp.le.s32.totalorder %v1824, %v1822
    %v1827 = vunpack.c.h.b16 %v1812
    %v1828 = vpack.c.b16 %v1827, %v1827
    %vm1829 = vcmask 523264
    %v1831 = vsel %vm1829, %v1811, 0
    %v1834 = vsel %vm1829, %v1828, 0
    %1836 = vmatpush.bf16.xpose.msra.mxu0 0
    %1837 = vmatpush.bf16.xpose.msra.mxu0 0
    %1838 = vmatpush.bf16.xpose.msra.mxu0 0
    %1839 = vmatpush.bf16.xpose.msra.mxu0 0
    %1840 = vmatpush.bf16.xpose.msra.mxu0 0
    %1841 = vmatpush.bf16.xpose.msra.mxu0 0
    %1842 = vmatpush.bf16.xpose.msra.mxu0 0
    %1843 = vmatpush.bf16.xpose.msra.mxu0 %v1834
    %1844 = vmatmul.bf16.gmra.mxu0 %v1831
    %v1845 = vpop.f32.mrf.mxu0
    %v1846 = vadd.f32 0.0, %v1845
    %v1847 = vpop.f32.mrf.mxu0
    %1848 = vdwg.mxu0
    %v1849 = vsel %vm1825, %v1846, -inf
    %vm1850 = vcmask 64512
    %v1851 = vsel %vm1850, %v1849, -inf
    %1852 = vmax.xlane.f32.xlu0 %v1851
    %v1853 = vpop.xlane.xlu0 %1852
    %v1854 = vsub.f32 %v1849, %v1853
    %v1855 = vmul.f32 %v1854, 1.442695
    %v1856 = vpow.pop %v1855
    %v1857 = vsel %vm1850, %v1856, 0.0
    %1858 = vadd.xlane.f32.xlu0 %v1857
    %v1859 = vpop.xlane.xlu0 %1858
    %v1860 = vrcp.pop %v1859
    %v1861 = vmul.f32 %v1856, %v1860
    %v1862 = vpack.c.bf16 %v1861, %v1861
    %v1864 = vsel %vm1850, %v1862, 0
    %vm1866 = vcmask 1043456
    %v1868 = vsel %vm1866, %v1814, 0
    %1870 = vmatpush.bf16.msra.mxu0 0
    %1871 = vmatpush.bf16.msra.mxu0 0
    %1872 = vmatpush.bf16.msra.mxu0 0
    %1873 = vmatpush.bf16.msra.mxu0 0
    %1874 = vmatpush.bf16.msra.mxu0 0
    %1875 = vmatpush.bf16.msra.mxu0 0
    %1876 = vmatpush.bf16.msra.mxu0 0
    %1877 = vmatpush.bf16.msra.mxu0 %v1868
    %1878 = vmatmul.bf16.gmra.mxu0 %v1864
    %v1879 = vpop.f32.mrf.mxu0
    %v1880 = vadd.f32 0.0, %v1879
    %v1881 = vpop.f32.mrf.mxu0
    %1882 = vdwg.mxu0
    %1883 = vst.msk [vmem:[#allocation2] sm:$0xff] %vm1829, %v1880
    %v1885 = vunpack.c.l.b16 %v1811
    %v1886 = vpack.c.b16 %v1885, %v1885
    %1887 = vrot.lane.b32.xlu0 %v1886, 64
    %v1888 = vpop.permute.xlu0 %1887
    %1889 = vrot.lane.b32.xlu0 %v1828, 64
    %v1890 = vpop.permute.xlu0 %1889
    %v1892 = vsel %vm1829, %v1888, 0
    %v1895 = vsel %vm1829, %v1890, 0
    %1897 = vmatpush.bf16.xpose.msra.mxu0 0
    %1898 = vmatpush.bf16.xpose.msra.mxu0 0
    %1899 = vmatpush.bf16.xpose.msra.mxu0 0
    %1900 = vmatpush.bf16.xpose.msra.mxu0 0
    %1901 = vmatpush.bf16.xpose.msra.mxu0 0
    %1902 = vmatpush.bf16.xpose.msra.mxu0 0
    %1903 = vmatpush.bf16.xpose.msra.mxu0 0
    %1904 = vmatpush.bf16.xpose.msra.mxu0 %v1895
    %1905 = vmatmul.bf16.gmra.mxu0 %v1892
    %v1906 = vpop.f32.mrf.mxu0
    %v1907 = vadd.f32 0.0, %v1906
    %v1908 = vpop.f32.mrf.mxu0
    %1909 = vdwg.mxu0
    %v1910 = vsel %vm1825, %v1907, -inf
    %v1911 = vsel %vm1850, %v1910, -inf
    %1912 = vmax.xlane.f32.xlu0 %v1911
    %v1913 = vpop.xlane.xlu0 %1912
    %v1914 = vsub.f32 %v1910, %v1913
    %v1915 = vmul.f32 %v1914, 1.442695
    %v1916 = vpow.pop %v1915
    %v1917 = vsel %vm1850, %v1916, 0.0
    %1918 = vadd.xlane.f32.xlu0 %v1917
    %v1919 = vpop.xlane.xlu0 %1918
    %v1920 = vrcp.pop %v1919
    %v1921 = vmul.f32 %v1916, %v1920
    %v1922 = vpack.c.bf16 %v1921, %v1921
    %v1924 = vunpack.c.l.b16 %v1814
    %v1925 = vpack.c.b16 %v1924, %v1924
    %1926 = vrot.lane.b32.xlu0 %v1925, 64
    %v1927 = vpop.permute.xlu0 %1926
    %v1929 = vsel %vm1850, %v1922, 0
    %v1932 = vsel %vm1866, %v1927, 0
    %1934 = vmatpush.bf16.msra.mxu0 0
    %1935 = vmatpush.bf16.msra.mxu0 0
    %1936 = vmatpush.bf16.msra.mxu0 0
    %1937 = vmatpush.bf16.msra.mxu0 0
    %1938 = vmatpush.bf16.msra.mxu0 0
    %1939 = vmatpush.bf16.msra.mxu0 0
    %1940 = vmatpush.bf16.msra.mxu0 0
    %1941 = vmatpush.bf16.msra.mxu0 %v1932
    %1942 = vmatmul.bf16.gmra.mxu0 %v1929
    %v1943 = vpop.f32.mrf.mxu0
    %v1944 = vadd.f32 0.0, %v1943
    %v1945 = vpop.f32.mrf.mxu0
    %1946 = vdwg.mxu0
    %1948 = vrot.lane.b32.xlu0 %v1944, 64
    %v1949 = vpop.permute.xlu0 %1948
    %vm1951 = vcmask 1048064
    %1952 = vst.msk [vmem:[#allocation2] sm:$0xff] %vm1951, %v1949
    %v1953 = vunpack.c.h.b16 %v1811
    %v1954 = vpack.c.b16 %v1953, %v1953
    %v1956 = vsel %vm1829, %v1954, 0
    %v1959 = vsel %vm1829, %v1813, 0
    %1961 = vmatpush.bf16.xpose.msra.mxu0 0
    %1962 = vmatpush.bf16.xpose.msra.mxu0 0
    %1963 = vmatpush.bf16.xpose.msra.mxu0 0
    %1964 = vmatpush.bf16.xpose.msra.mxu0 0
    %1965 = vmatpush.bf16.xpose.msra.mxu0 0
    %1966 = vmatpush.bf16.xpose.msra.mxu0 0
    %1967 = vmatpush.bf16.xpose.msra.mxu0 0
    %1968 = vmatpush.bf16.xpose.msra.mxu0 %v1959
    %1969 = vmatmul.bf16.gmra.mxu0 %v1956
    %v1970 = vpop.f32.mrf.mxu0
    %v1971 = vadd.f32 0.0, %v1970
    %v1972 = vpop.f32.mrf.mxu0
    %1973 = vdwg.mxu0
    %v1974 = vsel %vm1825, %v1971, -inf
    %v1975 = vsel %vm1850, %v1974, -inf
    %1976 = vmax.xlane.f32.xlu0 %v1975
    %v1977 = vpop.xlane.xlu0 %1976
    %v1978 = vsub.f32 %v1974, %v1977
    %v1979 = vmul.f32 %v1978, 1.442695
    %v1980 = vpow.pop %v1979
    %v1981 = vsel %vm1850, %v1980, 0.0
    %1982 = vadd.xlane.f32.xlu0 %v1981
    %v1983 = vpop.xlane.xlu0 %1982
    %v1984 = vrcp.pop %v1983
    %v1985 = vmul.f32 %v1980, %v1984
    %v1986 = vpack.c.bf16 %v1985, %v1985
    %v1987 = vunpack.c.h.b16 %v1814
    %v1988 = vpack.c.b16 %v1987, %v1987
    %v1990 = vsel %vm1850, %v1986, 0
    %v1993 = vsel %vm1866, %v1988, 0
    %1995 = vmatpush.bf16.msra.mxu0 0
    %1996 = vmatpush.bf16.msra.mxu0 0
    %1997 = vmatpush.bf16.msra.mxu0 0
    %1998 = vmatpush.bf16.msra.mxu0 0
    %1999 = vmatpush.bf16.msra.mxu0 0
    %2000 = vmatpush.bf16.msra.mxu0 0
    %2001 = vmatpush.bf16.msra.mxu0 0
    %2002 = vmatpush.bf16.msra.mxu0 %v1993
    %2003 = vmatmul.bf16.gmra.mxu0 %v1990
    %v2004 = vpop.f32.mrf.mxu0
    %v2005 = vadd.f32 0.0, %v2004
    %v2006 = vpop.f32.mrf.mxu0
    %2007 = vdwg.mxu0
    %2008 = vst.msk [vmem:[#allocation2 + $0x8] sm:$0xff] %vm1829, %v2005
    %2009 = vrot.lane.b32.xlu0 %v1954, 64
    %v2010 = vpop.permute.xlu0 %2009
    %v2012 = vunpack.c.l.b16 %v1813
    %v2013 = vpack.c.b16 %v2012, %v2012
    %2014 = vrot.lane.b32.xlu0 %v2013, 64
    %v2015 = vpop.permute.xlu0 %2014
    %v2017 = vsel %vm1829, %v2010, 0
    %v2020 = vsel %vm1829, %v2015, 0
    %2022 = vmatpush.bf16.xpose.msra.mxu0 0
    %2023 = vmatpush.bf16.xpose.msra.mxu0 0
    %2024 = vmatpush.bf16.xpose.msra.mxu0 0
    %2025 = vmatpush.bf16.xpose.msra.mxu0 0
    %2026 = vmatpush.bf16.xpose.msra.mxu0 0
    %2027 = vmatpush.bf16.xpose.msra.mxu0 0
    %2028 = vmatpush.bf16.xpose.msra.mxu0 0
    %2029 = vmatpush.bf16.xpose.msra.mxu0 %v2020
    %2030 = vmatmul.bf16.gmra.mxu0 %v2017
    %v2031 = vpop.f32.mrf.mxu0
    %v2032 = vadd.f32 0.0, %v2031
    %v2033 = vpop.f32.mrf.mxu0
    %2034 = vdwg.mxu0
    %v2035 = vsel %vm1825, %v2032, -inf
    %v2036 = vsel %vm1850, %v2035, -inf
    %2037 = vmax.xlane.f32.xlu0 %v2036
    %v2038 = vpop.xlane.xlu0 %2037
    %v2039 = vsub.f32 %v2035, %v2038
    %v2040 = vmul.f32 %v2039, 1.442695
    %v2041 = vpow.pop %v2040
    %v2042 = vsel %vm1850, %v2041, 0.0
    %2043 = vadd.xlane.f32.xlu0 %v2042
    %v2044 = vpop.xlane.xlu0 %2043
    %v2045 = vrcp.pop %v2044
    %v2046 = vmul.f32 %v2041, %v2045
    %v2047 = vpack.c.bf16 %v2046, %v2046
    %2048 = vrot.lane.b32.xlu0 %v1988, 64
    %v2049 = vpop.permute.xlu0 %2048
    %v2051 = vsel %vm1850, %v2047, 0
    %v2054 = vsel %vm1866, %v2049, 0
    %2056 = vmatpush.bf16.msra.mxu0 0
    %2057 = vmatpush.bf16.msra.mxu0 0
    %2058 = vmatpush.bf16.msra.mxu0 0
    %2059 = vmatpush.bf16.msra.mxu0 0
    %2060 = vmatpush.bf16.msra.mxu0 0
    %2061 = vmatpush.bf16.msra.mxu0 0
    %2062 = vmatpush.bf16.msra.mxu0 0
    %2063 = vmatpush.bf16.msra.mxu0 %v2054
    %2064 = vmatmul.bf16.gmra.mxu0 %v2051
    %v2065 = vpop.f32.mrf.mxu0
    %v2066 = vadd.f32 0.0, %v2065
    %v2067 = vpop.f32.mrf.mxu0
    %2068 = vdwg.mxu0
    %2070 = vrot.lane.b32.xlu0 %v2066, 64
    %v2071 = vpop.permute.xlu0 %2070
    %2073 = vst.msk [vmem:[#allocation2 + $0x8] sm:$0xff] %vm1951, %v2071
    %v2074 = vunpack.c.h.b16 %v1813
    %v2075 = vpack.c.b16 %v2074, %v2074
    %v2077 = vsel %vm1829, %v1812, 0
    %v2080 = vsel %vm1829, %v2075, 0
    %2082 = vmatpush.bf16.xpose.msra.mxu0 0
    %2083 = vmatpush.bf16.xpose.msra.mxu0 0
    %2084 = vmatpush.bf16.xpose.msra.mxu0 0
    %2085 = vmatpush.bf16.xpose.msra.mxu0 0
    %2086 = vmatpush.bf16.xpose.msra.mxu0 0
    %2087 = vmatpush.bf16.xpose.msra.mxu0 0
    %2088 = vmatpush.bf16.xpose.msra.mxu0 0
    %2089 = vmatpush.bf16.xpose.msra.mxu0 %v2080
    %2090 = vmatmul.bf16.gmra.mxu0 %v2077
    %v2091 = vpop.f32.mrf.mxu0
    %v2092 = vadd.f32 0.0, %v2091
    %v2093 = vpop.f32.mrf.mxu0
    %2094 = vdwg.mxu0
    %v2095 = vsel %vm1825, %v2092, -inf
    %v2096 = vsel %vm1850, %v2095, -inf
    %2097 = vmax.xlane.f32.xlu0 %v2096
    %v2098 = vpop.xlane.xlu0 %2097
    %v2099 = vsub.f32 %v2095, %v2098
    %v2100 = vmul.f32 %v2099, 1.442695
    %v2101 = vpow.pop %v2100
    %v2102 = vsel %vm1850, %v2101, 0.0
    %2103 = vadd.xlane.f32.xlu0 %v2102
    %v2104 = vpop.xlane.xlu0 %2103
    %v2105 = vrcp.pop %v2104
    %v2106 = vmul.f32 %v2101, %v2105
    %v2107 = vpack.c.bf16 %v2106, %v2106
    %v2109 = vsel %vm1850, %v2107, 0
    %v2112 = vsel %vm1866, %v1815, 0
    %2114 = vmatpush.bf16.msra.mxu0 0
    %2115 = vmatpush.bf16.msra.mxu0 0
    %2116 = vmatpush.bf16.msra.mxu0 0
    %2117 = vmatpush.bf16.msra.mxu0 0
    %2118 = vmatpush.bf16.msra.mxu0 0
    %2119 = vmatpush.bf16.msra.mxu0 0
    %2120 = vmatpush.bf16.msra.mxu0 0
    %2121 = vmatpush.bf16.msra.mxu0 %v2112
    %2122 = vmatmul.bf16.gmra.mxu0 %v2109
    %v2123 = vpop.f32.mrf.mxu0
    %v2124 = vadd.f32 0.0, %v2123
    %v2125 = vpop.f32.mrf.mxu0
    %2126 = vdwg.mxu0
    %2127 = vst.msk [vmem:[#allocation2 + $0x10] sm:$0xff] %vm1829, %v2124
    %v2128 = vunpack.c.l.b16 %v1812
    %v2129 = vpack.c.b16 %v2128, %v2128
    %2130 = vrot.lane.b32.xlu0 %v2129, 64
    %v2131 = vpop.permute.xlu0 %2130
    %2132 = vrot.lane.b32.xlu0 %v2075, 64
    %v2133 = vpop.permute.xlu0 %2132
    %v2135 = vsel %vm1829, %v2131, 0
    %v2138 = vsel %vm1829, %v2133, 0
    %2140 = vmatpush.bf16.xpose.msra.mxu0 0
    %2141 = vmatpush.bf16.xpose.msra.mxu0 0
    %2142 = vmatpush.bf16.xpose.msra.mxu0 0
    %2143 = vmatpush.bf16.xpose.msra.mxu0 0
    %2144 = vmatpush.bf16.xpose.msra.mxu0 0
    %2145 = vmatpush.bf16.xpose.msra.mxu0 0
    %2146 = vmatpush.bf16.xpose.msra.mxu0 0
    %2147 = vmatpush.bf16.xpose.msra.mxu0 %v2138
    %2148 = vmatmul.bf16.gmra.mxu0 %v2135
    %v2149 = vpop.f32.mrf.mxu0
    %v2150 = vadd.f32 0.0, %v2149
    %v2151 = vpop.f32.mrf.mxu0
    %2152 = vdwg.mxu0
    %v2153 = vsel %vm1825, %v2150, -inf
    %v2154 = vsel %vm1850, %v2153, -inf
    %2155 = vmax.xlane.f32.xlu0 %v2154
    %v2156 = vpop.xlane.xlu0 %2155
    %v2157 = vsub.f32 %v2153, %v2156
    %v2158 = vmul.f32 %v2157, 1.442695
    %v2159 = vpow.pop %v2158
    %v2160 = vsel %vm1850, %v2159, 0.0
    %2161 = vadd.xlane.f32.xlu0 %v2160
    %v2162 = vpop.xlane.xlu0 %2161
    %v2163 = vrcp.pop %v2162
    %v2164 = vmul.f32 %v2159, %v2163
    %v2165 = vpack.c.bf16 %v2164, %v2164
    %v2167 = vunpack.c.l.b16 %v1815
    %v2168 = vpack.c.b16 %v2167, %v2167
    %2169 = vrot.lane.b32.xlu0 %v2168, 64
    %v2170 = vpop.permute.xlu0 %2169
    %v2172 = vsel %vm1850, %v2165, 0
    %v2175 = vsel %vm1866, %v2170, 0
    %2177 = vmatpush.bf16.msra.mxu0 0
    %2178 = vmatpush.bf16.msra.mxu0 0
    %2179 = vmatpush.bf16.msra.mxu0 0
    %2180 = vmatpush.bf16.msra.mxu0 0
    %2181 = vmatpush.bf16.msra.mxu0 0
    %2182 = vmatpush.bf16.msra.mxu0 0
    %2183 = vmatpush.bf16.msra.mxu0 0
    %2184 = vmatpush.bf16.msra.mxu0 %v2175
    %2185 = vmatmul.bf16.gmra.mxu0 %v2172
    %v2186 = vpop.f32.mrf.mxu0
    %v2187 = vadd.f32 0.0, %v2186
    %v2188 = vpop.f32.mrf.mxu0
    %2189 = vdwg.mxu0
    %2191 = vrot.lane.b32.xlu0 %v2187, 64
    %v2192 = vpop.permute.xlu0 %2191
    %2194 = vst.msk [vmem:[#allocation2 + $0x10] sm:$0xff] %vm1951, %v2192
    %v2196 = vunpack.c.h.b16 %v1817
    %v2197 = vpack.c.b16 %v2196, %v2196
    %v2199 = vsel %vm1829, %v1816, 0
    %v2202 = vsel %vm1829, %v2197, 0
    %2204 = vmatpush.bf16.xpose.msra.mxu0 0
    %2205 = vmatpush.bf16.xpose.msra.mxu0 0
    %2206 = vmatpush.bf16.xpose.msra.mxu0 0
    %2207 = vmatpush.bf16.xpose.msra.mxu0 0
    %2208 = vmatpush.bf16.xpose.msra.mxu0 0
    %2209 = vmatpush.bf16.xpose.msra.mxu0 0
    %2210 = vmatpush.bf16.xpose.msra.mxu0 0
    %2211 = vmatpush.bf16.xpose.msra.mxu0 %v2202
    %2212 = vmatmul.bf16.gmra.mxu0 %v2199
    %v2213 = vpop.f32.mrf.mxu0
    %v2214 = vadd.f32 0.0, %v2213
    %v2215 = vpop.f32.mrf.mxu0
    %2216 = vdwg.mxu0
    %v2217 = vsel %vm1825, %v2214, -inf
    %v2218 = vsel %vm1850, %v2217, -inf
    %2219 = vmax.xlane.f32.xlu0 %v2218
    %v2220 = vpop.xlane.xlu0 %2219
    %v2221 = vsub.f32 %v2217, %v2220
    %v2222 = vmul.f32 %v2221, 1.442695
    %v2223 = vpow.pop %v2222
    %v2224 = vsel %vm1850, %v2223, 0.0
    %2225 = vadd.xlane.f32.xlu0 %v2224
    %v2226 = vpop.xlane.xlu0 %2225
    %v2227 = vrcp.pop %v2226
    %v2228 = vmul.f32 %v2223, %v2227
    %v2229 = vpack.c.bf16 %v2228, %v2228
    %v2231 = vsel %vm1850, %v2229, 0
    %v2234 = vsel %vm1866, %v1819, 0
    %2236 = vmatpush.bf16.msra.mxu0 0
    %2237 = vmatpush.bf16.msra.mxu0 0
    %2238 = vmatpush.bf16.msra.mxu0 0
    %2239 = vmatpush.bf16.msra.mxu0 0
    %2240 = vmatpush.bf16.msra.mxu0 0
    %2241 = vmatpush.bf16.msra.mxu0 0
    %2242 = vmatpush.bf16.msra.mxu0 0
    %2243 = vmatpush.bf16.msra.mxu0 %v2234
    %2244 = vmatmul.bf16.gmra.mxu0 %v2231
    %v2245 = vpop.f32.mrf.mxu0
    %v2246 = vadd.f32 0.0, %v2245
    %v2247 = vpop.f32.mrf.mxu0
    %2248 = vdwg.mxu0
    %s2249 = scalar_lea.vmem [#allocation2], 24
    %2250 = vst.msk [vmem:[%s2249] sm:$0xff] %vm1829, %v2246
    %v2252 = vunpack.c.l.b16 %v1816
    %v2253 = vpack.c.b16 %v2252, %v2252
    %2254 = vrot.lane.b32.xlu0 %v2253, 64
    %v2255 = vpop.permute.xlu0 %2254
    %2256 = vrot.lane.b32.xlu0 %v2197, 64
    %v2257 = vpop.permute.xlu0 %2256
    %v2259 = vsel %vm1829, %v2255, 0
    %v2262 = vsel %vm1829, %v2257, 0
    %2264 = vmatpush.bf16.xpose.msra.mxu0 0
    %2265 = vmatpush.bf16.xpose.msra.mxu0 0
    %2266 = vmatpush.bf16.xpose.msra.mxu0 0
    %2267 = vmatpush.bf16.xpose.msra.mxu0 0
    %2268 = vmatpush.bf16.xpose.msra.mxu0 0
    %2269 = vmatpush.bf16.xpose.msra.mxu0 0
    %2270 = vmatpush.bf16.xpose.msra.mxu0 0
    %2271 = vmatpush.bf16.xpose.msra.mxu0 %v2262
    %2272 = vmatmul.bf16.gmra.mxu0 %v2259
    %v2273 = vpop.f32.mrf.mxu0
    %v2274 = vadd.f32 0.0, %v2273
    %v2275 = vpop.f32.mrf.mxu0
    %2276 = vdwg.mxu0
    %v2277 = vsel %vm1825, %v2274, -inf
    %v2278 = vsel %vm1850, %v2277, -inf
    %2279 = vmax.xlane.f32.xlu0 %v2278
    %v2280 = vpop.xlane.xlu0 %2279
    %v2281 = vsub.f32 %v2277, %v2280
    %v2282 = vmul.f32 %v2281, 1.442695
    %v2283 = vpow.pop %v2282
    %v2284 = vsel %vm1850, %v2283, 0.0
    %2285 = vadd.xlane.f32.xlu0 %v2284
    %v2286 = vpop.xlane.xlu0 %2285
    %v2287 = vrcp.pop %v2286
    %v2288 = vmul.f32 %v2283, %v2287
    %v2289 = vpack.c.bf16 %v2288, %v2288
    %v2291 = vunpack.c.l.b16 %v1819
    %v2292 = vpack.c.b16 %v2291, %v2291
    %2293 = vrot.lane.b32.xlu0 %v2292, 64
    %v2294 = vpop.permute.xlu0 %2293
    %v2296 = vsel %vm1850, %v2289, 0
    %v2299 = vsel %vm1866, %v2294, 0
    %2301 = vmatpush.bf16.msra.mxu0 0
    %2302 = vmatpush.bf16.msra.mxu0 0
    %2303 = vmatpush.bf16.msra.mxu0 0
    %2304 = vmatpush.bf16.msra.mxu0 0
    %2305 = vmatpush.bf16.msra.mxu0 0
    %2306 = vmatpush.bf16.msra.mxu0 0
    %2307 = vmatpush.bf16.msra.mxu0 0
    %2308 = vmatpush.bf16.msra.mxu0 %v2299
    %2309 = vmatmul.bf16.gmra.mxu0 %v2296
    %v2310 = vpop.f32.mrf.mxu0
    %v2311 = vadd.f32 0.0, %v2310
    %v2312 = vpop.f32.mrf.mxu0
    %2313 = vdwg.mxu0
    %2315 = vrot.lane.b32.xlu0 %v2311, 64
    %v2316 = vpop.permute.xlu0 %2315
    %2318 = vst.msk [vmem:[%s2249] sm:$0xff] %vm1951, %v2316
    %v2319 = vunpack.c.h.b16 %v1816
    %v2320 = vpack.c.b16 %v2319, %v2319
    %v2322 = vsel %vm1829, %v2320, 0
    %v2325 = vsel %vm1829, %v1818, 0
    %2327 = vmatpush.bf16.xpose.msra.mxu0 0
    %2328 = vmatpush.bf16.xpose.msra.mxu0 0
    %2329 = vmatpush.bf16.xpose.msra.mxu0 0
    %2330 = vmatpush.bf16.xpose.msra.mxu0 0
    %2331 = vmatpush.bf16.xpose.msra.mxu0 0
    %2332 = vmatpush.bf16.xpose.msra.mxu0 0
    %2333 = vmatpush.bf16.xpose.msra.mxu0 0
    %2334 = vmatpush.bf16.xpose.msra.mxu0 %v2325
    %2335 = vmatmul.bf16.gmra.mxu0 %v2322
    %v2336 = vpop.f32.mrf.mxu0
    %v2337 = vadd.f32 0.0, %v2336
    %v2338 = vpop.f32.mrf.mxu0
    %2339 = vdwg.mxu0
    %v2340 = vsel %vm1825, %v2337, -inf
    %v2341 = vsel %vm1850, %v2340, -inf
    %2342 = vmax.xlane.f32.xlu0 %v2341
    %v2343 = vpop.xlane.xlu0 %2342
    %v2344 = vsub.f32 %v2340, %v2343
    %v2345 = vmul.f32 %v2344, 1.442695
    %v2346 = vpow.pop %v2345
    %v2347 = vsel %vm1850, %v2346, 0.0
    %2348 = vadd.xlane.f32.xlu0 %v2347
    %v2349 = vpop.xlane.xlu0 %2348
    %v2350 = vrcp.pop %v2349
    %v2351 = vmul.f32 %v2346, %v2350
    %v2352 = vpack.c.bf16 %v2351, %v2351
    %v2353 = vunpack.c.h.b16 %v1819
    %v2354 = vpack.c.b16 %v2353, %v2353
    %v2356 = vsel %vm1850, %v2352, 0
    %v2359 = vsel %vm1866, %v2354, 0
    %2361 = vmatpush.bf16.msra.mxu0 0
    %2362 = vmatpush.bf16.msra.mxu0 0
    %2363 = vmatpush.bf16.msra.mxu0 0
    %2364 = vmatpush.bf16.msra.mxu0 0
    %2365 = vmatpush.bf16.msra.mxu0 0
    %2366 = vmatpush.bf16.msra.mxu0 0
    %2367 = vmatpush.bf16.msra.mxu0 0
    %2368 = vmatpush.bf16.msra.mxu0 %v2359
    %2369 = vmatmul.bf16.gmra.mxu0 %v2356
    %v2370 = vpop.f32.mrf.mxu0
    %v2371 = vadd.f32 0.0, %v2370
    %v2372 = vpop.f32.mrf.mxu0
    %2373 = vdwg.mxu0
    %2374 = vst.msk [vmem:[%s2249 + $0x8] sm:$0xff] %vm1829, %v2371
    %2375 = vrot.lane.b32.xlu0 %v2320, 64
    %v2376 = vpop.permute.xlu0 %2375
    %v2378 = vunpack.c.l.b16 %v1818
    %v2379 = vpack.c.b16 %v2378, %v2378
    %2380 = vrot.lane.b32.xlu0 %v2379, 64
    %v2381 = vpop.permute.xlu0 %2380
    %v2383 = vsel %vm1829, %v2376, 0
    %v2386 = vsel %vm1829, %v2381, 0
    %2388 = vmatpush.bf16.xpose.msra.mxu0 0
    %2389 = vmatpush.bf16.xpose.msra.mxu0 0
    %2390 = vmatpush.bf16.xpose.msra.mxu0 0
    %2391 = vmatpush.bf16.xpose.msra.mxu0 0
    %2392 = vmatpush.bf16.xpose.msra.mxu0 0
    %2393 = vmatpush.bf16.xpose.msra.mxu0 0
    %2394 = vmatpush.bf16.xpose.msra.mxu0 0
    %2395 = vmatpush.bf16.xpose.msra.mxu0 %v2386
    %2396 = vmatmul.bf16.gmra.mxu0 %v2383
    %v2397 = vpop.f32.mrf.mxu0
    %v2398 = vadd.f32 0.0, %v2397
    %v2399 = vpop.f32.mrf.mxu0
    %2400 = vdwg.mxu0
    %v2401 = vsel %vm1825, %v2398, -inf
    %v2402 = vsel %vm1850, %v2401, -inf
    %2403 = vmax.xlane.f32.xlu0 %v2402
    %v2404 = vpop.xlane.xlu0 %2403
    %v2405 = vsub.f32 %v2401, %v2404
    %v2406 = vmul.f32 %v2405, 1.442695
    %v2407 = vpow.pop %v2406
    %v2408 = vsel %vm1850, %v2407, 0.0
    %2409 = vadd.xlane.f32.xlu0 %v2408
    %v2410 = vpop.xlane.xlu0 %2409
    %v2411 = vrcp.pop %v2410
    %v2412 = vmul.f32 %v2407, %v2411
    %v2413 = vpack.c.bf16 %v2412, %v2412
    %2414 = vrot.lane.b32.xlu0 %v2354, 64
    %v2415 = vpop.permute.xlu0 %2414
    %v2417 = vsel %vm1850, %v2413, 0
    %v2420 = vsel %vm1866, %v2415, 0
    %2422 = vmatpush.bf16.msra.mxu0 0
    %2423 = vmatpush.bf16.msra.mxu0 0
    %2424 = vmatpush.bf16.msra.mxu0 0
    %2425 = vmatpush.bf16.msra.mxu0 0
    %2426 = vmatpush.bf16.msra.mxu0 0
    %2427 = vmatpush.bf16.msra.mxu0 0
    %2428 = vmatpush.bf16.msra.mxu0 0
    %2429 = vmatpush.bf16.msra.mxu0 %v2420
    %2430 = vmatmul.bf16.gmra.mxu0 %v2417
    %v2431 = vpop.f32.mrf.mxu0
    %v2432 = vadd.f32 0.0, %v2431
    %v2433 = vpop.f32.mrf.mxu0
    %2434 = vdwg.mxu0
    %2436 = vrot.lane.b32.xlu0 %v2432, 64
    %v2437 = vpop.permute.xlu0 %2436
    %2439 = vst.msk [vmem:[%s2249 + $0x8] sm:$0xff] %vm1951, %v2437
    %v2440 = vunpack.c.h.b16 %v1818
    %v2441 = vpack.c.b16 %v2440, %v2440
    %v2443 = vsel %vm1829, %v1817, 0
    %v2446 = vsel %vm1829, %v2441, 0
    %2448 = vmatpush.bf16.xpose.msra.mxu0 0
    %2449 = vmatpush.bf16.xpose.msra.mxu0 0
    %2450 = vmatpush.bf16.xpose.msra.mxu0 0
    %2451 = vmatpush.bf16.xpose.msra.mxu0 0
    %2452 = vmatpush.bf16.xpose.msra.mxu0 0
    %2453 = vmatpush.bf16.xpose.msra.mxu0 0
    %2454 = vmatpush.bf16.xpose.msra.mxu0 0
    %2455 = vmatpush.bf16.xpose.msra.mxu0 %v2446
    %2456 = vmatmul.bf16.gmra.mxu0 %v2443
    %v2457 = vpop.f32.mrf.mxu0
    %v2458 = vadd.f32 0.0, %v2457
    %v2459 = vpop.f32.mrf.mxu0
    %2460 = vdwg.mxu0
    %v2461 = vsel %vm1825, %v2458, -inf
    %v2462 = vsel %vm1850, %v2461, -inf
    %2463 = vmax.xlane.f32.xlu0 %v2462
    %v2464 = vpop.xlane.xlu0 %2463
    %v2465 = vsub.f32 %v2461, %v2464
    %v2466 = vmul.f32 %v2465, 1.442695
    %v2467 = vpow.pop %v2466
    %v2468 = vsel %vm1850, %v2467, 0.0
    %2469 = vadd.xlane.f32.xlu0 %v2468
    %v2470 = vpop.xlane.xlu0 %2469
    %v2471 = vrcp.pop %v2470
    %v2472 = vmul.f32 %v2467, %v2471
    %v2473 = vpack.c.bf16 %v2472, %v2472
    %v2475 = vsel %vm1850, %v2473, 0
    %v2478 = vsel %vm1866, %v1820, 0
    %2480 = vmatpush.bf16.msra.mxu0 0
    %2481 = vmatpush.bf16.msra.mxu0 0
    %2482 = vmatpush.bf16.msra.mxu0 0
    %2483 = vmatpush.bf16.msra.mxu0 0
    %2484 = vmatpush.bf16.msra.mxu0 0
    %2485 = vmatpush.bf16.msra.mxu0 0
    %2486 = vmatpush.bf16.msra.mxu0 0
    %2487 = vmatpush.bf16.msra.mxu0 %v2478
    %2488 = vmatmul.bf16.gmra.mxu0 %v2475
    %v2489 = vpop.f32.mrf.mxu0
    %v2490 = vadd.f32 0.0, %v2489
    %v2491 = vpop.f32.mrf.mxu0
    %2492 = vdwg.mxu0
    %2493 = vst.msk [vmem:[%s2249 + $0x10] sm:$0xff] %vm1829, %v2490
    %v2494 = vunpack.c.l.b16 %v1817
    %v2495 = vpack.c.b16 %v2494, %v2494
    %2496 = vrot.lane.b32.xlu0 %v2495, 64
    %v2497 = vpop.permute.xlu0 %2496
    %2498 = vrot.lane.b32.xlu0 %v2441, 64
    %v2499 = vpop.permute.xlu0 %2498
    %v2501 = vsel %vm1829, %v2497, 0
    %v2504 = vsel %vm1829, %v2499, 0
    %2506 = vmatpush.bf16.xpose.msra.mxu0 0
    %2507 = vmatpush.bf16.xpose.msra.mxu0 0
    %2508 = vmatpush.bf16.xpose.msra.mxu0 0
    %2509 = vmatpush.bf16.xpose.msra.mxu0 0
    %2510 = vmatpush.bf16.xpose.msra.mxu0 0
    %2511 = vmatpush.bf16.xpose.msra.mxu0 0
    %2512 = vmatpush.bf16.xpose.msra.mxu0 0
    %2513 = vmatpush.bf16.xpose.msra.mxu0 %v2504
    %2514 = vmatmul.bf16.gmra.mxu0 %v2501
    %v2515 = vpop.f32.mrf.mxu0
    %v2516 = vadd.f32 0.0, %v2515
    %v2517 = vpop.f32.mrf.mxu0
    %2518 = vdwg.mxu0
    %v2519 = vsel %vm1825, %v2516, -inf
    %v2520 = vsel %vm1850, %v2519, -inf
    %2521 = vmax.xlane.f32.xlu0 %v2520
    %v2522 = vpop.xlane.xlu0 %2521
    %v2523 = vsub.f32 %v2519, %v2522
    %v2524 = vmul.f32 %v2523, 1.442695
    %v2525 = vpow.pop %v2524
    %v2526 = vsel %vm1850, %v2525, 0.0
    %2527 = vadd.xlane.f32.xlu0 %v2526
    %v2528 = vpop.xlane.xlu0 %2527
    %v2529 = vrcp.pop %v2528
    %v2530 = vmul.f32 %v2525, %v2529
    %v2531 = vpack.c.bf16 %v2530, %v2530
    %v2533 = vunpack.c.l.b16 %v1820
    %v2534 = vpack.c.b16 %v2533, %v2533
    %2535 = vrot.lane.b32.xlu0 %v2534, 64
    %v2536 = vpop.permute.xlu0 %2535
    %v2538 = vsel %vm1850, %v2531, 0
    %v2541 = vsel %vm1866, %v2536, 0
    %2543 = vmatpush.bf16.msra.mxu0 0
    %2544 = vmatpush.bf16.msra.mxu0 0
    %2545 = vmatpush.bf16.msra.mxu0 0
    %2546 = vmatpush.bf16.msra.mxu0 0
    %2547 = vmatpush.bf16.msra.mxu0 0
    %2548 = vmatpush.bf16.msra.mxu0 0
    %2549 = vmatpush.bf16.msra.mxu0 0
    %2550 = vmatpush.bf16.msra.mxu0 %v2541
    %2551 = vmatmul.bf16.gmra.mxu0 %v2538
    %v2552 = vpop.f32.mrf.mxu0
    %v2553 = vadd.f32 0.0, %v2552
    %v2554 = vpop.f32.mrf.mxu0
    %2555 = vdwg.mxu0
    %2557 = vrot.lane.b32.xlu0 %v2553, 64
    %v2558 = vpop.permute.xlu0 %2557
    %2560 = vst.msk [vmem:[%s2249 + $0x10] sm:$0xff] %vm1951, %v2558
    %v2561 = vld [vmem:[#allocation2] sm:$0xff]
    %v2562 = vld [vmem:[#allocation2 + $0x8] sm:$0xff]
    %v2563 = vld [vmem:[#allocation2 + $0x10] sm:$0xff]
    %v2564 = vld [vmem:[#allocation2 + $0x18] sm:$0xff]
    %v2565 = vld [vmem:[#allocation2 + $0x20] sm:$0xff]
    %v2566 = vld [vmem:[#allocation2 + $0x28] sm:$0xff]
    %v2567 = vpack.c.bf16 %v2564, %v2561
    %v2568 = vpack.c.bf16 %v2565, %v2562
    %v2569 = vpack.c.bf16 %v2566, %v2563
    %v2570 = vld [vmem:[#allocation8] sm:$0xff]
    %v2571 = vld [vmem:[#allocation8 + $0x8] sm:$0xf]
    %v2572 = vld [vmem:[#allocation8 + $0xc] sm:$0xff]
    %v2573 = vld [vmem:[#allocation8 + $0x14] sm:$0xf]
    %v2574 = vld [vmem:[#allocation8 + $0x18] sm:$0xff]
    %v2575 = vld [vmem:[#allocation8 + $0x20] sm:$0xf]
    %v2576 = vld [vmem:[#allocation8 + $0x24] sm:$0xff]
    %v2577 = vld [vmem:[#allocation8 + $0x2c] sm:$0xf]
    %v2578 = vld [vmem:[#allocation8 + $0x30] sm:$0xff]
    %v2579 = vld [vmem:[#allocation8 + $0x38] sm:$0xf]
    %v2580 = vld [vmem:[#allocation8 + $0x3c] sm:$0xff]
    %v2581 = vld [vmem:[#allocation8 + $0x44] sm:$0xf]
    %v2582 = vld [vmem:[#allocation8 + $0x48] sm:$0xff]
    %v2583 = vld [vmem:[#allocation8 + $0x50] sm:$0xf]
    %v2584 = vld [vmem:[#allocation8 + $0x54] sm:$0xff]
    %v2585 = vld [vmem:[#allocation8 + $0x5c] sm:$0xf]
    %v2586 = vld [vmem:[#allocation8 + $0x60] sm:$0xff]
    %v2587 = vld [vmem:[#allocation8 + $0x68] sm:$0xf]
    %v2588 = vld [vmem:[#allocation8 + $0x6c] sm:$0xff]
    %v2589 = vld [vmem:[#allocation8 + $0x74] sm:$0xf]
    %v2590 = vld [vmem:[#allocation8 + $0x78] sm:$0xff]
    %v2591 = vld [vmem:[#allocation8 + $0x80] sm:$0xf]
    %v2592 = vld [vmem:[#allocation8 + $0x84] sm:$0xff]
    %v2593 = vld [vmem:[#allocation8 + $0x8c] sm:$0xf]
    %v2594 = vld [vmem:[#allocation8 + $0x90] sm:$0xff]
    %v2595 = vld [vmem:[#allocation8 + $0x98] sm:$0xf]
    %v2596 = vld [vmem:[#allocation8 + $0x9c] sm:$0xff]
    %v2597 = vld [vmem:[#allocation8 + $0xa4] sm:$0xf]
    %v2598 = vld [vmem:[#allocation8 + $0xa8] sm:$0xff]
    %v2599 = vld [vmem:[#allocation8 + $0xb0] sm:$0xf]
    %v2600 = vld [vmem:[#allocation8 + $0xb4] sm:$0xff]
    %v2601 = vld [vmem:[#allocation8 + $0xbc] sm:$0xf]
    %v2602 = vld [vmem:[#allocation8 + $0xc0] sm:$0xff]
    %v2603 = vld [vmem:[#allocation8 + $0xc8] sm:$0xf]
    %v2604 = vld [vmem:[#allocation8 + $0xcc] sm:$0xff]
    %v2605 = vld [vmem:[#allocation8 + $0xd4] sm:$0xf]
    %v2606 = vld [vmem:[#allocation8 + $0xd8] sm:$0xff]
    %v2607 = vld [vmem:[#allocation8 + $0xe0] sm:$0xf]
    %v2608 = vld [vmem:[#allocation8 + $0xe4] sm:$0xff]
    %v2609 = vld [vmem:[#allocation8 + $0xec] sm:$0xf]
    %v2610 = vld [vmem:[#allocation8 + $0xf0] sm:$0xff]
    %v2611 = vld [vmem:[#allocation8 + $0xf8] sm:$0xf]
    %v2612 = vld [vmem:[#allocation8 + $0xfc] sm:$0xff]
    %v2613 = vld [vmem:[#allocation8 + $0x104] sm:$0xf]
    %v2614 = vld [vmem:[#allocation8 + $0x108] sm:$0xff]
    %v2615 = vld [vmem:[#allocation8 + $0x110] sm:$0xf]
    %v2616 = vld [vmem:[#allocation8 + $0x114] sm:$0xff]
    %v2617 = vld [vmem:[#allocation8 + $0x11c] sm:$0xf]
    %v2618 = vld [vmem:[#allocation8 + $0x120] sm:$0xff]
    %v2619 = vld [vmem:[#allocation8 + $0x128] sm:$0xf]
    %v2620 = vld [vmem:[#allocation8 + $0x12c] sm:$0xff]
    %v2621 = vld [vmem:[#allocation8 + $0x134] sm:$0xf]
    %v2622 = vld [vmem:[#allocation8 + $0x138] sm:$0xff]
    %v2623 = vld [vmem:[#allocation8 + $0x140] sm:$0xf]
    %v2624 = vld [vmem:[#allocation8 + $0x144] sm:$0xff]
    %v2625 = vld [vmem:[#allocation8 + $0x14c] sm:$0xf]
    %v2626 = vld [vmem:[#allocation8 + $0x150] sm:$0xff]
    %v2627 = vld [vmem:[#allocation8 + $0x158] sm:$0xf]
    %v2628 = vld [vmem:[#allocation8 + $0x15c] sm:$0xff]
    %v2629 = vld [vmem:[#allocation8 + $0x164] sm:$0xf]
    %v2630 = vld [vmem:[#allocation8 + $0x168] sm:$0xff]
    %v2631 = vld [vmem:[#allocation8 + $0x170] sm:$0xf]
    %v2632 = vld [vmem:[#allocation8 + $0x174] sm:$0xff]
    %v2633 = vld [vmem:[#allocation8 + $0x17c] sm:$0xf]
    %v2634 = vld [vmem:[#allocation8 + $0x180] sm:$0xff]
    %v2635 = vld [vmem:[#allocation8 + $0x188] sm:$0xf]
    %v2636 = vld [vmem:[#allocation8 + $0x18c] sm:$0xff]
    %v2637 = vld [vmem:[#allocation8 + $0x194] sm:$0xf]
    %v2638 = vld [vmem:[#allocation8 + $0x198] sm:$0xff]
    %v2639 = vld [vmem:[#allocation8 + $0x1a0] sm:$0xf]
    %v2640 = vld [vmem:[#allocation8 + $0x1a4] sm:$0xff]
    %v2641 = vld [vmem:[#allocation8 + $0x1ac] sm:$0xf]
    %v2642 = vld [vmem:[#allocation8 + $0x1b0] sm:$0xff]
    %v2643 = vld [vmem:[#allocation8 + $0x1b8] sm:$0xf]
    %v2644 = vld [vmem:[#allocation8 + $0x1bc] sm:$0xff]
    %v2645 = vld [vmem:[#allocation8 + $0x1c4] sm:$0xf]
    %v2646 = vld [vmem:[#allocation8 + $0x1c8] sm:$0xff]
    %v2647 = vld [vmem:[#allocation8 + $0x1d0] sm:$0xf]
    %v2648 = vld [vmem:[#allocation8 + $0x1d4] sm:$0xff]
    %v2649 = vld [vmem:[#allocation8 + $0x1dc] sm:$0xf]
    %v2650 = vld [vmem:[#allocation8 + $0x1e0] sm:$0xff]
    %v2651 = vld [vmem:[#allocation8 + $0x1e8] sm:$0xf]
    %v2652 = vld [vmem:[#allocation8 + $0x1ec] sm:$0xff]
    %v2653 = vld [vmem:[#allocation8 + $0x1f4] sm:$0xf]
    %v2654 = vld [vmem:[#allocation8 + $0x1f8] sm:$0xff]
    %v2655 = vld [vmem:[#allocation8 + $0x200] sm:$0xf]
    %v2656 = vld [vmem:[#allocation8 + $0x204] sm:$0xff]
    %v2657 = vld [vmem:[#allocation8 + $0x20c] sm:$0xf]
    %v2658 = vld [vmem:[#allocation8 + $0x210] sm:$0xff]
    %v2659 = vld [vmem:[#allocation8 + $0x218] sm:$0xf]
    %v2660 = vld [vmem:[#allocation8 + $0x21c] sm:$0xff]
    %v2661 = vld [vmem:[#allocation8 + $0x224] sm:$0xf]
    %v2662 = vld [vmem:[#allocation8 + $0x228] sm:$0xff]
    %v2663 = vld [vmem:[#allocation8 + $0x230] sm:$0xf]
    %v2664 = vld [vmem:[#allocation8 + $0x234] sm:$0xff]
    %v2665 = vld [vmem:[#allocation8 + $0x23c] sm:$0xf]
    %v2666 = vld [vmem:[#allocation9] sm:$0x7]
    %v2668 = vperm.slane %v2666, 0
    %v2669 = vperm.slane %v2666, 1
    %v2670 = vperm.slane %v2666, 2
    %v2770 = vunpack.c.l.b16 %v2570
    %v2771 = vunpack.c.h.b16 %v2570
    %v2772 = vunpack.c.l.b16 %v2571
    %v2773 = vunpack.c.l.b16 %v2572
    %v2774 = vunpack.c.h.b16 %v2572
    %v2775 = vunpack.c.l.b16 %v2573
    %v2776 = vunpack.c.l.b16 %v2574
    %v2777 = vunpack.c.h.b16 %v2574
    %v2778 = vunpack.c.l.b16 %v2575
    %v2779 = vunpack.c.l.b16 %v2576
    %v2780 = vunpack.c.h.b16 %v2576
    %v2781 = vunpack.c.l.b16 %v2577
    %v2782 = vunpack.c.l.b16 %v2578
    %v2783 = vunpack.c.h.b16 %v2578
    %v2784 = vunpack.c.l.b16 %v2579
    %v2785 = vunpack.c.l.b16 %v2580
    %v2786 = vunpack.c.h.b16 %v2580
    %v2787 = vunpack.c.l.b16 %v2581
    %v2788 = vunpack.c.l.b16 %v2582
    %v2789 = vunpack.c.h.b16 %v2582
    %v2790 = vunpack.c.l.b16 %v2583
    %v2791 = vunpack.c.l.b16 %v2584
    %v2792 = vunpack.c.h.b16 %v2584
    %v2793 = vunpack.c.l.b16 %v2585
    %v2794 = vunpack.c.l.b16 %v2586
    %v2795 = vunpack.c.h.b16 %v2586
    %v2796 = vunpack.c.l.b16 %v2587
    %v2797 = vunpack.c.l.b16 %v2588
    %v2798 = vunpack.c.h.b16 %v2588
    %v2799 = vunpack.c.l.b16 %v2589
    %v2800 = vunpack.c.l.b16 %v2590
    %v2801 = vunpack.c.h.b16 %v2590
    %v2802 = vunpack.c.l.b16 %v2591
    %v2803 = vunpack.c.l.b16 %v2592
    %v2804 = vunpack.c.h.b16 %v2592
    %v2805 = vunpack.c.l.b16 %v2593
    %v2806 = vunpack.c.l.b16 %v2594
    %v2807 = vunpack.c.h.b16 %v2594
    %v2808 = vunpack.c.l.b16 %v2595
    %v2809 = vunpack.c.l.b16 %v2596
    %v2810 = vunpack.c.h.b16 %v2596
    %v2811 = vunpack.c.l.b16 %v2597
    %v2812 = vunpack.c.l.b16 %v2598
    %v2813 = vunpack.c.h.b16 %v2598
    %v2814 = vunpack.c.l.b16 %v2599
    %v2815 = vunpack.c.l.b16 %v2600
    %v2816 = vunpack.c.h.b16 %v2600
    %v2817 = vunpack.c.l.b16 %v2601
    %v2818 = vunpack.c.l.b16 %v2602
    %v2819 = vunpack.c.h.b16 %v2602
    %v2820 = vunpack.c.l.b16 %v2603
    %v2821 = vunpack.c.l.b16 %v2604
    %v2822 = vunpack.c.h.b16 %v2604
    %v2823 = vunpack.c.l.b16 %v2605
    %v2824 = vunpack.c.l.b16 %v2606
    %v2825 = vunpack.c.h.b16 %v2606
    %v2826 = vunpack.c.l.b16 %v2607
    %v2827 = vunpack.c.l.b16 %v2608
    %v2828 = vunpack.c.h.b16 %v2608
    %v2829 = vunpack.c.l.b16 %v2609
    %v2830 = vunpack.c.l.b16 %v2610
    %v2831 = vunpack.c.h.b16 %v2610
    %v2832 = vunpack.c.l.b16 %v2611
    %v2833 = vunpack.c.l.b16 %v2612
    %v2834 = vunpack.c.h.b16 %v2612
    %v2835 = vunpack.c.l.b16 %v2613
    %v2836 = vunpack.c.l.b16 %v2614
    %v2837 = vunpack.c.h.b16 %v2614
    %v2838 = vunpack.c.l.b16 %v2615
    %v2839 = vunpack.c.l.b16 %v2616
    %v2840 = vunpack.c.h.b16 %v2616
    %v2841 = vunpack.c.l.b16 %v2617
    %v2842 = vunpack.c.l.b16 %v2618
    %v2843 = vunpack.c.h.b16 %v2618
    %v2844 = vunpack.c.l.b16 %v2619
    %v2845 = vunpack.c.l.b16 %v2620
    %v2846 = vunpack.c.h.b16 %v2620
    %v2847 = vunpack.c.l.b16 %v2621
    %v2848 = vunpack.c.l.b16 %v2622
    %v2849 = vunpack.c.h.b16 %v2622
    %v2850 = vunpack.c.l.b16 %v2623
    %v2851 = vunpack.c.l.b16 %v2624
    %v2852 = vunpack.c.h.b16 %v2624
    %v2853 = vunpack.c.l.b16 %v2625
    %v2854 = vunpack.c.l.b16 %v2626
    %v2855 = vunpack.c.h.b16 %v2626
    %v2856 = vunpack.c.l.b16 %v2627
    %v2857 = vunpack.c.l.b16 %v2628
    %v2858 = vunpack.c.h.b16 %v2628
    %v2859 = vunpack.c.l.b16 %v2629
    %v2860 = vunpack.c.l.b16 %v2630
    %v2861 = vunpack.c.h.b16 %v2630
    %v2862 = vunpack.c.l.b16 %v2631
    %v2863 = vunpack.c.l.b16 %v2632
    %v2864 = vunpack.c.h.b16 %v2632
    %v2865 = vunpack.c.l.b16 %v2633
    %v2866 = vunpack.c.l.b16 %v2634
    %v2867 = vunpack.c.h.b16 %v2634
    %v2868 = vunpack.c.l.b16 %v2635
    %v2869 = vunpack.c.l.b16 %v2636
    %v2870 = vunpack.c.h.b16 %v2636
    %v2871 = vunpack.c.l.b16 %v2637
    %v2872 = vunpack.c.l.b16 %v2638
    %v2873 = vunpack.c.h.b16 %v2638
    %v2874 = vunpack.c.l.b16 %v2639
    %v2875 = vunpack.c.l.b16 %v2640
    %v2876 = vunpack.c.h.b16 %v2640
    %v2877 = vunpack.c.l.b16 %v2641
    %v2878 = vunpack.c.l.b16 %v2642
    %v2879 = vunpack.c.h.b16 %v2642
    %v2880 = vunpack.c.l.b16 %v2643
    %v2881 = vunpack.c.l.b16 %v2644
    %v2882 = vunpack.c.h.b16 %v2644
    %v2883 = vunpack.c.l.b16 %v2645
    %v2884 = vunpack.c.l.b16 %v2646
    %v2885 = vunpack.c.h.b16 %v2646
    %v2886 = vunpack.c.l.b16 %v2647
    %v2887 = vunpack.c.l.b16 %v2648
    %v2888 = vunpack.c.h.b16 %v2648
    %v2889 = vunpack.c.l.b16 %v2649
    %v2890 = vunpack.c.l.b16 %v2650
    %v2891 = vunpack.c.h.b16 %v2650
    %v2892 = vunpack.c.l.b16 %v2651
    %v2893 = vunpack.c.l.b16 %v2652
    %v2894 = vunpack.c.h.b16 %v2652
    %v2895 = vunpack.c.l.b16 %v2653
    %v2896 = vunpack.c.l.b16 %v2654
    %v2897 = vunpack.c.h.b16 %v2654
    %v2898 = vunpack.c.l.b16 %v2655
    %v2899 = vunpack.c.l.b16 %v2656
    %v2900 = vunpack.c.h.b16 %v2656
    %v2901 = vunpack.c.l.b16 %v2657
    %v2902 = vunpack.c.l.b16 %v2658
    %v2903 = vunpack.c.h.b16 %v2658
    %v2904 = vunpack.c.l.b16 %v2659
    %v2905 = vunpack.c.l.b16 %v2660
    %v2906 = vunpack.c.h.b16 %v2660
    %v2907 = vunpack.c.l.b16 %v2661
    %v2908 = vunpack.c.l.b16 %v2662
    %v2909 = vunpack.c.h.b16 %v2662
    %v2910 = vunpack.c.l.b16 %v2663
    %v2911 = vunpack.c.l.b16 %v2664
    %v2912 = vunpack.c.h.b16 %v2664
    %v2913 = vunpack.c.l.b16 %v2665
    %v2914 = vpack.c.b16 %v2773, %v2770
    %v2915 = vpack.c.b16 %v2774, %v2771
    %v2916 = vpack.c.b16 %v2775, %v2772
    %v2917 = vpack.c.b16 %v2779, %v2776
    %v2918 = vpack.c.b16 %v2780, %v2777
    %v2919 = vpack.c.b16 %v2781, %v2778
    %v2920 = vpack.c.b16 %v2785, %v2782
    %v2921 = vpack.c.b16 %v2786, %v2783
    %v2922 = vpack.c.b16 %v2787, %v2784
    %v2923 = vpack.c.b16 %v2791, %v2788
    %v2924 = vpack.c.b16 %v2792, %v2789
    %v2925 = vpack.c.b16 %v2793, %v2790
    %v2926 = vpack.c.b16 %v2797, %v2794
    %v2927 = vpack.c.b16 %v2798, %v2795
    %v2928 = vpack.c.b16 %v2799, %v2796
    %v2929 = vpack.c.b16 %v2803, %v2800
    %v2930 = vpack.c.b16 %v2804, %v2801
    %v2931 = vpack.c.b16 %v2805, %v2802
    %v2932 = vpack.c.b16 %v2809, %v2806
    %v2933 = vpack.c.b16 %v2810, %v2807
    %v2934 = vpack.c.b16 %v2811, %v2808
    %v2935 = vpack.c.b16 %v2815, %v2812
    %v2936 = vpack.c.b16 %v2816, %v2813
    %v2937 = vpack.c.b16 %v2817, %v2814
    %v2938 = vpack.c.b16 %v2821, %v2818
    %v2939 = vpack.c.b16 %v2822, %v2819
    %v2940 = vpack.c.b16 %v2823, %v2820
    %v2941 = vpack.c.b16 %v2827, %v2824
    %v2942 = vpack.c.b16 %v2828, %v2825
    %v2943 = vpack.c.b16 %v2829, %v2826
    %v2944 = vpack.c.b16 %v2833, %v2830
    %v2945 = vpack.c.b16 %v2834, %v2831
    %v2946 = vpack.c.b16 %v2835, %v2832
    %v2947 = vpack.c.b16 %v2839, %v2836
    %v2948 = vpack.c.b16 %v2840, %v2837
    %v2949 = vpack.c.b16 %v2841, %v2838
    %v2950 = vpack.c.b16 %v2845, %v2842
    %v2951 = vpack.c.b16 %v2846, %v2843
    %v2952 = vpack.c.b16 %v2847, %v2844
    %v2953 = vpack.c.b16 %v2851, %v2848
    %v2954 = vpack.c.b16 %v2852, %v2849
    %v2955 = vpack.c.b16 %v2853, %v2850
    %v2956 = vpack.c.b16 %v2857, %v2854
    %v2957 = vpack.c.b16 %v2858, %v2855
    %v2958 = vpack.c.b16 %v2859, %v2856
    %v2959 = vpack.c.b16 %v2863, %v2860
    %v2960 = vpack.c.b16 %v2864, %v2861
    %v2961 = vpack.c.b16 %v2865, %v2862
    %v2962 = vpack.c.b16 %v2869, %v2866
    %v2963 = vpack.c.b16 %v2870, %v2867
    %v2964 = vpack.c.b16 %v2871, %v2868
    %v2965 = vpack.c.b16 %v2875, %v2872
    %v2966 = vpack.c.b16 %v2876, %v2873
    %v2967 = vpack.c.b16 %v2877, %v2874
    %v2968 = vpack.c.b16 %v2881, %v2878
    %v2969 = vpack.c.b16 %v2882, %v2879
    %v2970 = vpack.c.b16 %v2883, %v2880
    %v2971 = vpack.c.b16 %v2887, %v2884
    %v2972 = vpack.c.b16 %v2888, %v2885
    %v2973 = vpack.c.b16 %v2889, %v2886
    %v2974 = vpack.c.b16 %v2893, %v2890
    %v2975 = vpack.c.b16 %v2894, %v2891
    %v2976 = vpack.c.b16 %v2895, %v2892
    %v2977 = vpack.c.b16 %v2899, %v2896
    %v2978 = vpack.c.b16 %v2900, %v2897
    %v2979 = vpack.c.b16 %v2901, %v2898
    %v2980 = vpack.c.b16 %v2905, %v2902
    %v2981 = vpack.c.b16 %v2906, %v2903
    %v2982 = vpack.c.b16 %v2907, %v2904
    %v2983 = vpack.c.b16 %v2911, %v2908
    %v2984 = vpack.c.b16 %v2912, %v2909
    %v2985 = vpack.c.b16 %v2913, %v2910
    %3058 = vmatpush.bf16.msra.mxu0 %v2935
    %3059 = vmatpush.bf16.msra.mxu0 %v2932
    %3060 = vmatpush.bf16.msra.mxu0 %v2929
    %3061 = vmatpush.bf16.msra.mxu0 %v2926
    %3062 = vmatpush.bf16.msra.mxu0 %v2923
    %3063 = vmatpush.bf16.msra.mxu0 %v2920
    %3064 = vmatpush.bf16.msra.mxu0 %v2917
    %3065 = vmatpush.bf16.msra.mxu0 %v2914
    %3066 = vmatmul.bf16.gmra.mxu0 %v2567
    %v3067 = vpop.f32.mrf.mxu0
    %v3068 = vadd.f32 %v2668, %v3067
    %v3069 = vpop.f32.mrf.mxu0
    %v3070 = vadd.f32 %v2668, %v3069
    %3071 = vdwg.mxu0
    %3072 = vmatpush.bf16.msra.mxu0 %v2959
    %3073 = vmatpush.bf16.msra.mxu0 %v2956
    %3074 = vmatpush.bf16.msra.mxu0 %v2953
    %3075 = vmatpush.bf16.msra.mxu0 %v2950
    %3076 = vmatpush.bf16.msra.mxu0 %v2947
    %3077 = vmatpush.bf16.msra.mxu0 %v2944
    %3078 = vmatpush.bf16.msra.mxu0 %v2941
    %3079 = vmatpush.bf16.msra.mxu0 %v2938
    %3080 = vmatmul.bf16.gmra.mxu0 %v2568
    %v3081 = vpop.f32.mrf.mxu0
    %v3082 = vadd.f32 %v3068, %v3081
    %v3083 = vpop.f32.mrf.mxu0
    %v3084 = vadd.f32 %v3070, %v3083
    %3085 = vdwg.mxu0
    %3086 = vmatpush.bf16.msra.mxu0 %v2983
    %3087 = vmatpush.bf16.msra.mxu0 %v2980
    %3088 = vmatpush.bf16.msra.mxu0 %v2977
    %3089 = vmatpush.bf16.msra.mxu0 %v2974
    %3090 = vmatpush.bf16.msra.mxu0 %v2971
    %3091 = vmatpush.bf16.msra.mxu0 %v2968
    %3092 = vmatpush.bf16.msra.mxu0 %v2965
    %3093 = vmatpush.bf16.msra.mxu0 %v2962
    %3094 = vmatmul.bf16.gmra.mxu0 %v2569
    %v3095 = vpop.f32.mrf.mxu0
    %v3096 = vadd.f32 %v3082, %v3095
    %v3097 = vpop.f32.mrf.mxu0
    %v3098 = vadd.f32 %v3084, %v3097
    %3099 = vdwg.mxu0
    %3100 = vmatpush.bf16.msra.mxu0 %v2936
    %3101 = vmatpush.bf16.msra.mxu0 %v2933
    %3102 = vmatpush.bf16.msra.mxu0 %v2930
    %3103 = vmatpush.bf16.msra.mxu0 %v2927
    %3104 = vmatpush.bf16.msra.mxu0 %v2924
    %3105 = vmatpush.bf16.msra.mxu0 %v2921
    %3106 = vmatpush.bf16.msra.mxu0 %v2918
    %3107 = vmatpush.bf16.msra.mxu0 %v2915
    %3108 = vmatmul.bf16.gmra.mxu0 %v2567
    %v3109 = vpop.f32.mrf.mxu0
    %v3110 = vadd.f32 %v2669, %v3109
    %v3111 = vpop.f32.mrf.mxu0
    %v3112 = vadd.f32 %v2669, %v3111
    %3113 = vdwg.mxu0
    %3114 = vmatpush.bf16.msra.mxu0 %v2960
    %3115 = vmatpush.bf16.msra.mxu0 %v2957
    %3116 = vmatpush.bf16.msra.mxu0 %v2954
    %3117 = vmatpush.bf16.msra.mxu0 %v2951
    %3118 = vmatpush.bf16.msra.mxu0 %v2948
    %3119 = vmatpush.bf16.msra.mxu0 %v2945
    %3120 = vmatpush.bf16.msra.mxu0 %v2942
    %3121 = vmatpush.bf16.msra.mxu0 %v2939
    %3122 = vmatmul.bf16.gmra.mxu0 %v2568
    %v3123 = vpop.f32.mrf.mxu0
    %v3124 = vadd.f32 %v3110, %v3123
    %v3125 = vpop.f32.mrf.mxu0
    %v3126 = vadd.f32 %v3112, %v3125
    %3127 = vdwg.mxu0
    %3128 = vmatpush.bf16.msra.mxu0 %v2984
    %3129 = vmatpush.bf16.msra.mxu0 %v2981
    %3130 = vmatpush.bf16.msra.mxu0 %v2978
    %3131 = vmatpush.bf16.msra.mxu0 %v2975
    %3132 = vmatpush.bf16.msra.mxu0 %v2972
    %3133 = vmatpush.bf16.msra.mxu0 %v2969
    %3134 = vmatpush.bf16.msra.mxu0 %v2966
    %3135 = vmatpush.bf16.msra.mxu0 %v2963
    %3136 = vmatmul.bf16.gmra.mxu0 %v2569
    %v3137 = vpop.f32.mrf.mxu0
    %v3138 = vadd.f32 %v3124, %v3137
    %v3139 = vpop.f32.mrf.mxu0
    %v3140 = vadd.f32 %v3126, %v3139
    %3141 = vdwg.mxu0
    %3142 = vmatpush.bf16.msra.mxu0 %v2937
    %3143 = vmatpush.bf16.msra.mxu0 %v2934
    %3144 = vmatpush.bf16.msra.mxu0 %v2931
    %3145 = vmatpush.bf16.msra.mxu0 %v2928
    %3146 = vmatpush.bf16.msra.mxu0 %v2925
    %3147 = vmatpush.bf16.msra.mxu0 %v2922
    %3148 = vmatpush.bf16.msra.mxu0 %v2919
    %3149 = vmatpush.bf16.msra.mxu0 %v2916
    %3150 = vmatmul.bf16.gmra.mxu0 %v2567
    %v3151 = vpop.f32.mrf.mxu0
    %v3152 = vadd.f32 %v2670, %v3151
    %v3153 = vpop.f32.mrf.mxu0
    %v3154 = vadd.f32 %v2670, %v3153
    %3155 = vdwg.mxu0
    %3156 = vmatpush.bf16.msra.mxu0 %v2961
    %3157 = vmatpush.bf16.msra.mxu0 %v2958
    %3158 = vmatpush.bf16.msra.mxu0 %v2955
    %3159 = vmatpush.bf16.msra.mxu0 %v2952
    %3160 = vmatpush.bf16.msra.mxu0 %v2949
    %3161 = vmatpush.bf16.msra.mxu0 %v2946
    %3162 = vmatpush.bf16.msra.mxu0 %v2943
    %3163 = vmatpush.bf16.msra.mxu0 %v2940
    %3164 = vmatmul.bf16.gmra.mxu0 %v2568
    %v3165 = vpop.f32.mrf.mxu0
    %v3166 = vadd.f32 %v3152, %v3165
    %v3167 = vpop.f32.mrf.mxu0
    %v3168 = vadd.f32 %v3154, %v3167
    %3169 = vdwg.mxu0
    %3170 = vmatpush.bf16.msra.mxu0 %v2985
    %3171 = vmatpush.bf16.msra.mxu0 %v2982
    %3172 = vmatpush.bf16.msra.mxu0 %v2979
    %3173 = vmatpush.bf16.msra.mxu0 %v2976
    %3174 = vmatpush.bf16.msra.mxu0 %v2973
    %3175 = vmatpush.bf16.msra.mxu0 %v2970
    %3176 = vmatpush.bf16.msra.mxu0 %v2967
    %3177 = vmatpush.bf16.msra.mxu0 %v2964
    %3178 = vmatmul.bf16.gmra.mxu0 %v2569
    %v3179 = vpop.f32.mrf.mxu0
    %v3180 = vadd.f32 %v3166, %v3179
    %v3181 = vpop.f32.mrf.mxu0
    %v3182 = vadd.f32 %v3168, %v3181
    %3183 = vdwg.mxu0
    %3184 = vst [vmem:[#allocation11] sm:$0xff] %v3096
    %3185 = vst [vmem:[#allocation11 + $0x8] sm:$0xff] %v3138
    %3186 = vst [vmem:[#allocation11 + $0x10] sm:$0xff] %v3180
    %3187 = vst [vmem:[#allocation11 + $0x18] sm:$0xff] %v3098
    %3188 = vst [vmem:[#allocation11 + $0x20] sm:$0xff] %v3140
    %3189 = vst [vmem:[#allocation11 + $0x28] sm:$0xff] %v3182
    // Predicated region
    $region34: #{multi_head_attention.1} parent=1 // pred_check
      _
    $region35: #{multi_head_attention.1} parent=1 // pred_check_branch
      %3191 = sbr.rel (0) target = $region37
    $region36: #{multi_head_attention.1} parent=1 // pred_region
      %3193 = vsyncadd [#allocation5], 0
      %s3194 = sshll.u32 [#allocation11], 4
      %s3195 = int_to_ptr.vmem [resolvable:$true] %s3194
      %s3196 = sshll.u32 %s4, 4
      %s3197 = int_to_ptr.hbm [resolvable:$true] %s3196
      %3202 = dma.vmem_to_hbm [thread:$0]  %s3195, 768, %s3197, [#allocation5], 384, 384, 24
    $region37: #{multi_head_attention.1} parent=1 // pred_fallthru
      _
    // Predicated region
    $region38: #{multi_head_attention.1} parent=1 // pred_check
      _
    $region39: #{multi_head_attention.1} parent=1 // pred_check_branch
      %3204 = sbr.rel (0) target = $region41
    $region40: #{multi_head_attention.1} parent=1 // pred_region
      %3206 = dma.done [#allocation5], 768
    $region41: #{multi_head_attention.1} parent=1 // pred_fallthru
      _
    %3207 = vsyncpa [#allocation4], 1
    %3208 = vsyncpa [#allocation7], 1
    %3209 = vsyncpa [#allocation10], 1
    %3210 = vsyncpa [#allocation5], 1

</llo_original>
